<compile_context>
chip_gen: v6e
topology: v6e:2x2x1
jax: 0.10.0
libtpu: 0.0.40
codegen_flags: <defaults>
</compile_context>

<pallas_src>
import functools

import jax
import jax.numpy as jnp
from jax.experimental import pallas as pl
from jax.experimental.pallas import tpu as pltpu


# --------------------------------------------------------------------------
# Pallas kernels
# --------------------------------------------------------------------------

def _conv_relu_pool_kernel(x_ref, w_ref, b_ref, o_ref):
    """One M-tile of: out = maxpool8(relu(x @ w + b)).

    x_ref : (TM, K)     bf16  im2col rows; each group of 8 consecutive rows
                              is one 2x2x2 pooling window.
    w_ref : (K, N)      bf16
    b_ref : (1, N)      f32
    o_ref : (TM//8, N)  bf16  pooled output rows.
    """
    acc = jnp.dot(x_ref[...], w_ref[...], preferred_element_type=jnp.float32)
    acc = jnp.maximum(acc + b_ref[...], 0.0)               # bias + ReLU in f32
    tm, n = acc.shape
    pooled = jnp.max(acc.reshape(tm // 8, 8, n), axis=1)   # fused 2x2x2 pool
    o_ref[...] = pooled.astype(o_ref.dtype)


def _fc_fused_kernel(x_ref, w1_ref, b1_ref, w2_ref, b2_ref, o_ref, acc_ref):
    """out = relu(x @ w1 + b1) @ w2 + b2 with a K grid over fc1's flat_dim.

    w1 streams through VMEM one K tile per step; only w2 (small) is
    resident every step.  acc_ref is an f32 accumulator of shape (M, N1).
    """
    k = pl.program_id(0)

    @pl.when(k == 0)
    def _():
        acc_ref[...] = jnp.zeros_like(acc_ref)

    acc_ref[...] += jnp.dot(x_ref[...], w1_ref[...],
                            preferred_element_type=jnp.float32)

    @pl.when(k == pl.num_programs(0) - 1)
    def _():
        h = jnp.maximum(acc_ref[...] + b1_ref[...], 0.0)    # f32 epilogue
        o = jnp.dot(h.astype(jnp.bfloat16), w2_ref[...],
                    preferred_element_type=jnp.float32)
        o_ref[...] = o + b2_ref[...]


# --------------------------------------------------------------------------
# Tiling helpers
# --------------------------------------------------------------------------

def _num_megacore_tiles():
    """2 on v7x (two TensorCores/chip), else 1 (v5e/v6e single TC)."""
    try:
        kind = jax.devices()[0].device_kind.lower()
    except Exception:
        return 1
    return 2 if ("v7" in kind or "7x" in kind) else 1


def _choose_m_tiling(m, num_cores, target=1024):
    """Pick (padded_M, tile_M).  m is always a multiple of 8 (pool windows).

    Single-TC chips get one block when it fits (fewest pipeline steps);
    v7x gets >= num_cores even 128-multiple tiles so megacore can shard.
    Large M is padded up to a tile multiple rather than one giant block.
    """
    if num_cores > 1 and m >= 2 * 128:
        tm = min(target, max(128, (m // (num_cores * 128)) * 128))
    elif m <= target:
        return m, m                       # single block, one pipeline step
    else:
        tm = target
    mp = -(-m // tm) * tm
    return mp, tm


def _choose_k_tile(k, target=2048):
    """K tile for the fc1 matmul (keeps fc1_w streaming, not VMEM-resident)."""
    if k <= target:
        return k
    for t in range(target, 127, -128):
        if k % t == 0:
            return t
    return k   # TODO(synk): pad K for awkward flat_dims


# --------------------------------------------------------------------------
# Pallas wrappers
# --------------------------------------------------------------------------

def matmul_bias_relu_pool8(x2, w2, b2d, num_cores):
    """x2:(M,K) @ w2:(K,N) + b, ReLU, then max over groups of 8 rows."""
    M, K = x2.shape
    K2, N = w2.shape
    assert K == K2 and M % 8 == 0

    Mp, tm = _choose_m_tiling(M, num_cores)
    if Mp != M:
        # Padded rows form extra all-zero pool windows; dropped below.
        x2 = jnp.pad(x2, ((0, Mp - M), (0, 0)))

    out = pl.pallas_call(
        _conv_relu_pool_kernel,
        out_shape=jax.ShapeDtypeStruct((Mp // 8, N), jnp.bfloat16),
        grid=(Mp // tm,),
        in_specs=[
            pl.BlockSpec((tm, K), lambda i: (i, 0)),     # true K, no HBM pad
            pl.BlockSpec((K, N), lambda i: (0, 0)),
            pl.BlockSpec((1, N), lambda i: (0, 0)),
        ],
        out_specs=pl.BlockSpec((tm // 8, N), lambda i: (i, 0)),
        compiler_params=pltpu.CompilerParams(
            dimension_semantics=("parallel",)),
    )(x2, w2, b2d)
    return out[: M // 8]


def fc1_fc2_fused(x, w1, b1_2d, w2, b2_2d):
    """relu(x @ w1 + b1) @ w2 + b2 in one pallas_call with a K grid."""
    M, K = x.shape
    N1 = w1.shape[1]
    N2 = w2.shape[1]
    Mp = ((M + 7) // 8) * 8              # round to one sublane, not to 128
    if Mp != M:
        x = jnp.pad(x, ((0, Mp - M), (0, 0)))

    tk = _choose_k_tile(K)
    out = pl.pallas_call(
        _fc_fused_kernel,
        out_shape=jax.ShapeDtypeStruct((Mp, N2), jnp.float32),
        grid=(K // tk,),
        in_specs=[
            pl.BlockSpec((Mp, tk), lambda k: (0, k)),
            pl.BlockSpec((tk, N1), lambda k: (k, 0)),
            pl.BlockSpec((1, N1), lambda k: (0, 0)),
            pl.BlockSpec((N1, N2), lambda k: (0, 0)),
            pl.BlockSpec((1, N2), lambda k: (0, 0)),
        ],
        out_specs=pl.BlockSpec((Mp, N2), lambda k: (0, 0)),
        scratch_shapes=[pltpu.VMEM((Mp, N1), jnp.float32)],
        compiler_params=pltpu.CompilerParams(
            dimension_semantics=("arbitrary",)),
    )(x, w1, b1_2d, w2, b2_2d)
    return out[:M]


# --------------------------------------------------------------------------
# Glue: im2col with pooling-window row grouping
# --------------------------------------------------------------------------

def conv3d_relu_pool(x, w5, b2d, stride, padding, num_cores):
    """Conv3d + ReLU + MaxPool3d(2,2,2) on channels-last activations.

    x: (B, D, H, W, Cin) bf16; w5: (kD, kH, kW, Cin, Cout) bf16; b2d: (1, Cout) f32.
    Returns (B, Do//2, Ho//2, Wo//2, Cout) in bf16.
    """
    B, D, H, W, Cin = x.shape
    kD, kH, kW, _, Cout = w5.shape
    sd, sh, sw = stride
    pd, ph, pw = padding
    xp = jnp.pad(x, ((0, 0), (pd, pd), (ph, ph), (pw, pw), (0, 0)))
    Do = (D + 2 * pd - kD) // sd + 1
    Ho = (H + 2 * ph - kH) // sh + 1
    Wo = (W + 2 * pw - kW) // sw + 1
    Dp, Hp, Wp = Do // 2, Ho // 2, Wo // 2
    assert min(Dp, Hp, Wp) >= 1

    cols = []
    for kd in range(kD):
        for kh in range(kH):
            for kw_ in range(kW):
                cols.append(xp[:, kd:kd + Do * sd:sd,
                                  kh:kh + Ho * sh:sh,
                                  kw_:kw_ + Wo * sw:sw, :])
    # (B, Do, Ho, Wo, Ke, Cin): kernel-index major, Cin minor — matches the
    # (kD,kH,kW,Cin,Cout) -> (K, Cout) weight reshape below.
    patches = jnp.stack(cols, axis=-2)
    K = kD * kH * kW * Cin

    # Regroup rows so each 2x2x2 pooling window is 8 consecutive im2col rows
    # (floor semantics: odd trailing spatial elements dropped, as in
    # torch.nn.MaxPool3d(kernel=2, stride=2)).
    patches = patches[:, :2 * Dp, :2 * Hp, :2 * Wp]
    patches = patches.reshape(B, Dp, 2, Hp, 2, Wp, 2, K)
    patches = patches.transpose(0, 1, 3, 5, 2, 4, 6, 7)   # (B,Dp,Hp,Wp,2,2,2,K)
    x2 = patches.reshape(B * Dp * Hp * Wp * 8, K)

    w2 = w5.reshape(K, Cout)                               # free row-major reshape
    out = matmul_bias_relu_pool8(x2, w2, b2d, num_cores)
    return out.reshape(B, Dp, Hp, Wp, Cout)


# --------------------------------------------------------------------------
# Full forward pass
# --------------------------------------------------------------------------

def custom_resnet_video_forward(x, params, *, num_cores=1):
    """x: (B, T, C=3, H, W), mirroring the PyTorch forward's input.

    `params` must come from prepare_params (kernel layout: bf16 weights,
    channels-last fc1 row order, (1,N) f32 biases).
    """
    # PyTorch: permute(0,2,1,3,4) -> NCDHW.  We keep channels-last
    # (B, D=T, H, W, C) internally; fc1_w's rows were permuted at prepare
    # time so the final channels-last flatten matches PyTorch's NCDHW flatten.
    x = jnp.transpose(x.astype(jnp.bfloat16), (0, 1, 3, 4, 2))

    x = conv3d_relu_pool(x, params["conv1_w"], params["conv1_b"],
                         stride=(1, 2, 2), padding=(1, 1, 1),
                         num_cores=num_cores)
    x = conv3d_relu_pool(x, params["conv2_w"], params["conv2_b"],
                         stride=(1, 2, 2), padding=(1, 1, 1),
                         num_cores=num_cores)

    B = x.shape[0]
    x = x.reshape(B, -1)                  # channels-last flatten (no transpose)

    return fc1_fc2_fused(x, params["fc1_w"], params["fc1_b"],
                         params["fc2_w"], params["fc2_b"])


# --------------------------------------------------------------------------
# Parameter handling
# --------------------------------------------------------------------------

def _out_spatial(T, H, W):
    """Pooled spatial dims after each conv+pool stage (conv k=3, pad=1)."""
    def one(d, s):
        return ((d + 2 - 3) // s + 1) // 2
    s1 = (one(T, 1), one(H, 2), one(W, 2))
    s2 = (one(s1[0], 1), one(s1[1], 2), one(s1[2], 2))
    return s1, s2


def init_params_torch_layout(key, flat_dim):
    """Synthetic params in PyTorch layouts: conv (Cout,Cin,kD,kH,kW), fc (out,in)."""
    ks = jax.random.split(key, 8)

    def u(k, shape, fan_in):
        bound = 1.0 / jnp.sqrt(jnp.float32(fan_in))
        return jax.random.uniform(k, shape, jnp.float32, -bound, bound)

    return {
        "conv1_w": u(ks[0], (64, 3, 3, 3, 3), 3 * 27),
        "conv1_b": u(ks[1], (64,), 3 * 27),
        "conv2_w": u(ks[2], (128, 64, 3, 3, 3), 64 * 27),
        "conv2_b": u(ks[3], (128,), 64 * 27),
        "fc1_w": u(ks[4], (256, flat_dim), flat_dim),
        "fc1_b": u(ks[5], (256,), flat_dim),
        "fc2_w": u(ks[6], (128, 256), 256),
        "fc2_b": u(ks[7], (128,), 256),
    }


def prepare_params(tp, conv2_pooled_spatial):
    """One-time (outside jit) conversion of PyTorch-layout params to kernel layout."""
    D2, H2, W2 = conv2_pooled_spatial
    C2 = tp["conv2_w"].shape[0]          # 128

    def conv_w(w):                       # (Cout,Cin,kD,kH,kW) -> (kD,kH,kW,Cin,Cout)
        return jnp.transpose(w, (2, 3, 4, 1, 0)).astype(jnp.bfloat16)

    def bias(b):
        return b.reshape(1, -1).astype(jnp.float32)

    # fc1: (256, flat_dim) -> (flat_dim, 256); rows re-ordered from PyTorch's
    # NCDHW flatten (C,D,H,W) to our channels-last flatten (D,H,W,C).
    fc1_w = jnp.transpose(tp["fc1_w"], (1, 0))
    fc1_w = fc1_w.reshape(C2, D2, H2, W2, -1).transpose(1, 2, 3, 0, 4)
    fc1_w = fc1_w.reshape(C2 * D2 * H2 * W2, -1).astype(jnp.bfloat16)

    fc2_w = jnp.transpose(tp["fc2_w"], (1, 0)).astype(jnp.bfloat16)

    return {
        "conv1_w": conv_w(tp["conv1_w"]), "conv1_b": bias(tp["conv1_b"]),
        "conv2_w": conv_w(tp["conv2_w"]), "conv2_b": bias(tp["conv2_b"]),
        "fc1_w": fc1_w, "fc1_b": bias(tp["fc1_b"]),
        "fc2_w": fc2_w, "fc2_b": bias(tp["fc2_b"]),
    }


if __name__ == "__main__":
    key = jax.random.PRNGKey(0)
    kx, kp = jax.random.split(key)

    B, T, C, H, W = 2, 8, 3, 16, 16
    x = jax.random.normal(kx, (B, T, C, H, W), jnp.float32)

    _, (D2, H2, W2) = _out_spatial(T, H, W)
    flat_dim = 128 * D2 * H2 * W2        # = 256 at these shapes

    torch_params = init_params_torch_layout(kp, flat_dim)
    kparams = prepare_params(torch_params, (D2, H2, W2))   # once, outside jit

    fwd = jax.jit(functools.partial(custom_resnet_video_forward,
                                    num_cores=_num_megacore_tiles()))
    out = jax.block_until_ready(fwd(x, kparams))
    assert out.shape == (B, 128), out.shape
    assert bool(jnp.all(jnp.isfinite(out)))
    print("KERNEL_OK")
</pallas_src>

<mosaic_0001>
module attributes {stable_mosaic.version = 11 : i64} {
  func.func @_conv_relu_pool_kernel(%arg0: i32, %arg1: memref<1024x81xbf16, #tpu.memory_space<vmem>>, %arg2: memref<81x64xbf16, #tpu.memory_space<vmem>>, %arg3: memref<1x64xf32, #tpu.memory_space<vmem>>, %arg4: memref<128x64xbf16, #tpu.memory_space<vmem>>) attributes {dimension_semantics = [#tpu.dimension_semantics<parallel>], iteration_bounds = array<i64: 1>, scalar_prefetch = 0 : i64, scratch_operands = 0 : i64, tpu.core_type = #tpu.core_type<tc>, window_params = [{transform_indices = @transform_0, window_bounds = array<i64: 1024, 81>}, {pipeline_mode = #tpu.pipeline_mode<synchronous>, transform_indices = @transform_1, window_bounds = array<i64: 81, 64>}, {pipeline_mode = #tpu.pipeline_mode<synchronous>, transform_indices = @transform_2, window_bounds = array<i64: 1, 64>}, {transform_indices = @transform_3, window_bounds = array<i64: 128, 64>}]} {
    %c0 = arith.constant 0 : index
    %c0_0 = arith.constant 0 : index
    %0 = vector.load %arg1[%c0, %c0_0] : memref<1024x81xbf16, #tpu.memory_space<vmem>>, vector<1024x81xbf16>
    %c0_1 = arith.constant 0 : index
    %c0_2 = arith.constant 0 : index
    %1 = vector.load %arg2[%c0_1, %c0_2] : memref<81x64xbf16, #tpu.memory_space<vmem>>, vector<81x64xbf16>
    %cst = arith.constant dense<0.000000e+00> : vector<1024x64xf32>
    %2 = tpu.matmul %0, %1, %cst {dimension_numbers = #tpu.dot_dimension_numbers<[1], [0], [0], [1], [0, 0, 1, 1], [], []>} : vector<1024x81xbf16>, vector<81x64xbf16>, vector<1024x64xf32> -> vector<1024x64xf32>
    %c0_3 = arith.constant 0 : index
    %c0_4 = arith.constant 0 : index
    %3 = vector.load %arg3[%c0_3, %c0_4] : memref<1x64xf32, #tpu.memory_space<vmem>>, vector<1x64xf32>
    %4 = vector.broadcast %3 : vector<1x64xf32> to vector<1024x64xf32>
    %5 = arith.addf %2, %4 : vector<1024x64xf32>
    %cst_5 = arith.constant 0.000000e+00 : f32
    %6 = vector.broadcast %cst_5 : f32 to vector<1024x64xf32>
    %7 = arith.maximumf %5, %6 : vector<1024x64xf32>
    %8 = vector.shape_cast %7 : vector<1024x64xf32> to vector<128x8x64xf32>
    %cst_6 = arith.constant dense<0xFF800000> : vector<128x64xf32>
    %9 = vector.multi_reduction <maximumf>, %8, %cst_6 [1] : vector<128x8x64xf32> to vector<128x64xf32>
    %10 = arith.truncf %9 : vector<128x64xf32> to vector<128x64xbf16>
    %c0_7 = arith.constant 0 : index
    %c0_8 = arith.constant 0 : index
    %11 = vector.load %arg4[%c0_7, %c0_8] : memref<128x64xbf16, #tpu.memory_space<vmem>>, vector<128x64xbf16>
    tpu.vector_store %arg4[%c0_7, %c0_8], %10 {strides = array<i32>} : memref<128x64xbf16, #tpu.memory_space<vmem>>, vector<128x64xbf16>,
    return
  }
  func.func @transform_0(%arg0: i32) -> (i32, i32) {
    %c0_i32 = arith.constant 0 : i32
    %c0_i32_0 = arith.constant 0 : i32
    return %arg0, %c0_i32 : i32, i32
  }
  func.func @transform_1(%arg0: i32) -> (i32, i32) {
    %c0_i32 = arith.constant 0 : i32
    %c0_i32_0 = arith.constant 0 : i32
    %c0_i32_1 = arith.constant 0 : i32
    return %c0_i32, %c0_i32_0 : i32, i32
  }
  func.func @transform_2(%arg0: i32) -> (i32, i32) {
    %c0_i32 = arith.constant 0 : i32
    %c0_i32_0 = arith.constant 0 : i32
    %c0_i32_1 = arith.constant 0 : i32
    return %c0_i32, %c0_i32_0 : i32, i32
  }
  func.func @transform_3(%arg0: i32) -> (i32, i32) {
    %c0_i32 = arith.constant 0 : i32
    %c0_i32_0 = arith.constant 0 : i32
    return %arg0, %c0_i32 : i32, i32
  }
}

module attributes {stable_mosaic.version = 11 : i64} {
  func.func @_conv_relu_pool_kernel(%arg0: i32, %arg1: memref<32x1728xbf16, #tpu.memory_space<vmem>>, %arg2: memref<1728x128xbf16, #tpu.memory_space<vmem>>, %arg3: memref<1x128xf32, #tpu.memory_space<vmem>>, %arg4: memref<4x128xbf16, #tpu.memory_space<vmem>>) attributes {dimension_semantics = [#tpu.dimension_semantics<parallel>], iteration_bounds = array<i64: 1>, scalar_prefetch = 0 : i64, scratch_operands = 0 : i64, tpu.core_type = #tpu.core_type<tc>, window_params = [{transform_indices = @transform_0, window_bounds = array<i64: 32, 1728>}, {pipeline_mode = #tpu.pipeline_mode<synchronous>, transform_indices = @transform_1, window_bounds = array<i64: 1728, 128>}, {pipeline_mode = #tpu.pipeline_mode<synchronous>, transform_indices = @transform_2, window_bounds = array<i64: 1, 128>}, {transform_indices = @transform_3, window_bounds = array<i64: 4, 128>}]} {
    %c0 = arith.constant 0 : index
    %c0_0 = arith.constant 0 : index
    %0 = vector.load %arg1[%c0, %c0_0] : memref<32x1728xbf16, #tpu.memory_space<vmem>>, vector<32x1728xbf16>
    %c0_1 = arith.constant 0 : index
    %c0_2 = arith.constant 0 : index
    %1 = vector.load %arg2[%c0_1, %c0_2] : memref<1728x128xbf16, #tpu.memory_space<vmem>>, vector<1728x128xbf16>
    %cst = arith.constant dense<0.000000e+00> : vector<32x128xf32>
    %2 = tpu.matmul %0, %1, %cst {dimension_numbers = #tpu.dot_dimension_numbers<[1], [0], [0], [1], [0, 0, 1, 1], [], []>} : vector<32x1728xbf16>, vector<1728x128xbf16>, vector<32x128xf32> -> vector<32x128xf32>
    %c0_3 = arith.constant 0 : index
    %c0_4 = arith.constant 0 : index
    %3 = vector.load %arg3[%c0_3, %c0_4] : memref<1x128xf32, #tpu.memory_space<vmem>>, vector<1x128xf32>
    %4 = vector.broadcast %3 : vector<1x128xf32> to vector<32x128xf32>
    %5 = arith.addf %2, %4 : vector<32x128xf32>
    %cst_5 = arith.constant 0.000000e+00 : f32
    %6 = vector.broadcast %cst_5 : f32 to vector<32x128xf32>
    %7 = arith.maximumf %5, %6 : vector<32x128xf32>
    %8 = vector.shape_cast %7 : vector<32x128xf32> to vector<4x8x128xf32>
    %cst_6 = arith.constant dense<0xFF800000> : vector<4x128xf32>
    %9 = vector.multi_reduction <maximumf>, %8, %cst_6 [1] : vector<4x8x128xf32> to vector<4x128xf32>
    %10 = arith.truncf %9 : vector<4x128xf32> to vector<4x128xbf16>
    %c0_7 = arith.constant 0 : index
    %c0_8 = arith.constant 0 : index
    %11 = vector.load %arg4[%c0_7, %c0_8] : memref<4x128xbf16, #tpu.memory_space<vmem>>, vector<4x128xbf16>
    tpu.vector_store %arg4[%c0_7, %c0_8], %10 {strides = array<i32>} : memref<4x128xbf16, #tpu.memory_space<vmem>>, vector<4x128xbf16>,
    return
  }
  func.func @transform_0(%arg0: i32) -> (i32, i32) {
    %c0_i32 = arith.constant 0 : i32
    %c0_i32_0 = arith.constant 0 : i32
    return %arg0, %c0_i32 : i32, i32
  }
  func.func @transform_1(%arg0: i32) -> (i32, i32) {
    %c0_i32 = arith.constant 0 : i32
    %c0_i32_0 = arith.constant 0 : i32
    %c0_i32_1 = arith.constant 0 : i32
    return %c0_i32, %c0_i32_0 : i32, i32
  }
  func.func @transform_2(%arg0: i32) -> (i32, i32) {
    %c0_i32 = arith.constant 0 : i32
    %c0_i32_0 = arith.constant 0 : i32
    %c0_i32_1 = arith.constant 0 : i32
    return %c0_i32, %c0_i32_0 : i32, i32
  }
  func.func @transform_3(%arg0: i32) -> (i32, i32) {
    %c0_i32 = arith.constant 0 : i32
    %c0_i32_0 = arith.constant 0 : i32
    return %arg0, %c0_i32 : i32, i32
  }
}

module attributes {stable_mosaic.version = 11 : i64} {
  func.func @_fc_fused_kernel(%arg0: i32, %arg1: memref<8x256xbf16, #tpu.memory_space<vmem>>, %arg2: memref<256x256xbf16, #tpu.memory_space<vmem>>, %arg3: memref<1x256xf32, #tpu.memory_space<vmem>>, %arg4: memref<256x128xbf16, #tpu.memory_space<vmem>>, %arg5: memref<1x128xf32, #tpu.memory_space<vmem>>, %arg6: memref<8x128xf32, #tpu.memory_space<vmem>>, %arg7: memref<8x256xf32, #tpu.memory_space<vmem>>) attributes {dimension_semantics = [#tpu.dimension_semantics<arbitrary>], iteration_bounds = array<i64: 1>, scalar_prefetch = 0 : i64, scratch_operands = 1 : i64, tpu.core_type = #tpu.core_type<tc>, window_params = [{transform_indices = @transform_0, window_bounds = array<i64: 8, 256>}, {transform_indices = @transform_1, window_bounds = array<i64: 256, 256>}, {pipeline_mode = #tpu.pipeline_mode<synchronous>, transform_indices = @transform_2, window_bounds = array<i64: 1, 256>}, {pipeline_mode = #tpu.pipeline_mode<synchronous>, transform_indices = @transform_3, window_bounds = array<i64: 256, 128>}, {pipeline_mode = #tpu.pipeline_mode<synchronous>, transform_indices = @transform_4, window_bounds = array<i64: 1, 128>}, {pipeline_mode = #tpu.pipeline_mode<synchronous>, transform_indices = @transform_5, window_bounds = array<i64: 8, 128>}]} {
    %c0_i32 = arith.constant 0 : i32
    %0 = arith.cmpi eq, %arg0, %c0_i32 : i32
    %1 = arith.extui %0 : i1 to i32
    %c0_i32_0 = arith.constant 0 : i32
    %2 = arith.cmpi ne, %1, %c0_i32_0 : i32
    scf.if %2 {
      %cst_10 = arith.constant 0.000000e+00 : f32
      %12 = vector.broadcast %cst_10 : f32 to vector<8x256xf32>
      %c0_11 = arith.constant 0 : index
      %c0_12 = arith.constant 0 : index
      %13 = vector.load %arg7[%c0_11, %c0_12] : memref<8x256xf32, #tpu.memory_space<vmem>>, vector<8x256xf32>
      tpu.vector_store %arg7[%c0_11, %c0_12], %12 {strides = array<i32>} : memref<8x256xf32, #tpu.memory_space<vmem>>, vector<8x256xf32>,
    } else {
    }
    %c0 = arith.constant 0 : index
    %c0_1 = arith.constant 0 : index
    %3 = vector.load %arg7[%c0, %c0_1] : memref<8x256xf32, #tpu.memory_space<vmem>>, vector<8x256xf32>
    %c0_2 = arith.constant 0 : index
    %c0_3 = arith.constant 0 : index
    %4 = vector.load %arg1[%c0_2, %c0_3] : memref<8x256xbf16, #tpu.memory_space<vmem>>, vector<8x256xbf16>
    %c0_4 = arith.constant 0 : index
    %c0_5 = arith.constant 0 : index
    %5 = vector.load %arg2[%c0_4, %c0_5] : memref<256x256xbf16, #tpu.memory_space<vmem>>, vector<256x256xbf16>
    %cst = arith.constant dense<0.000000e+00> : vector<8x256xf32>
    %6 = tpu.matmul %4, %5, %cst {dimension_numbers = #tpu.dot_dimension_numbers<[1], [0], [0], [1], [0, 0, 1, 1], [], []>} : vector<8x256xbf16>, vector<256x256xbf16>, vector<8x256xf32> -> vector<8x256xf32>
    %7 = arith.addf %3, %6 : vector<8x256xf32>
    %c0_6 = arith.constant 0 : index
    %c0_7 = arith.constant 0 : index
    %8 = vector.load %arg7[%c0_6, %c0_7] : memref<8x256xf32, #tpu.memory_space<vmem>>, vector<8x256xf32>
    tpu.vector_store %arg7[%c0_6, %c0_7], %7 {strides = array<i32>} : memref<8x256xf32, #tpu.memory_space<vmem>>, vector<8x256xf32>,
    %c0_i32_8 = arith.constant 0 : i32
    %9 = arith.cmpi eq, %arg0, %c0_i32_8 : i32
    %10 = arith.extui %9 : i1 to i32
    %c0_i32_9 = arith.constant 0 : i32
    %11 = arith.cmpi ne, %10, %c0_i32_9 : i32
    scf.if %11 {
      %c0_10 = arith.constant 0 : index
      %c0_11 = arith.constant 0 : index
      %12 = vector.load %arg7[%c0_10, %c0_11] : memref<8x256xf32, #tpu.memory_space<vmem>>, vector<8x256xf32>
      %c0_12 = arith.constant 0 : index
      %c0_13 = arith.constant 0 : index
      %13 = vector.load %arg3[%c0_12, %c0_13] : memref<1x256xf32, #tpu.memory_space<vmem>>, vector<1x256xf32>
      %14 = vector.broadcast %13 : vector<1x256xf32> to vector<8x256xf32>
      %15 = arith.addf %12, %14 : vector<8x256xf32>
      %cst_14 = arith.constant 0.000000e+00 : f32
      %16 = vector.broadcast %cst_14 : f32 to vector<8x256xf32>
      %17 = arith.maximumf %15, %16 : vector<8x256xf32>
      %18 = arith.truncf %17 : vector<8x256xf32> to vector<8x256xbf16>
      %c0_15 = arith.constant 0 : index
      %c0_16 = arith.constant 0 : index
      %19 = vector.load %arg4[%c0_15, %c0_16] : memref<256x128xbf16, #tpu.memory_space<vmem>>, vector<256x128xbf16>
      %cst_17 = arith.constant dense<0.000000e+00> : vector<8x128xf32>
      %20 = tpu.matmul %18, %19, %cst_17 {dimension_numbers = #tpu.dot_dimension_numbers<[1], [0], [0], [1], [0, 0, 1, 1], [], []>} : vector<8x256xbf16>, vector<256x128xbf16>, vector<8x128xf32> -> vector<8x128xf32>
      %c0_18 = arith.constant 0 : index
      %c0_19 = arith.constant 0 : index
      %21 = vector.load %arg5[%c0_18, %c0_19] : memref<1x128xf32, #tpu.memory_space<vmem>>, vector<1x128xf32>
      %22 = vector.broadcast %21 : vector<1x128xf32> to vector<8x128xf32>
      %23 = arith.addf %20, %22 : vector<8x128xf32>
      %c0_20 = arith.constant 0 : index
      %c0_21 = arith.constant 0 : index
      %24 = vector.load %arg6[%c0_20, %c0_21] : memref<8x128xf32, #tpu.memory_space<vmem>>, vector<8x128xf32>
      tpu.vector_store %arg6[%c0_20, %c0_21], %23 {strides = array<i32>} : memref<8x128xf32, #tpu.memory_space<vmem>>, vector<8x128xf32>,
    } else {
    }
    return
  }
  func.func @transform_0(%arg0: i32) -> (i32, i32) {
    %c0_i32 = arith.constant 0 : i32
    %c0_i32_0 = arith.constant 0 : i32
    return %c0_i32, %arg0 : i32, i32
  }
  func.func @transform_1(%arg0: i32) -> (i32, i32) {
    %c0_i32 = arith.constant 0 : i32
    %c0_i32_0 = arith.constant 0 : i32
    return %arg0, %c0_i32 : i32, i32
  }
  func.func @transform_2(%arg0: i32) -> (i32, i32) {
    %c0_i32 = arith.constant 0 : i32
    %c0_i32_0 = arith.constant 0 : i32
    %c0_i32_1 = arith.constant 0 : i32
    return %c0_i32, %c0_i32_0 : i32, i32
  }
  func.func @transform_3(%arg0: i32) -> (i32, i32) {
    %c0_i32 = arith.constant 0 : i32
    %c0_i32_0 = arith.constant 0 : i32
    %c0_i32_1 = arith.constant 0 : i32
    return %c0_i32, %c0_i32_0 : i32, i32
  }
  func.func @transform_4(%arg0: i32) -> (i32, i32) {
    %c0_i32 = arith.constant 0 : i32
    %c0_i32_0 = arith.constant 0 : i32
    %c0_i32_1 = arith.constant 0 : i32
    return %c0_i32, %c0_i32_0 : i32, i32
  }
  func.func @transform_5(%arg0: i32) -> (i32, i32) {
    %c0_i32 = arith.constant 0 : i32
    %c0_i32_0 = arith.constant 0 : i32
    %c0_i32_1 = arith.constant 0 : i32
    return %c0_i32, %c0_i32_0 : i32, i32
  }
}

</mosaic_0001>

<llo_original>
// kernel: custom_resnet_video_forward.3
$region0: #{custom_resnet_video_forward.3}
  #allocation0 [shape = 'u32[]', space=smem, size = 0x4, offset = 0x4, fixed_abs, tag = 'smem constant byte address 0x4 - core index']
  #allocation1 [shape = 'u32[144,128]{1,0:T(1,128)}', space=vmem, size = 0x12000, scoped, tag = 'internal scratch']
  %s0 = inlined_call_operand.vmem [shape: bf16[1024,81], index: 0, kind: input, shape index: {}]
  %s1 = inlined_call_operand.vmem [shape: bf16[81,64], index: 1, kind: input, shape index: {}]
  %s2 = inlined_call_operand.vmem [shape: f32[1,64], index: 2, kind: input, shape index: {}]
  %s3 = inlined_call_operand.vmem [shape: bf16[128,64], index: 3, kind: output, shape index: {}]
  %s4 = sld [smem:[#allocation0]]
  $region22: #{custom_resnet_video_forward.3} parent=0
    _
  %s6 = ssub.s32 1, %s4
  %s7 = scalar_select 0, %s6, %s4
  // Predicated region
  $region2: #{custom_resnet_video_forward.3} parent=0 // pred_check
    _
  $region3: #{custom_resnet_video_forward.3} parent=0 // pred_check_branch
    %9 = sbr.rel (0) target = $region5
  $region4: #{custom_resnet_video_forward.3} parent=0 // pred_region
    _
  $region5: #{custom_resnet_video_forward.3} parent=0 // pred_fallthru
    _
  // Predicated region
  $region6: #{custom_resnet_video_forward.3} parent=0 // pred_check
    _
  $region7: #{custom_resnet_video_forward.3} parent=0 // pred_check_branch
    %11 = sbr.rel (0) target = $region9
  $region8: #{custom_resnet_video_forward.3} parent=0 // pred_region
    _
  $region9: #{custom_resnet_video_forward.3} parent=0 // pred_fallthru
    _
  // Predicated region
  $region10: #{custom_resnet_video_forward.3} parent=0 // pred_check
    _
  $region11: #{custom_resnet_video_forward.3} parent=0 // pred_check_branch
    %13 = sbr.rel (0) target = $region13
  $region12: #{custom_resnet_video_forward.3} parent=0 // pred_region
    _
  $region13: #{custom_resnet_video_forward.3} parent=0 // pred_fallthru
    _
  %v15 = vld [vmem:[%s0] sm:$0xf]
  %v16 = vld [vmem:[%s0 + $0x4] sm:$0xf]
  %v17 = vld [vmem:[%s0 + $0x8] sm:$0xf]
  %v18 = vld [vmem:[%s0 + $0xc] sm:$0xf]
  %v19 = vld [vmem:[%s0 + $0x10] sm:$0xf]
  %v20 = vld [vmem:[%s0 + $0x14] sm:$0xf]
  %v21 = vld [vmem:[%s0 + $0x18] sm:$0xf]
  %v22 = vld [vmem:[%s0 + $0x1c] sm:$0xf]
  %v23 = vld [vmem:[%s0 + $0x20] sm:$0xf]
  %v24 = vld [vmem:[%s0 + $0x24] sm:$0xf]
  %v25 = vld [vmem:[%s0 + $0x28] sm:$0xf]
  %v26 = vld [vmem:[%s0 + $0x2c] sm:$0xf]
  %v27 = vld [vmem:[%s0 + $0x30] sm:$0xf]
  %v28 = vld [vmem:[%s0 + $0x34] sm:$0xf]
  %v29 = vld [vmem:[%s0 + $0x38] sm:$0xf]
  %v30 = vld [vmem:[%s0 + $0x3c] sm:$0xf]
  %v31 = vld [vmem:[%s0 + $0x40] sm:$0xf]
  %v32 = vld [vmem:[%s0 + $0x44] sm:$0xf]
  %v33 = vld [vmem:[%s0 + $0x48] sm:$0xf]
  %v34 = vld [vmem:[%s0 + $0x4c] sm:$0xf]
  %v35 = vld [vmem:[%s0 + $0x50] sm:$0xf]
  %v36 = vld [vmem:[%s0 + $0x54] sm:$0xf]
  %v37 = vld [vmem:[%s0 + $0x58] sm:$0xf]
  %v38 = vld [vmem:[%s0 + $0x5c] sm:$0xf]
  %v39 = vld [vmem:[%s0 + $0x60] sm:$0xf]
  %v40 = vld [vmem:[%s0 + $0x64] sm:$0xf]
  %v41 = vld [vmem:[%s0 + $0x68] sm:$0xf]
  %v42 = vld [vmem:[%s0 + $0x6c] sm:$0xf]
  %v43 = vld [vmem:[%s0 + $0x70] sm:$0xf]
  %v44 = vld [vmem:[%s0 + $0x74] sm:$0xf]
  %v45 = vld [vmem:[%s0 + $0x78] sm:$0xf]
  %v46 = vld [vmem:[%s0 + $0x7c] sm:$0xf]
  %v47 = vld [vmem:[%s0 + $0x80] sm:$0xf]
  %v48 = vld [vmem:[%s0 + $0x84] sm:$0xf]
  %v49 = vld [vmem:[%s0 + $0x88] sm:$0xf]
  %v50 = vld [vmem:[%s0 + $0x8c] sm:$0xf]
  %v51 = vld [vmem:[%s0 + $0x90] sm:$0xf]
  %v52 = vld [vmem:[%s0 + $0x94] sm:$0xf]
  %v53 = vld [vmem:[%s0 + $0x98] sm:$0xf]
  %v54 = vld [vmem:[%s0 + $0x9c] sm:$0xf]
  %v55 = vld [vmem:[%s0 + $0xa0] sm:$0xf]
  %v56 = vld [vmem:[%s0 + $0xa4] sm:$0xf]
  %v57 = vld [vmem:[%s0 + $0xa8] sm:$0xf]
  %v58 = vld [vmem:[%s0 + $0xac] sm:$0xf]
  %v59 = vld [vmem:[%s0 + $0xb0] sm:$0xf]
  %v60 = vld [vmem:[%s0 + $0xb4] sm:$0xf]
  %v61 = vld [vmem:[%s0 + $0xb8] sm:$0xf]
  %v62 = vld [vmem:[%s0 + $0xbc] sm:$0xf]
  %v63 = vld [vmem:[%s0 + $0xc0] sm:$0xf]
  %v64 = vld [vmem:[%s0 + $0xc4] sm:$0xf]
  %v65 = vld [vmem:[%s0 + $0xc8] sm:$0xf]
  %v66 = vld [vmem:[%s0 + $0xcc] sm:$0xf]
  %v67 = vld [vmem:[%s0 + $0xd0] sm:$0xf]
  %v68 = vld [vmem:[%s0 + $0xd4] sm:$0xf]
  %v69 = vld [vmem:[%s0 + $0xd8] sm:$0xf]
  %v70 = vld [vmem:[%s0 + $0xdc] sm:$0xf]
  %v71 = vld [vmem:[%s0 + $0xe0] sm:$0xf]
  %v72 = vld [vmem:[%s0 + $0xe4] sm:$0xf]
  %v73 = vld [vmem:[%s0 + $0xe8] sm:$0xf]
  %v74 = vld [vmem:[%s0 + $0xec] sm:$0xf]
  %v75 = vld [vmem:[%s0 + $0xf0] sm:$0xf]
  %v76 = vld [vmem:[%s0 + $0xf4] sm:$0xf]
  %v77 = vld [vmem:[%s0 + $0xf8] sm:$0xf]
  %v78 = vld [vmem:[%s0 + $0xfc] sm:$0xf]
  %v79 = vld [vmem:[%s0 + $0x100] sm:$0xf]
  %v80 = vld [vmem:[%s0 + $0x104] sm:$0xf]
  %v81 = vld [vmem:[%s0 + $0x108] sm:$0xf]
  %v82 = vld [vmem:[%s0 + $0x10c] sm:$0xf]
  %v83 = vld [vmem:[%s0 + $0x110] sm:$0xf]
  %v84 = vld [vmem:[%s0 + $0x114] sm:$0xf]
  %v85 = vld [vmem:[%s0 + $0x118] sm:$0xf]
  %v86 = vld [vmem:[%s0 + $0x11c] sm:$0xf]
  %v87 = vld [vmem:[%s0 + $0x120] sm:$0xf]
  %v88 = vld [vmem:[%s0 + $0x124] sm:$0xf]
  %v89 = vld [vmem:[%s0 + $0x128] sm:$0xf]
  %v90 = vld [vmem:[%s0 + $0x12c] sm:$0xf]
  %v91 = vld [vmem:[%s0 + $0x130] sm:$0xf]
  %v92 = vld [vmem:[%s0 + $0x134] sm:$0xf]
  %v93 = vld [vmem:[%s0 + $0x138] sm:$0xf]
  %v94 = vld [vmem:[%s0 + $0x13c] sm:$0xf]
  %v95 = vld [vmem:[%s0 + $0x140] sm:$0xf]
  %v96 = vld [vmem:[%s0 + $0x144] sm:$0xf]
  %v97 = vld [vmem:[%s0 + $0x148] sm:$0xf]
  %v98 = vld [vmem:[%s0 + $0x14c] sm:$0xf]
  %v99 = vld [vmem:[%s0 + $0x150] sm:$0xf]
  %v100 = vld [vmem:[%s0 + $0x154] sm:$0xf]
  %v101 = vld [vmem:[%s0 + $0x158] sm:$0xf]
  %v102 = vld [vmem:[%s0 + $0x15c] sm:$0xf]
  %v103 = vld [vmem:[%s0 + $0x160] sm:$0xf]
  %v104 = vld [vmem:[%s0 + $0x164] sm:$0xf]
  %v105 = vld [vmem:[%s0 + $0x168] sm:$0xf]
  %v106 = vld [vmem:[%s0 + $0x16c] sm:$0xf]
  %v107 = vld [vmem:[%s0 + $0x170] sm:$0xf]
  %v108 = vld [vmem:[%s0 + $0x174] sm:$0xf]
  %v109 = vld [vmem:[%s0 + $0x178] sm:$0xf]
  %v110 = vld [vmem:[%s0 + $0x17c] sm:$0xf]
  %v111 = vld [vmem:[%s0 + $0x180] sm:$0xf]
  %v112 = vld [vmem:[%s0 + $0x184] sm:$0xf]
  %v113 = vld [vmem:[%s0 + $0x188] sm:$0xf]
  %v114 = vld [vmem:[%s0 + $0x18c] sm:$0xf]
  %v115 = vld [vmem:[%s0 + $0x190] sm:$0xf]
  %v116 = vld [vmem:[%s0 + $0x194] sm:$0xf]
  %v117 = vld [vmem:[%s0 + $0x198] sm:$0xf]
  %v118 = vld [vmem:[%s0 + $0x19c] sm:$0xf]
  %v119 = vld [vmem:[%s0 + $0x1a0] sm:$0xf]
  %v120 = vld [vmem:[%s0 + $0x1a4] sm:$0xf]
  %v121 = vld [vmem:[%s0 + $0x1a8] sm:$0xf]
  %v122 = vld [vmem:[%s0 + $0x1ac] sm:$0xf]
  %v123 = vld [vmem:[%s0 + $0x1b0] sm:$0xf]
  %v124 = vld [vmem:[%s0 + $0x1b4] sm:$0xf]
  %v125 = vld [vmem:[%s0 + $0x1b8] sm:$0xf]
  %v126 = vld [vmem:[%s0 + $0x1bc] sm:$0xf]
  %v127 = vld [vmem:[%s0 + $0x1c0] sm:$0xf]
  %v128 = vld [vmem:[%s0 + $0x1c4] sm:$0xf]
  %v129 = vld [vmem:[%s0 + $0x1c8] sm:$0xf]
  %v130 = vld [vmem:[%s0 + $0x1cc] sm:$0xf]
  %v131 = vld [vmem:[%s0 + $0x1d0] sm:$0xf]
  %v132 = vld [vmem:[%s0 + $0x1d4] sm:$0xf]
  %v133 = vld [vmem:[%s0 + $0x1d8] sm:$0xf]
  %v134 = vld [vmem:[%s0 + $0x1dc] sm:$0xf]
  %v135 = vld [vmem:[%s0 + $0x1e0] sm:$0xf]
  %v136 = vld [vmem:[%s0 + $0x1e4] sm:$0xf]
  %v137 = vld [vmem:[%s0 + $0x1e8] sm:$0xf]
  %v138 = vld [vmem:[%s0 + $0x1ec] sm:$0xf]
  %v139 = vld [vmem:[%s0 + $0x1f0] sm:$0xf]
  %v140 = vld [vmem:[%s0 + $0x1f4] sm:$0xf]
  %v141 = vld [vmem:[%s0 + $0x1f8] sm:$0xf]
  %v142 = vld [vmem:[%s0 + $0x1fc] sm:$0xf]
  %v143 = vld [vmem:[%s1] sm:$0xf]
  %v144 = vld [vmem:[%s1 + $0x4] sm:$0xf]
  %v145 = vld [vmem:[%s1 + $0x8] sm:$0xf]
  %v146 = vld [vmem:[%s1 + $0xc] sm:$0xf]
  %v147 = vld [vmem:[%s1 + $0x10] sm:$0xf]
  %v148 = vld [vmem:[%s1 + $0x14] sm:$0xf]
  %v149 = vld [vmem:[%s1 + $0x18] sm:$0xf]
  %v150 = vld [vmem:[%s1 + $0x1c] sm:$0xf]
  %v151 = vld [vmem:[%s1 + $0x20] sm:$0xf]
  %v152 = vld [vmem:[%s1 + $0x24] sm:$0xf]
  %v153 = vld [vmem:[%s1 + $0x28] sm:$0x1]
  %v154 = vld [vmem:[%s2] sm:$0x1]
  %v156 = vlaneseq
  %v157 = vshrl.u32 %v156, 7
  %v158 = vsub.s32 0, %v157
  %v159 = vrot.slane %v154, %v158
  %v289 = vunpack.c.l.b16 %v15
  %v290 = vunpack.c.l.b16 %v16
  %v291 = vunpack.c.l.b16 %v17
  %v292 = vunpack.c.l.b16 %v18
  %v293 = vunpack.c.l.b16 %v19
  %v294 = vunpack.c.l.b16 %v20
  %v295 = vunpack.c.l.b16 %v21
  %v296 = vunpack.c.l.b16 %v22
  %v297 = vunpack.c.l.b16 %v23
  %v298 = vunpack.c.l.b16 %v24
  %v299 = vunpack.c.l.b16 %v25
  %v300 = vunpack.c.l.b16 %v26
  %v301 = vunpack.c.l.b16 %v27
  %v302 = vunpack.c.l.b16 %v28
  %v303 = vunpack.c.l.b16 %v29
  %v304 = vunpack.c.l.b16 %v30
  %v305 = vunpack.c.l.b16 %v31
  %v306 = vunpack.c.l.b16 %v32
  %v307 = vunpack.c.l.b16 %v33
  %v308 = vunpack.c.l.b16 %v34
  %v309 = vunpack.c.l.b16 %v35
  %v310 = vunpack.c.l.b16 %v36
  %v311 = vunpack.c.l.b16 %v37
  %v312 = vunpack.c.l.b16 %v38
  %v313 = vunpack.c.l.b16 %v39
  %v314 = vunpack.c.l.b16 %v40
  %v315 = vunpack.c.l.b16 %v41
  %v316 = vunpack.c.l.b16 %v42
  %v317 = vunpack.c.l.b16 %v43
  %v318 = vunpack.c.l.b16 %v44
  %v319 = vunpack.c.l.b16 %v45
  %v320 = vunpack.c.l.b16 %v46
  %v321 = vunpack.c.l.b16 %v47
  %v322 = vunpack.c.l.b16 %v48
  %v323 = vunpack.c.l.b16 %v49
  %v324 = vunpack.c.l.b16 %v50
  %v325 = vunpack.c.l.b16 %v51
  %v326 = vunpack.c.l.b16 %v52
  %v327 = vunpack.c.l.b16 %v53
  %v328 = vunpack.c.l.b16 %v54
  %v329 = vunpack.c.l.b16 %v55
  %v330 = vunpack.c.l.b16 %v56
  %v331 = vunpack.c.l.b16 %v57
  %v332 = vunpack.c.l.b16 %v58
  %v333 = vunpack.c.l.b16 %v59
  %v334 = vunpack.c.l.b16 %v60
  %v335 = vunpack.c.l.b16 %v61
  %v336 = vunpack.c.l.b16 %v62
  %v337 = vunpack.c.l.b16 %v63
  %v338 = vunpack.c.l.b16 %v64
  %v339 = vunpack.c.l.b16 %v65
  %v340 = vunpack.c.l.b16 %v66
  %v341 = vunpack.c.l.b16 %v67
  %v342 = vunpack.c.l.b16 %v68
  %v343 = vunpack.c.l.b16 %v69
  %v344 = vunpack.c.l.b16 %v70
  %v345 = vunpack.c.l.b16 %v71
  %v346 = vunpack.c.l.b16 %v72
  %v347 = vunpack.c.l.b16 %v73
  %v348 = vunpack.c.l.b16 %v74
  %v349 = vunpack.c.l.b16 %v75
  %v350 = vunpack.c.l.b16 %v76
  %v351 = vunpack.c.l.b16 %v77
  %v352 = vunpack.c.l.b16 %v78
  %v353 = vunpack.c.l.b16 %v79
  %v354 = vunpack.c.l.b16 %v80
  %v355 = vunpack.c.l.b16 %v81
  %v356 = vunpack.c.l.b16 %v82
  %v357 = vunpack.c.l.b16 %v83
  %v358 = vunpack.c.l.b16 %v84
  %v359 = vunpack.c.l.b16 %v85
  %v360 = vunpack.c.l.b16 %v86
  %v361 = vunpack.c.l.b16 %v87
  %v362 = vunpack.c.l.b16 %v88
  %v363 = vunpack.c.l.b16 %v89
  %v364 = vunpack.c.l.b16 %v90
  %v365 = vunpack.c.l.b16 %v91
  %v366 = vunpack.c.l.b16 %v92
  %v367 = vunpack.c.l.b16 %v93
  %v368 = vunpack.c.l.b16 %v94
  %v369 = vunpack.c.l.b16 %v95
  %v370 = vunpack.c.l.b16 %v96
  %v371 = vunpack.c.l.b16 %v97
  %v372 = vunpack.c.l.b16 %v98
  %v373 = vunpack.c.l.b16 %v99
  %v374 = vunpack.c.l.b16 %v100
  %v375 = vunpack.c.l.b16 %v101
  %v376 = vunpack.c.l.b16 %v102
  %v377 = vunpack.c.l.b16 %v103
  %v378 = vunpack.c.l.b16 %v104
  %v379 = vunpack.c.l.b16 %v105
  %v380 = vunpack.c.l.b16 %v106
  %v381 = vunpack.c.l.b16 %v107
  %v382 = vunpack.c.l.b16 %v108
  %v383 = vunpack.c.l.b16 %v109
  %v384 = vunpack.c.l.b16 %v110
  %v385 = vunpack.c.l.b16 %v111
  %v386 = vunpack.c.l.b16 %v112
  %v387 = vunpack.c.l.b16 %v113
  %v388 = vunpack.c.l.b16 %v114
  %v389 = vunpack.c.l.b16 %v115
  %v390 = vunpack.c.l.b16 %v116
  %v391 = vunpack.c.l.b16 %v117
  %v392 = vunpack.c.l.b16 %v118
  %v393 = vunpack.c.l.b16 %v119
  %v394 = vunpack.c.l.b16 %v120
  %v395 = vunpack.c.l.b16 %v121
  %v396 = vunpack.c.l.b16 %v122
  %v397 = vunpack.c.l.b16 %v123
  %v398 = vunpack.c.l.b16 %v124
  %v399 = vunpack.c.l.b16 %v125
  %v400 = vunpack.c.l.b16 %v126
  %v401 = vunpack.c.l.b16 %v127
  %v402 = vunpack.c.l.b16 %v128
  %v403 = vunpack.c.l.b16 %v129
  %v404 = vunpack.c.l.b16 %v130
  %v405 = vunpack.c.l.b16 %v131
  %v406 = vunpack.c.l.b16 %v132
  %v407 = vunpack.c.l.b16 %v133
  %v408 = vunpack.c.l.b16 %v134
  %v409 = vunpack.c.l.b16 %v135
  %v410 = vunpack.c.l.b16 %v136
  %v411 = vunpack.c.l.b16 %v137
  %v412 = vunpack.c.l.b16 %v138
  %v413 = vunpack.c.l.b16 %v139
  %v414 = vunpack.c.l.b16 %v140
  %v415 = vunpack.c.l.b16 %v141
  %v416 = vunpack.c.l.b16 %v142
  %v417 = vpack.c.b16 %v290, %v289
  %v418 = vpack.c.b16 %v292, %v291
  %v419 = vpack.c.b16 %v294, %v293
  %v420 = vpack.c.b16 %v296, %v295
  %v421 = vpack.c.b16 %v298, %v297
  %v422 = vpack.c.b16 %v300, %v299
  %v423 = vpack.c.b16 %v302, %v301
  %v424 = vpack.c.b16 %v304, %v303
  %v425 = vpack.c.b16 %v306, %v305
  %v426 = vpack.c.b16 %v308, %v307
  %v427 = vpack.c.b16 %v310, %v309
  %v428 = vpack.c.b16 %v312, %v311
  %v429 = vpack.c.b16 %v314, %v313
  %v430 = vpack.c.b16 %v316, %v315
  %v431 = vpack.c.b16 %v318, %v317
  %v432 = vpack.c.b16 %v320, %v319
  %v433 = vpack.c.b16 %v322, %v321
  %v434 = vpack.c.b16 %v324, %v323
  %v435 = vpack.c.b16 %v326, %v325
  %v436 = vpack.c.b16 %v328, %v327
  %v437 = vpack.c.b16 %v330, %v329
  %v438 = vpack.c.b16 %v332, %v331
  %v439 = vpack.c.b16 %v334, %v333
  %v440 = vpack.c.b16 %v336, %v335
  %v441 = vpack.c.b16 %v338, %v337
  %v442 = vpack.c.b16 %v340, %v339
  %v443 = vpack.c.b16 %v342, %v341
  %v444 = vpack.c.b16 %v344, %v343
  %v445 = vpack.c.b16 %v346, %v345
  %v446 = vpack.c.b16 %v348, %v347
  %v447 = vpack.c.b16 %v350, %v349
  %v448 = vpack.c.b16 %v352, %v351
  %v449 = vpack.c.b16 %v354, %v353
  %v450 = vpack.c.b16 %v356, %v355
  %v451 = vpack.c.b16 %v358, %v357
  %v452 = vpack.c.b16 %v360, %v359
  %v453 = vpack.c.b16 %v362, %v361
  %v454 = vpack.c.b16 %v364, %v363
  %v455 = vpack.c.b16 %v366, %v365
  %v456 = vpack.c.b16 %v368, %v367
  %v457 = vpack.c.b16 %v370, %v369
  %v458 = vpack.c.b16 %v372, %v371
  %v459 = vpack.c.b16 %v374, %v373
  %v460 = vpack.c.b16 %v376, %v375
  %v461 = vpack.c.b16 %v378, %v377
  %v462 = vpack.c.b16 %v380, %v379
  %v463 = vpack.c.b16 %v382, %v381
  %v464 = vpack.c.b16 %v384, %v383
  %v465 = vpack.c.b16 %v386, %v385
  %v466 = vpack.c.b16 %v388, %v387
  %v467 = vpack.c.b16 %v390, %v389
  %v468 = vpack.c.b16 %v392, %v391
  %v469 = vpack.c.b16 %v394, %v393
  %v470 = vpack.c.b16 %v396, %v395
  %v471 = vpack.c.b16 %v398, %v397
  %v472 = vpack.c.b16 %v400, %v399
  %v473 = vpack.c.b16 %v402, %v401
  %v474 = vpack.c.b16 %v404, %v403
  %v475 = vpack.c.b16 %v406, %v405
  %v476 = vpack.c.b16 %v408, %v407
  %v477 = vpack.c.b16 %v410, %v409
  %v478 = vpack.c.b16 %v412, %v411
  %v479 = vpack.c.b16 %v414, %v413
  %v480 = vpack.c.b16 %v416, %v415
  %v492 = vunpack.c.l.b16 %v143
  %v493 = vunpack.c.l.b16 %v144
  %v494 = vunpack.c.l.b16 %v145
  %v495 = vunpack.c.l.b16 %v146
  %v496 = vunpack.c.l.b16 %v147
  %v497 = vunpack.c.l.b16 %v148
  %v498 = vunpack.c.l.b16 %v149
  %v499 = vunpack.c.l.b16 %v150
  %v500 = vunpack.c.l.b16 %v151
  %v501 = vunpack.c.l.b16 %v152
  %v502 = vunpack.c.l.b16 %v153
  %v503 = vpack.c.b16 %v493, %v492
  %v504 = vpack.c.b16 %v495, %v494
  %v505 = vpack.c.b16 %v497, %v496
  %v506 = vpack.c.b16 %v499, %v498
  %v507 = vpack.c.b16 %v501, %v500
  %v508 = vpack.c.b16 %v502, %v502
  %vm514 = vcmask 662528
  %v516 = vsel %vm514, %v417, 0
  %v519 = vsel %vm514, %v418, 0
  %v522 = vsel %vm514, %v419, 0
  %v525 = vsel %vm514, %v420, 0
  %v528 = vsel %vm514, %v421, 0
  %v531 = vsel %vm514, %v422, 0
  %v534 = vsel %vm514, %v423, 0
  %v537 = vsel %vm514, %v424, 0
  %v540 = vsel %vm514, %v425, 0
  %v543 = vsel %vm514, %v426, 0
  %v546 = vsel %vm514, %v427, 0
  %v549 = vsel %vm514, %v428, 0
  %v552 = vsel %vm514, %v429, 0
  %v555 = vsel %vm514, %v430, 0
  %v558 = vsel %vm514, %v431, 0
  %v561 = vsel %vm514, %v432, 0
  %v564 = vsel %vm514, %v433, 0
  %v567 = vsel %vm514, %v434, 0
  %v570 = vsel %vm514, %v435, 0
  %v573 = vsel %vm514, %v436, 0
  %v576 = vsel %vm514, %v437, 0
  %v579 = vsel %vm514, %v438, 0
  %v582 = vsel %vm514, %v439, 0
  %v585 = vsel %vm514, %v440, 0
  %v588 = vsel %vm514, %v441, 0
  %v591 = vsel %vm514, %v442, 0
  %v594 = vsel %vm514, %v443, 0
  %v597 = vsel %vm514, %v444, 0
  %v600 = vsel %vm514, %v445, 0
  %v603 = vsel %vm514, %v446, 0
  %v606 = vsel %vm514, %v447, 0
  %v609 = vsel %vm514, %v448, 0
  %v612 = vsel %vm514, %v449, 0
  %v615 = vsel %vm514, %v450, 0
  %v618 = vsel %vm514, %v451, 0
  %v621 = vsel %vm514, %v452, 0
  %v624 = vsel %vm514, %v453, 0
  %v627 = vsel %vm514, %v454, 0
  %v630 = vsel %vm514, %v455, 0
  %v633 = vsel %vm514, %v456, 0
  %v636 = vsel %vm514, %v457, 0
  %v639 = vsel %vm514, %v458, 0
  %v642 = vsel %vm514, %v459, 0
  %v645 = vsel %vm514, %v460, 0
  %v648 = vsel %vm514, %v461, 0
  %v651 = vsel %vm514, %v462, 0
  %v654 = vsel %vm514, %v463, 0
  %v657 = vsel %vm514, %v464, 0
  %v660 = vsel %vm514, %v465, 0
  %v663 = vsel %vm514, %v466, 0
  %v666 = vsel %vm514, %v467, 0
  %v669 = vsel %vm514, %v468, 0
  %v672 = vsel %vm514, %v469, 0
  %v675 = vsel %vm514, %v470, 0
  %v678 = vsel %vm514, %v471, 0
  %v681 = vsel %vm514, %v472, 0
  %v684 = vsel %vm514, %v473, 0
  %v687 = vsel %vm514, %v474, 0
  %v690 = vsel %vm514, %v475, 0
  %v693 = vsel %vm514, %v476, 0
  %v696 = vsel %vm514, %v477, 0
  %v699 = vsel %vm514, %v478, 0
  %v702 = vsel %vm514, %v479, 0
  %v705 = vsel %vm514, %v480, 0
  %vm707 = vcmask 1040384
  %v708 = vsel 0, 4294967295, 65535
  %v709 = vsel %vm707, %v708, 0
  %v711 = vand.u32 %v508, %v709
  %713 = vmatprep.subr.bf16.mxu0 0
  %714 = vmatpush1.bf16.msra.mxu0 0
  %715 = vmatprep.subr.bf16.mxu0 0
  %716 = vmatpush1.bf16.msra.mxu0 0
  %717 = vmatprep.subr.bf16.mxu0 0
  %718 = vmatpush1.bf16.msra.mxu0 %v711
  %719 = vmatprep.subr.bf16.mxu0 0
  %720 = vmatpush1.bf16.msra.mxu0 %v507
  %721 = vmatprep.subr.bf16.mxu0 0
  %722 = vmatpush1.bf16.msra.mxu0 %v506
  %723 = vmatprep.subr.bf16.mxu0 0
  %724 = vmatpush1.bf16.msra.mxu0 %v505
  %725 = vmatprep.subr.bf16.mxu0 0
  %726 = vmatpush1.bf16.msra.mxu0 %v504
  %727 = vmatprep.subr.bf16.mxu0 0
  %728 = vmatpush1.bf16.msra.mxu0 %v503
  %729 = vmatprep.subr.bf16.mxu0 0
  %730 = vmatpush2.bf16.msra.mxu0 0
  %731 = vmatprep.subr.bf16.mxu0 0
  %732 = vmatpush2.bf16.msra.mxu0 0
  %733 = vmatprep.subr.bf16.mxu0 0
  %734 = vmatpush2.bf16.msra.mxu0 0
  %735 = vmatprep.subr.bf16.mxu0 0
  %736 = vmatpush2.bf16.msra.mxu0 0
  %737 = vmatprep.subr.bf16.mxu0 0
  %738 = vmatpush2.bf16.msra.mxu0 0
  %739 = vmatprep.subr.bf16.mxu0 0
  %740 = vmatpush2.bf16.msra.mxu0 0
  %741 = vmatprep.subr.bf16.mxu0 0
  %742 = vmatpush2.bf16.msra.mxu0 0
  %743 = vmatprep.subr.bf16.mxu0 0
  %744 = vmatpush2.bf16.msra.mxu0 0
  %745 = vmatprep.mubr.bf16.mxu0 0
  %746 = vmatmul.mubr.bf16.gmra.mxu0 %v516
  %v747 = vpop.f32.mrf.mxu0
  %v748 = vadd.f32 %v159, %v747
  %v749 = vpop.f32.mrf.mxu0
  %v750 = vpop.f32.mrf.mxu0
  %v751 = vadd.f32 %v159, %v750
  %v752 = vpop.f32.mrf.mxu0
  %753 = vmatprep.mubr.bf16.mxu0 0
  %754 = vmatmul.mubr.bf16.gmra.mxu0 %v519
  %v755 = vpop.f32.mrf.mxu0
  %v756 = vadd.f32 %v159, %v755
  %v757 = vpop.f32.mrf.mxu0
  %v758 = vpop.f32.mrf.mxu0
  %v759 = vadd.f32 %v159, %v758
  %v760 = vpop.f32.mrf.mxu0
  %761 = vmatprep.mubr.bf16.mxu0 0
  %762 = vmatmul.mubr.bf16.gmra.mxu0 %v522
  %v763 = vpop.f32.mrf.mxu0
  %v764 = vadd.f32 %v159, %v763
  %v765 = vpop.f32.mrf.mxu0
  %v766 = vpop.f32.mrf.mxu0
  %v767 = vadd.f32 %v159, %v766
  %v768 = vpop.f32.mrf.mxu0
  %769 = vmatprep.mubr.bf16.mxu0 0
  %770 = vmatmul.mubr.bf16.gmra.mxu0 %v525
  %v771 = vpop.f32.mrf.mxu0
  %v772 = vadd.f32 %v159, %v771
  %v773 = vpop.f32.mrf.mxu0
  %v774 = vpop.f32.mrf.mxu0
  %v775 = vadd.f32 %v159, %v774
  %v776 = vpop.f32.mrf.mxu0
  %777 = vmatprep.mubr.bf16.mxu0 0
  %778 = vmatmul.mubr.bf16.gmra.mxu0 %v528
  %v779 = vpop.f32.mrf.mxu0
  %v780 = vadd.f32 %v159, %v779
  %v781 = vpop.f32.mrf.mxu0
  %v782 = vpop.f32.mrf.mxu0
  %v783 = vadd.f32 %v159, %v782
  %v784 = vpop.f32.mrf.mxu0
  %785 = vmatprep.mubr.bf16.mxu0 0
  %786 = vmatmul.mubr.bf16.gmra.mxu0 %v531
  %v787 = vpop.f32.mrf.mxu0
  %v788 = vadd.f32 %v159, %v787
  %v789 = vpop.f32.mrf.mxu0
  %v790 = vpop.f32.mrf.mxu0
  %v791 = vadd.f32 %v159, %v790
  %v792 = vpop.f32.mrf.mxu0
  %793 = vmatprep.mubr.bf16.mxu0 0
  %794 = vmatmul.mubr.bf16.gmra.mxu0 %v534
  %v795 = vpop.f32.mrf.mxu0
  %v796 = vadd.f32 %v159, %v795
  %v797 = vpop.f32.mrf.mxu0
  %v798 = vpop.f32.mrf.mxu0
  %v799 = vadd.f32 %v159, %v798
  %v800 = vpop.f32.mrf.mxu0
  %801 = vmatprep.mubr.bf16.mxu0 0
  %802 = vmatmul.mubr.bf16.gmra.mxu0 %v537
  %v803 = vpop.f32.mrf.mxu0
  %v804 = vadd.f32 %v159, %v803
  %v805 = vpop.f32.mrf.mxu0
  %v806 = vpop.f32.mrf.mxu0
  %v807 = vadd.f32 %v159, %v806
  %v808 = vpop.f32.mrf.mxu0
  %809 = vmatprep.mubr.bf16.mxu0 0
  %810 = vmatmul.mubr.bf16.gmra.mxu0 %v540
  %v811 = vpop.f32.mrf.mxu0
  %v812 = vadd.f32 %v159, %v811
  %v813 = vpop.f32.mrf.mxu0
  %v814 = vpop.f32.mrf.mxu0
  %v815 = vadd.f32 %v159, %v814
  %v816 = vpop.f32.mrf.mxu0
  %817 = vmatprep.mubr.bf16.mxu0 0
  %818 = vmatmul.mubr.bf16.gmra.mxu0 %v543
  %v819 = vpop.f32.mrf.mxu0
  %v820 = vadd.f32 %v159, %v819
  %v821 = vpop.f32.mrf.mxu0
  %v822 = vpop.f32.mrf.mxu0
  %v823 = vadd.f32 %v159, %v822
  %v824 = vpop.f32.mrf.mxu0
  %825 = vmatprep.mubr.bf16.mxu0 0
  %826 = vmatmul.mubr.bf16.gmra.mxu0 %v546
  %v827 = vpop.f32.mrf.mxu0
  %v828 = vadd.f32 %v159, %v827
  %v829 = vpop.f32.mrf.mxu0
  %v830 = vpop.f32.mrf.mxu0
  %v831 = vadd.f32 %v159, %v830
  %v832 = vpop.f32.mrf.mxu0
  %833 = vmatprep.mubr.bf16.mxu0 0
  %834 = vmatmul.mubr.bf16.gmra.mxu0 %v549
  %v835 = vpop.f32.mrf.mxu0
  %v836 = vadd.f32 %v159, %v835
  %v837 = vpop.f32.mrf.mxu0
  %v838 = vpop.f32.mrf.mxu0
  %v839 = vadd.f32 %v159, %v838
  %v840 = vpop.f32.mrf.mxu0
  %841 = vmatprep.mubr.bf16.mxu0 0
  %842 = vmatmul.mubr.bf16.gmra.mxu0 %v552
  %v843 = vpop.f32.mrf.mxu0
  %v844 = vadd.f32 %v159, %v843
  %v845 = vpop.f32.mrf.mxu0
  %v846 = vpop.f32.mrf.mxu0
  %v847 = vadd.f32 %v159, %v846
  %v848 = vpop.f32.mrf.mxu0
  %849 = vmatprep.mubr.bf16.mxu0 0
  %850 = vmatmul.mubr.bf16.gmra.mxu0 %v555
  %v851 = vpop.f32.mrf.mxu0
  %v852 = vadd.f32 %v159, %v851
  %v853 = vpop.f32.mrf.mxu0
  %v854 = vpop.f32.mrf.mxu0
  %v855 = vadd.f32 %v159, %v854
  %v856 = vpop.f32.mrf.mxu0
  %857 = vmatprep.mubr.bf16.mxu0 0
  %858 = vmatmul.mubr.bf16.gmra.mxu0 %v558
  %v859 = vpop.f32.mrf.mxu0
  %v860 = vadd.f32 %v159, %v859
  %v861 = vpop.f32.mrf.mxu0
  %v862 = vpop.f32.mrf.mxu0
  %v863 = vadd.f32 %v159, %v862
  %v864 = vpop.f32.mrf.mxu0
  %865 = vmatprep.mubr.bf16.mxu0 0
  %866 = vmatmul.mubr.bf16.gmra.mxu0 %v561
  %v867 = vpop.f32.mrf.mxu0
  %v868 = vadd.f32 %v159, %v867
  %v869 = vpop.f32.mrf.mxu0
  %v870 = vpop.f32.mrf.mxu0
  %v871 = vadd.f32 %v159, %v870
  %v872 = vpop.f32.mrf.mxu0
  %873 = vmatprep.mubr.bf16.mxu0 0
  %874 = vmatmul.mubr.bf16.gmra.mxu0 %v564
  %v875 = vpop.f32.mrf.mxu0
  %v876 = vadd.f32 %v159, %v875
  %v877 = vpop.f32.mrf.mxu0
  %v878 = vpop.f32.mrf.mxu0
  %v879 = vadd.f32 %v159, %v878
  %v880 = vpop.f32.mrf.mxu0
  %881 = vmatprep.mubr.bf16.mxu0 0
  %882 = vmatmul.mubr.bf16.gmra.mxu0 %v567
  %v883 = vpop.f32.mrf.mxu0
  %v884 = vadd.f32 %v159, %v883
  %v885 = vpop.f32.mrf.mxu0
  %v886 = vpop.f32.mrf.mxu0
  %v887 = vadd.f32 %v159, %v886
  %v888 = vpop.f32.mrf.mxu0
  %889 = vmatprep.mubr.bf16.mxu0 0
  %890 = vmatmul.mubr.bf16.gmra.mxu0 %v570
  %v891 = vpop.f32.mrf.mxu0
  %v892 = vadd.f32 %v159, %v891
  %v893 = vpop.f32.mrf.mxu0
  %v894 = vpop.f32.mrf.mxu0
  %v895 = vadd.f32 %v159, %v894
  %v896 = vpop.f32.mrf.mxu0
  %897 = vmatprep.mubr.bf16.mxu0 0
  %898 = vmatmul.mubr.bf16.gmra.mxu0 %v573
  %v899 = vpop.f32.mrf.mxu0
  %v900 = vadd.f32 %v159, %v899
  %v901 = vpop.f32.mrf.mxu0
  %v902 = vpop.f32.mrf.mxu0
  %v903 = vadd.f32 %v159, %v902
  %v904 = vpop.f32.mrf.mxu0
  %905 = vmatprep.mubr.bf16.mxu0 0
  %906 = vmatmul.mubr.bf16.gmra.mxu0 %v576
  %v907 = vpop.f32.mrf.mxu0
  %v908 = vadd.f32 %v159, %v907
  %v909 = vpop.f32.mrf.mxu0
  %v910 = vpop.f32.mrf.mxu0
  %v911 = vadd.f32 %v159, %v910
  %v912 = vpop.f32.mrf.mxu0
  %913 = vmatprep.mubr.bf16.mxu0 0
  %914 = vmatmul.mubr.bf16.gmra.mxu0 %v579
  %v915 = vpop.f32.mrf.mxu0
  %v916 = vadd.f32 %v159, %v915
  %v917 = vpop.f32.mrf.mxu0
  %v918 = vpop.f32.mrf.mxu0
  %v919 = vadd.f32 %v159, %v918
  %v920 = vpop.f32.mrf.mxu0
  %921 = vmatprep.mubr.bf16.mxu0 0
  %922 = vmatmul.mubr.bf16.gmra.mxu0 %v582
  %v923 = vpop.f32.mrf.mxu0
  %v924 = vadd.f32 %v159, %v923
  %v925 = vpop.f32.mrf.mxu0
  %v926 = vpop.f32.mrf.mxu0
  %v927 = vadd.f32 %v159, %v926
  %v928 = vpop.f32.mrf.mxu0
  %929 = vmatprep.mubr.bf16.mxu0 0
  %930 = vmatmul.mubr.bf16.gmra.mxu0 %v585
  %v931 = vpop.f32.mrf.mxu0
  %v932 = vadd.f32 %v159, %v931
  %v933 = vpop.f32.mrf.mxu0
  %v934 = vpop.f32.mrf.mxu0
  %v935 = vadd.f32 %v159, %v934
  %v936 = vpop.f32.mrf.mxu0
  %937 = vmatprep.mubr.bf16.mxu0 0
  %938 = vmatmul.mubr.bf16.gmra.mxu0 %v588
  %v939 = vpop.f32.mrf.mxu0
  %v940 = vadd.f32 %v159, %v939
  %v941 = vpop.f32.mrf.mxu0
  %v942 = vpop.f32.mrf.mxu0
  %v943 = vadd.f32 %v159, %v942
  %v944 = vpop.f32.mrf.mxu0
  %945 = vmatprep.mubr.bf16.mxu0 0
  %946 = vmatmul.mubr.bf16.gmra.mxu0 %v591
  %v947 = vpop.f32.mrf.mxu0
  %v948 = vadd.f32 %v159, %v947
  %v949 = vpop.f32.mrf.mxu0
  %v950 = vpop.f32.mrf.mxu0
  %v951 = vadd.f32 %v159, %v950
  %v952 = vpop.f32.mrf.mxu0
  %953 = vmatprep.mubr.bf16.mxu0 0
  %954 = vmatmul.mubr.bf16.gmra.mxu0 %v594
  %v955 = vpop.f32.mrf.mxu0
  %v956 = vadd.f32 %v159, %v955
  %v957 = vpop.f32.mrf.mxu0
  %v958 = vpop.f32.mrf.mxu0
  %v959 = vadd.f32 %v159, %v958
  %v960 = vpop.f32.mrf.mxu0
  %961 = vmatprep.mubr.bf16.mxu0 0
  %962 = vmatmul.mubr.bf16.gmra.mxu0 %v597
  %v963 = vpop.f32.mrf.mxu0
  %v964 = vadd.f32 %v159, %v963
  %v965 = vpop.f32.mrf.mxu0
  %v966 = vpop.f32.mrf.mxu0
  %v967 = vadd.f32 %v159, %v966
  %v968 = vpop.f32.mrf.mxu0
  %969 = vmatprep.mubr.bf16.mxu0 0
  %970 = vmatmul.mubr.bf16.gmra.mxu0 %v600
  %v971 = vpop.f32.mrf.mxu0
  %v972 = vadd.f32 %v159, %v971
  %v973 = vpop.f32.mrf.mxu0
  %v974 = vpop.f32.mrf.mxu0
  %v975 = vadd.f32 %v159, %v974
  %v976 = vpop.f32.mrf.mxu0
  %977 = vmatprep.mubr.bf16.mxu0 0
  %978 = vmatmul.mubr.bf16.gmra.mxu0 %v603
  %v979 = vpop.f32.mrf.mxu0
  %v980 = vadd.f32 %v159, %v979
  %v981 = vpop.f32.mrf.mxu0
  %v982 = vpop.f32.mrf.mxu0
  %v983 = vadd.f32 %v159, %v982
  %v984 = vpop.f32.mrf.mxu0
  %985 = vmatprep.mubr.bf16.mxu0 0
  %986 = vmatmul.mubr.bf16.gmra.mxu0 %v606
  %v987 = vpop.f32.mrf.mxu0
  %v988 = vadd.f32 %v159, %v987
  %v989 = vpop.f32.mrf.mxu0
  %v990 = vpop.f32.mrf.mxu0
  %v991 = vadd.f32 %v159, %v990
  %v992 = vpop.f32.mrf.mxu0
  %993 = vmatprep.mubr.bf16.mxu0 0
  %994 = vmatmul.mubr.bf16.gmra.mxu0 %v609
  %v995 = vpop.f32.mrf.mxu0
  %v996 = vadd.f32 %v159, %v995
  %v997 = vpop.f32.mrf.mxu0
  %v998 = vpop.f32.mrf.mxu0
  %v999 = vadd.f32 %v159, %v998
  %v1000 = vpop.f32.mrf.mxu0
  %1001 = vmatprep.mubr.bf16.mxu0 0
  %1002 = vmatmul.mubr.bf16.gmra.mxu0 %v612
  %v1003 = vpop.f32.mrf.mxu0
  %v1004 = vadd.f32 %v159, %v1003
  %v1005 = vpop.f32.mrf.mxu0
  %v1006 = vpop.f32.mrf.mxu0
  %v1007 = vadd.f32 %v159, %v1006
  %v1008 = vpop.f32.mrf.mxu0
  %1009 = vmatprep.mubr.bf16.mxu0 0
  %1010 = vmatmul.mubr.bf16.gmra.mxu0 %v615
  %v1011 = vpop.f32.mrf.mxu0
  %v1012 = vadd.f32 %v159, %v1011
  %v1013 = vpop.f32.mrf.mxu0
  %v1014 = vpop.f32.mrf.mxu0
  %v1015 = vadd.f32 %v159, %v1014
  %v1016 = vpop.f32.mrf.mxu0
  %1017 = vmatprep.mubr.bf16.mxu0 0
  %1018 = vmatmul.mubr.bf16.gmra.mxu0 %v618
  %v1019 = vpop.f32.mrf.mxu0
  %v1020 = vadd.f32 %v159, %v1019
  %v1021 = vpop.f32.mrf.mxu0
  %v1022 = vpop.f32.mrf.mxu0
  %v1023 = vadd.f32 %v159, %v1022
  %v1024 = vpop.f32.mrf.mxu0
  %1025 = vmatprep.mubr.bf16.mxu0 0
  %1026 = vmatmul.mubr.bf16.gmra.mxu0 %v621
  %v1027 = vpop.f32.mrf.mxu0
  %v1028 = vadd.f32 %v159, %v1027
  %v1029 = vpop.f32.mrf.mxu0
  %v1030 = vpop.f32.mrf.mxu0
  %v1031 = vadd.f32 %v159, %v1030
  %v1032 = vpop.f32.mrf.mxu0
  %1033 = vmatprep.mubr.bf16.mxu0 0
  %1034 = vmatmul.mubr.bf16.gmra.mxu0 %v624
  %v1035 = vpop.f32.mrf.mxu0
  %v1036 = vadd.f32 %v159, %v1035
  %v1037 = vpop.f32.mrf.mxu0
  %v1038 = vpop.f32.mrf.mxu0
  %v1039 = vadd.f32 %v159, %v1038
  %v1040 = vpop.f32.mrf.mxu0
  %1041 = vmatprep.mubr.bf16.mxu0 0
  %1042 = vmatmul.mubr.bf16.gmra.mxu0 %v627
  %v1043 = vpop.f32.mrf.mxu0
  %v1044 = vadd.f32 %v159, %v1043
  %v1045 = vpop.f32.mrf.mxu0
  %v1046 = vpop.f32.mrf.mxu0
  %v1047 = vadd.f32 %v159, %v1046
  %v1048 = vpop.f32.mrf.mxu0
  %1049 = vmatprep.mubr.bf16.mxu0 0
  %1050 = vmatmul.mubr.bf16.gmra.mxu0 %v630
  %v1051 = vpop.f32.mrf.mxu0
  %v1052 = vadd.f32 %v159, %v1051
  %v1053 = vpop.f32.mrf.mxu0
  %v1054 = vpop.f32.mrf.mxu0
  %v1055 = vadd.f32 %v159, %v1054
  %v1056 = vpop.f32.mrf.mxu0
  %1057 = vmatprep.mubr.bf16.mxu0 0
  %1058 = vmatmul.mubr.bf16.gmra.mxu0 %v633
  %v1059 = vpop.f32.mrf.mxu0
  %v1060 = vadd.f32 %v159, %v1059
  %v1061 = vpop.f32.mrf.mxu0
  %v1062 = vpop.f32.mrf.mxu0
  %v1063 = vadd.f32 %v159, %v1062
  %v1064 = vpop.f32.mrf.mxu0
  %1065 = vmatprep.mubr.bf16.mxu0 0
  %1066 = vmatmul.mubr.bf16.gmra.mxu0 %v636
  %v1067 = vpop.f32.mrf.mxu0
  %v1068 = vadd.f32 %v159, %v1067
  %v1069 = vpop.f32.mrf.mxu0
  %v1070 = vpop.f32.mrf.mxu0
  %v1071 = vadd.f32 %v159, %v1070
  %v1072 = vpop.f32.mrf.mxu0
  %1073 = vmatprep.mubr.bf16.mxu0 0
  %1074 = vmatmul.mubr.bf16.gmra.mxu0 %v639
  %v1075 = vpop.f32.mrf.mxu0
  %v1076 = vadd.f32 %v159, %v1075
  %v1077 = vpop.f32.mrf.mxu0
  %v1078 = vpop.f32.mrf.mxu0
  %v1079 = vadd.f32 %v159, %v1078
  %v1080 = vpop.f32.mrf.mxu0
  %1081 = vmatprep.mubr.bf16.mxu0 0
  %1082 = vmatmul.mubr.bf16.gmra.mxu0 %v642
  %v1083 = vpop.f32.mrf.mxu0
  %v1084 = vadd.f32 %v159, %v1083
  %v1085 = vpop.f32.mrf.mxu0
  %v1086 = vpop.f32.mrf.mxu0
  %v1087 = vadd.f32 %v159, %v1086
  %v1088 = vpop.f32.mrf.mxu0
  %1089 = vmatprep.mubr.bf16.mxu0 0
  %1090 = vmatmul.mubr.bf16.gmra.mxu0 %v645
  %v1091 = vpop.f32.mrf.mxu0
  %v1092 = vadd.f32 %v159, %v1091
  %v1093 = vpop.f32.mrf.mxu0
  %v1094 = vpop.f32.mrf.mxu0
  %v1095 = vadd.f32 %v159, %v1094
  %v1096 = vpop.f32.mrf.mxu0
  %1097 = vmatprep.mubr.bf16.mxu0 0
  %1098 = vmatmul.mubr.bf16.gmra.mxu0 %v648
  %v1099 = vpop.f32.mrf.mxu0
  %v1100 = vadd.f32 %v159, %v1099
  %v1101 = vpop.f32.mrf.mxu0
  %v1102 = vpop.f32.mrf.mxu0
  %v1103 = vadd.f32 %v159, %v1102
  %v1104 = vpop.f32.mrf.mxu0
  %1105 = vmatprep.mubr.bf16.mxu0 0
  %1106 = vmatmul.mubr.bf16.gmra.mxu0 %v651
  %v1107 = vpop.f32.mrf.mxu0
  %v1108 = vadd.f32 %v159, %v1107
  %v1109 = vpop.f32.mrf.mxu0
  %v1110 = vpop.f32.mrf.mxu0
  %v1111 = vadd.f32 %v159, %v1110
  %v1112 = vpop.f32.mrf.mxu0
  %1113 = vmatprep.mubr.bf16.mxu0 0
  %1114 = vmatmul.mubr.bf16.gmra.mxu0 %v654
  %v1115 = vpop.f32.mrf.mxu0
  %v1116 = vadd.f32 %v159, %v1115
  %v1117 = vpop.f32.mrf.mxu0
  %v1118 = vpop.f32.mrf.mxu0
  %v1119 = vadd.f32 %v159, %v1118
  %v1120 = vpop.f32.mrf.mxu0
  %1121 = vmatprep.mubr.bf16.mxu0 0
  %1122 = vmatmul.mubr.bf16.gmra.mxu0 %v657
  %v1123 = vpop.f32.mrf.mxu0
  %v1124 = vadd.f32 %v159, %v1123
  %v1125 = vpop.f32.mrf.mxu0
  %v1126 = vpop.f32.mrf.mxu0
  %v1127 = vadd.f32 %v159, %v1126
  %v1128 = vpop.f32.mrf.mxu0
  %1129 = vmatprep.mubr.bf16.mxu0 0
  %1130 = vmatmul.mubr.bf16.gmra.mxu0 %v660
  %v1131 = vpop.f32.mrf.mxu0
  %v1132 = vadd.f32 %v159, %v1131
  %v1133 = vpop.f32.mrf.mxu0
  %v1134 = vpop.f32.mrf.mxu0
  %v1135 = vadd.f32 %v159, %v1134
  %v1136 = vpop.f32.mrf.mxu0
  %1137 = vmatprep.mubr.bf16.mxu0 0
  %1138 = vmatmul.mubr.bf16.gmra.mxu0 %v663
  %v1139 = vpop.f32.mrf.mxu0
  %v1140 = vadd.f32 %v159, %v1139
  %v1141 = vpop.f32.mrf.mxu0
  %v1142 = vpop.f32.mrf.mxu0
  %v1143 = vadd.f32 %v159, %v1142
  %v1144 = vpop.f32.mrf.mxu0
  %1145 = vmatprep.mubr.bf16.mxu0 0
  %1146 = vmatmul.mubr.bf16.gmra.mxu0 %v666
  %v1147 = vpop.f32.mrf.mxu0
  %v1148 = vadd.f32 %v159, %v1147
  %v1149 = vpop.f32.mrf.mxu0
  %v1150 = vpop.f32.mrf.mxu0
  %v1151 = vadd.f32 %v159, %v1150
  %v1152 = vpop.f32.mrf.mxu0
  %1153 = vmatprep.mubr.bf16.mxu0 0
  %1154 = vmatmul.mubr.bf16.gmra.mxu0 %v669
  %v1155 = vpop.f32.mrf.mxu0
  %v1156 = vadd.f32 %v159, %v1155
  %v1157 = vpop.f32.mrf.mxu0
  %v1158 = vpop.f32.mrf.mxu0
  %v1159 = vadd.f32 %v159, %v1158
  %v1160 = vpop.f32.mrf.mxu0
  %1161 = vmatprep.mubr.bf16.mxu0 0
  %1162 = vmatmul.mubr.bf16.gmra.mxu0 %v672
  %v1163 = vpop.f32.mrf.mxu0
  %v1164 = vadd.f32 %v159, %v1163
  %v1165 = vpop.f32.mrf.mxu0
  %v1166 = vpop.f32.mrf.mxu0
  %v1167 = vadd.f32 %v159, %v1166
  %v1168 = vpop.f32.mrf.mxu0
  %1169 = vmatprep.mubr.bf16.mxu0 0
  %1170 = vmatmul.mubr.bf16.gmra.mxu0 %v675
  %v1171 = vpop.f32.mrf.mxu0
  %v1172 = vadd.f32 %v159, %v1171
  %v1173 = vpop.f32.mrf.mxu0
  %v1174 = vpop.f32.mrf.mxu0
  %v1175 = vadd.f32 %v159, %v1174
  %v1176 = vpop.f32.mrf.mxu0
  %1177 = vmatprep.mubr.bf16.mxu0 0
  %1178 = vmatmul.mubr.bf16.gmra.mxu0 %v678
  %v1179 = vpop.f32.mrf.mxu0
  %v1180 = vadd.f32 %v159, %v1179
  %v1181 = vpop.f32.mrf.mxu0
  %v1182 = vpop.f32.mrf.mxu0
  %v1183 = vadd.f32 %v159, %v1182
  %v1184 = vpop.f32.mrf.mxu0
  %1185 = vmatprep.mubr.bf16.mxu0 0
  %1186 = vmatmul.mubr.bf16.gmra.mxu0 %v681
  %v1187 = vpop.f32.mrf.mxu0
  %v1188 = vadd.f32 %v159, %v1187
  %v1189 = vpop.f32.mrf.mxu0
  %v1190 = vpop.f32.mrf.mxu0
  %v1191 = vadd.f32 %v159, %v1190
  %v1192 = vpop.f32.mrf.mxu0
  %1193 = vmatprep.mubr.bf16.mxu0 0
  %1194 = vmatmul.mubr.bf16.gmra.mxu0 %v684
  %v1195 = vpop.f32.mrf.mxu0
  %v1196 = vadd.f32 %v159, %v1195
  %v1197 = vpop.f32.mrf.mxu0
  %v1198 = vpop.f32.mrf.mxu0
  %v1199 = vadd.f32 %v159, %v1198
  %v1200 = vpop.f32.mrf.mxu0
  %1201 = vmatprep.mubr.bf16.mxu0 0
  %1202 = vmatmul.mubr.bf16.gmra.mxu0 %v687
  %v1203 = vpop.f32.mrf.mxu0
  %v1204 = vadd.f32 %v159, %v1203
  %v1205 = vpop.f32.mrf.mxu0
  %v1206 = vpop.f32.mrf.mxu0
  %v1207 = vadd.f32 %v159, %v1206
  %v1208 = vpop.f32.mrf.mxu0
  %1209 = vmatprep.mubr.bf16.mxu0 0
  %1210 = vmatmul.mubr.bf16.gmra.mxu0 %v690
  %v1211 = vpop.f32.mrf.mxu0
  %v1212 = vadd.f32 %v159, %v1211
  %v1213 = vpop.f32.mrf.mxu0
  %v1214 = vpop.f32.mrf.mxu0
  %v1215 = vadd.f32 %v159, %v1214
  %v1216 = vpop.f32.mrf.mxu0
  %1217 = vmatprep.mubr.bf16.mxu0 0
  %1218 = vmatmul.mubr.bf16.gmra.mxu0 %v693
  %v1219 = vpop.f32.mrf.mxu0
  %v1220 = vadd.f32 %v159, %v1219
  %v1221 = vpop.f32.mrf.mxu0
  %v1222 = vpop.f32.mrf.mxu0
  %v1223 = vadd.f32 %v159, %v1222
  %v1224 = vpop.f32.mrf.mxu0
  %1225 = vmatprep.mubr.bf16.mxu0 0
  %1226 = vmatmul.mubr.bf16.gmra.mxu0 %v696
  %v1227 = vpop.f32.mrf.mxu0
  %v1228 = vadd.f32 %v159, %v1227
  %v1229 = vpop.f32.mrf.mxu0
  %v1230 = vpop.f32.mrf.mxu0
  %v1231 = vadd.f32 %v159, %v1230
  %v1232 = vpop.f32.mrf.mxu0
  %1233 = vmatprep.mubr.bf16.mxu0 0
  %1234 = vmatmul.mubr.bf16.gmra.mxu0 %v699
  %v1235 = vpop.f32.mrf.mxu0
  %v1236 = vadd.f32 %v159, %v1235
  %v1237 = vpop.f32.mrf.mxu0
  %v1238 = vpop.f32.mrf.mxu0
  %v1239 = vadd.f32 %v159, %v1238
  %v1240 = vpop.f32.mrf.mxu0
  %1241 = vmatprep.mubr.bf16.mxu0 0
  %1242 = vmatmul.mubr.bf16.gmra.mxu0 %v702
  %v1243 = vpop.f32.mrf.mxu0
  %v1244 = vadd.f32 %v159, %v1243
  %v1245 = vpop.f32.mrf.mxu0
  %v1246 = vpop.f32.mrf.mxu0
  %v1247 = vadd.f32 %v159, %v1246
  %v1248 = vpop.f32.mrf.mxu0
  %1249 = vmatprep.mubr.bf16.mxu0 0
  %1250 = vmatmul.mubr.bf16.gmra.mxu0 %v705
  %v1251 = vpop.f32.mrf.mxu0
  %v1252 = vadd.f32 %v159, %v1251
  %v1253 = vpop.f32.mrf.mxu0
  %v1254 = vpop.f32.mrf.mxu0
  %v1255 = vadd.f32 %v159, %v1254
  %v1256 = vpop.f32.mrf.mxu0
  %1257 = vdwg.mxu0
  %v1258 = vmax.f32 %v748, 0.0
  %v1259 = vmax.f32 %v751, 0.0
  %v1260 = vmax.f32 %v756, 0.0
  %v1261 = vmax.f32 %v759, 0.0
  %v1262 = vmax.f32 %v764, 0.0
  %v1263 = vmax.f32 %v767, 0.0
  %v1264 = vmax.f32 %v772, 0.0
  %v1265 = vmax.f32 %v775, 0.0
  %v1266 = vmax.f32 %v780, 0.0
  %v1267 = vmax.f32 %v783, 0.0
  %v1268 = vmax.f32 %v788, 0.0
  %v1269 = vmax.f32 %v791, 0.0
  %v1270 = vmax.f32 %v796, 0.0
  %v1271 = vmax.f32 %v799, 0.0
  %v1272 = vmax.f32 %v804, 0.0
  %v1273 = vmax.f32 %v807, 0.0
  %v1274 = vmax.f32 %v812, 0.0
  %v1275 = vmax.f32 %v815, 0.0
  %v1276 = vmax.f32 %v820, 0.0
  %v1277 = vmax.f32 %v823, 0.0
  %v1278 = vmax.f32 %v828, 0.0
  %v1279 = vmax.f32 %v831, 0.0
  %v1280 = vmax.f32 %v836, 0.0
  %v1281 = vmax.f32 %v839, 0.0
  %v1282 = vmax.f32 %v844, 0.0
  %v1283 = vmax.f32 %v847, 0.0
  %v1284 = vmax.f32 %v852, 0.0
  %v1285 = vmax.f32 %v855, 0.0
  %v1286 = vmax.f32 %v860, 0.0
  %v1287 = vmax.f32 %v863, 0.0
  %v1288 = vmax.f32 %v868, 0.0
  %v1289 = vmax.f32 %v871, 0.0
  %v1290 = vmax.f32 %v876, 0.0
  %v1291 = vmax.f32 %v879, 0.0
  %v1292 = vmax.f32 %v884, 0.0
  %v1293 = vmax.f32 %v887, 0.0
  %v1294 = vmax.f32 %v892, 0.0
  %v1295 = vmax.f32 %v895, 0.0
  %v1296 = vmax.f32 %v900, 0.0
  %v1297 = vmax.f32 %v903, 0.0
  %v1298 = vmax.f32 %v908, 0.0
  %v1299 = vmax.f32 %v911, 0.0
  %v1300 = vmax.f32 %v916, 0.0
  %v1301 = vmax.f32 %v919, 0.0
  %v1302 = vmax.f32 %v924, 0.0
  %v1303 = vmax.f32 %v927, 0.0
  %v1304 = vmax.f32 %v932, 0.0
  %v1305 = vmax.f32 %v935, 0.0
  %v1306 = vmax.f32 %v940, 0.0
  %v1307 = vmax.f32 %v943, 0.0
  %v1308 = vmax.f32 %v948, 0.0
  %v1309 = vmax.f32 %v951, 0.0
  %v1310 = vmax.f32 %v956, 0.0
  %v1311 = vmax.f32 %v959, 0.0
  %v1312 = vmax.f32 %v964, 0.0
  %v1313 = vmax.f32 %v967, 0.0
  %v1314 = vmax.f32 %v972, 0.0
  %v1315 = vmax.f32 %v975, 0.0
  %v1316 = vmax.f32 %v980, 0.0
  %v1317 = vmax.f32 %v983, 0.0
  %v1318 = vmax.f32 %v988, 0.0
  %v1319 = vmax.f32 %v991, 0.0
  %v1320 = vmax.f32 %v996, 0.0
  %v1321 = vmax.f32 %v999, 0.0
  %v1322 = vmax.f32 %v1004, 0.0
  %v1323 = vmax.f32 %v1007, 0.0
  %v1324 = vmax.f32 %v1012, 0.0
  %v1325 = vmax.f32 %v1015, 0.0
  %v1326 = vmax.f32 %v1020, 0.0
  %v1327 = vmax.f32 %v1023, 0.0
  %v1328 = vmax.f32 %v1028, 0.0
  %v1329 = vmax.f32 %v1031, 0.0
  %v1330 = vmax.f32 %v1036, 0.0
  %v1331 = vmax.f32 %v1039, 0.0
  %v1332 = vmax.f32 %v1044, 0.0
  %v1333 = vmax.f32 %v1047, 0.0
  %v1334 = vmax.f32 %v1052, 0.0
  %v1335 = vmax.f32 %v1055, 0.0
  %v1336 = vmax.f32 %v1060, 0.0
  %v1337 = vmax.f32 %v1063, 0.0
  %v1338 = vmax.f32 %v1068, 0.0
  %v1339 = vmax.f32 %v1071, 0.0
  %v1340 = vmax.f32 %v1076, 0.0
  %v1341 = vmax.f32 %v1079, 0.0
  %v1342 = vmax.f32 %v1084, 0.0
  %v1343 = vmax.f32 %v1087, 0.0
  %v1344 = vmax.f32 %v1092, 0.0
  %v1345 = vmax.f32 %v1095, 0.0
  %v1346 = vmax.f32 %v1100, 0.0
  %v1347 = vmax.f32 %v1103, 0.0
  %v1348 = vmax.f32 %v1108, 0.0
  %v1349 = vmax.f32 %v1111, 0.0
  %v1350 = vmax.f32 %v1116, 0.0
  %v1351 = vmax.f32 %v1119, 0.0
  %v1352 = vmax.f32 %v1124, 0.0
  %v1353 = vmax.f32 %v1127, 0.0
  %v1354 = vmax.f32 %v1132, 0.0
  %v1355 = vmax.f32 %v1135, 0.0
  %v1356 = vmax.f32 %v1140, 0.0
  %v1357 = vmax.f32 %v1143, 0.0
  %v1358 = vmax.f32 %v1148, 0.0
  %v1359 = vmax.f32 %v1151, 0.0
  %v1360 = vmax.f32 %v1156, 0.0
  %v1361 = vmax.f32 %v1159, 0.0
  %v1362 = vmax.f32 %v1164, 0.0
  %v1363 = vmax.f32 %v1167, 0.0
  %v1364 = vmax.f32 %v1172, 0.0
  %v1365 = vmax.f32 %v1175, 0.0
  %v1366 = vmax.f32 %v1180, 0.0
  %v1367 = vmax.f32 %v1183, 0.0
  %v1368 = vmax.f32 %v1188, 0.0
  %v1369 = vmax.f32 %v1191, 0.0
  %v1370 = vmax.f32 %v1196, 0.0
  %v1371 = vmax.f32 %v1199, 0.0
  %v1372 = vmax.f32 %v1204, 0.0
  %v1373 = vmax.f32 %v1207, 0.0
  %v1374 = vmax.f32 %v1212, 0.0
  %v1375 = vmax.f32 %v1215, 0.0
  %v1376 = vmax.f32 %v1220, 0.0
  %v1377 = vmax.f32 %v1223, 0.0
  %v1378 = vmax.f32 %v1228, 0.0
  %v1379 = vmax.f32 %v1231, 0.0
  %v1380 = vmax.f32 %v1236, 0.0
  %v1381 = vmax.f32 %v1239, 0.0
  %v1382 = vmax.f32 %v1244, 0.0
  %v1383 = vmax.f32 %v1247, 0.0
  %v1384 = vmax.f32 %v1252, 0.0
  %v1385 = vmax.f32 %v1255, 0.0
  %vm1386 = vcmask 523264
  %v1387 = vsel %vm1386, %v1258, -inf
  %v1388 = vrot.slane %v1387, 4
  %v1389 = vmax.f32 %v1387, %v1388
  %v1390 = vrot.slane %v1389, 2
  %v1391 = vmax.f32 %v1389, %v1390
  %v1392 = vrot.slane %v1391, 1
  %v1393 = vmax.f32 %v1391, %v1392
  %v1394 = vsel %vm1386, %v1259, -inf
  %v1395 = vrot.slane %v1394, 4
  %v1396 = vmax.f32 %v1394, %v1395
  %v1397 = vrot.slane %v1396, 2
  %v1398 = vmax.f32 %v1396, %v1397
  %v1399 = vrot.slane %v1398, 1
  %v1400 = vmax.f32 %v1398, %v1399
  %v1401 = vsel %vm1386, %v1260, -inf
  %v1402 = vrot.slane %v1401, 4
  %v1403 = vmax.f32 %v1401, %v1402
  %v1404 = vrot.slane %v1403, 2
  %v1405 = vmax.f32 %v1403, %v1404
  %v1406 = vrot.slane %v1405, 1
  %v1407 = vmax.f32 %v1405, %v1406
  %v1408 = vsel %vm1386, %v1261, -inf
  %v1409 = vrot.slane %v1408, 4
  %v1410 = vmax.f32 %v1408, %v1409
  %v1411 = vrot.slane %v1410, 2
  %v1412 = vmax.f32 %v1410, %v1411
  %v1413 = vrot.slane %v1412, 1
  %v1414 = vmax.f32 %v1412, %v1413
  %v1415 = vsel %vm1386, %v1262, -inf
  %v1416 = vrot.slane %v1415, 4
  %v1417 = vmax.f32 %v1415, %v1416
  %v1418 = vrot.slane %v1417, 2
  %v1419 = vmax.f32 %v1417, %v1418
  %v1420 = vrot.slane %v1419, 1
  %v1421 = vmax.f32 %v1419, %v1420
  %v1422 = vsel %vm1386, %v1263, -inf
  %v1423 = vrot.slane %v1422, 4
  %v1424 = vmax.f32 %v1422, %v1423
  %v1425 = vrot.slane %v1424, 2
  %v1426 = vmax.f32 %v1424, %v1425
  %v1427 = vrot.slane %v1426, 1
  %v1428 = vmax.f32 %v1426, %v1427
  %v1429 = vsel %vm1386, %v1264, -inf
  %v1430 = vrot.slane %v1429, 4
  %v1431 = vmax.f32 %v1429, %v1430
  %v1432 = vrot.slane %v1431, 2
  %v1433 = vmax.f32 %v1431, %v1432
  %v1434 = vrot.slane %v1433, 1
  %v1435 = vmax.f32 %v1433, %v1434
  %v1436 = vsel %vm1386, %v1265, -inf
  %v1437 = vrot.slane %v1436, 4
  %v1438 = vmax.f32 %v1436, %v1437
  %v1439 = vrot.slane %v1438, 2
  %v1440 = vmax.f32 %v1438, %v1439
  %v1441 = vrot.slane %v1440, 1
  %v1442 = vmax.f32 %v1440, %v1441
  %v1443 = vsel %vm1386, %v1266, -inf
  %v1444 = vrot.slane %v1443, 4
  %v1445 = vmax.f32 %v1443, %v1444
  %v1446 = vrot.slane %v1445, 2
  %v1447 = vmax.f32 %v1445, %v1446
  %v1448 = vrot.slane %v1447, 1
  %v1449 = vmax.f32 %v1447, %v1448
  %v1450 = vsel %vm1386, %v1267, -inf
  %v1451 = vrot.slane %v1450, 4
  %v1452 = vmax.f32 %v1450, %v1451
  %v1453 = vrot.slane %v1452, 2
  %v1454 = vmax.f32 %v1452, %v1453
  %v1455 = vrot.slane %v1454, 1
  %v1456 = vmax.f32 %v1454, %v1455
  %v1457 = vsel %vm1386, %v1268, -inf
  %v1458 = vrot.slane %v1457, 4
  %v1459 = vmax.f32 %v1457, %v1458
  %v1460 = vrot.slane %v1459, 2
  %v1461 = vmax.f32 %v1459, %v1460
  %v1462 = vrot.slane %v1461, 1
  %v1463 = vmax.f32 %v1461, %v1462
  %v1464 = vsel %vm1386, %v1269, -inf
  %v1465 = vrot.slane %v1464, 4
  %v1466 = vmax.f32 %v1464, %v1465
  %v1467 = vrot.slane %v1466, 2
  %v1468 = vmax.f32 %v1466, %v1467
  %v1469 = vrot.slane %v1468, 1
  %v1470 = vmax.f32 %v1468, %v1469
  %v1471 = vsel %vm1386, %v1270, -inf
  %v1472 = vrot.slane %v1471, 4
  %v1473 = vmax.f32 %v1471, %v1472
  %v1474 = vrot.slane %v1473, 2
  %v1475 = vmax.f32 %v1473, %v1474
  %v1476 = vrot.slane %v1475, 1
  %v1477 = vmax.f32 %v1475, %v1476
  %v1478 = vsel %vm1386, %v1271, -inf
  %v1479 = vrot.slane %v1478, 4
  %v1480 = vmax.f32 %v1478, %v1479
  %v1481 = vrot.slane %v1480, 2
  %v1482 = vmax.f32 %v1480, %v1481
  %v1483 = vrot.slane %v1482, 1
  %v1484 = vmax.f32 %v1482, %v1483
  %v1485 = vsel %vm1386, %v1272, -inf
  %v1486 = vrot.slane %v1485, 4
  %v1487 = vmax.f32 %v1485, %v1486
  %v1488 = vrot.slane %v1487, 2
  %v1489 = vmax.f32 %v1487, %v1488
  %v1490 = vrot.slane %v1489, 1
  %v1491 = vmax.f32 %v1489, %v1490
  %v1492 = vsel %vm1386, %v1273, -inf
  %v1493 = vrot.slane %v1492, 4
  %v1494 = vmax.f32 %v1492, %v1493
  %v1495 = vrot.slane %v1494, 2
  %v1496 = vmax.f32 %v1494, %v1495
  %v1497 = vrot.slane %v1496, 1
  %v1498 = vmax.f32 %v1496, %v1497
  %v1499 = vsel %vm1386, %v1274, -inf
  %v1500 = vrot.slane %v1499, 4
  %v1501 = vmax.f32 %v1499, %v1500
  %v1502 = vrot.slane %v1501, 2
  %v1503 = vmax.f32 %v1501, %v1502
  %v1504 = vrot.slane %v1503, 1
  %v1505 = vmax.f32 %v1503, %v1504
  %v1506 = vsel %vm1386, %v1275, -inf
  %v1507 = vrot.slane %v1506, 4
  %v1508 = vmax.f32 %v1506, %v1507
  %v1509 = vrot.slane %v1508, 2
  %v1510 = vmax.f32 %v1508, %v1509
  %v1511 = vrot.slane %v1510, 1
  %v1512 = vmax.f32 %v1510, %v1511
  %v1513 = vsel %vm1386, %v1276, -inf
  %v1514 = vrot.slane %v1513, 4
  %v1515 = vmax.f32 %v1513, %v1514
  %v1516 = vrot.slane %v1515, 2
  %v1517 = vmax.f32 %v1515, %v1516
  %v1518 = vrot.slane %v1517, 1
  %v1519 = vmax.f32 %v1517, %v1518
  %v1520 = vsel %vm1386, %v1277, -inf
  %v1521 = vrot.slane %v1520, 4
  %v1522 = vmax.f32 %v1520, %v1521
  %v1523 = vrot.slane %v1522, 2
  %v1524 = vmax.f32 %v1522, %v1523
  %v1525 = vrot.slane %v1524, 1
  %v1526 = vmax.f32 %v1524, %v1525
  %v1527 = vsel %vm1386, %v1278, -inf
  %v1528 = vrot.slane %v1527, 4
  %v1529 = vmax.f32 %v1527, %v1528
  %v1530 = vrot.slane %v1529, 2
  %v1531 = vmax.f32 %v1529, %v1530
  %v1532 = vrot.slane %v1531, 1
  %v1533 = vmax.f32 %v1531, %v1532
  %v1534 = vsel %vm1386, %v1279, -inf
  %v1535 = vrot.slane %v1534, 4
  %v1536 = vmax.f32 %v1534, %v1535
  %v1537 = vrot.slane %v1536, 2
  %v1538 = vmax.f32 %v1536, %v1537
  %v1539 = vrot.slane %v1538, 1
  %v1540 = vmax.f32 %v1538, %v1539
  %v1541 = vsel %vm1386, %v1280, -inf
  %v1542 = vrot.slane %v1541, 4
  %v1543 = vmax.f32 %v1541, %v1542
  %v1544 = vrot.slane %v1543, 2
  %v1545 = vmax.f32 %v1543, %v1544
  %v1546 = vrot.slane %v1545, 1
  %v1547 = vmax.f32 %v1545, %v1546
  %v1548 = vsel %vm1386, %v1281, -inf
  %v1549 = vrot.slane %v1548, 4
  %v1550 = vmax.f32 %v1548, %v1549
  %v1551 = vrot.slane %v1550, 2
  %v1552 = vmax.f32 %v1550, %v1551
  %v1553 = vrot.slane %v1552, 1
  %v1554 = vmax.f32 %v1552, %v1553
  %v1555 = vsel %vm1386, %v1282, -inf
  %v1556 = vrot.slane %v1555, 4
  %v1557 = vmax.f32 %v1555, %v1556
  %v1558 = vrot.slane %v1557, 2
  %v1559 = vmax.f32 %v1557, %v1558
  %v1560 = vrot.slane %v1559, 1
  %v1561 = vmax.f32 %v1559, %v1560
  %v1562 = vsel %vm1386, %v1283, -inf
  %v1563 = vrot.slane %v1562, 4
  %v1564 = vmax.f32 %v1562, %v1563
  %v1565 = vrot.slane %v1564, 2
  %v1566 = vmax.f32 %v1564, %v1565
  %v1567 = vrot.slane %v1566, 1
  %v1568 = vmax.f32 %v1566, %v1567
  %v1569 = vsel %vm1386, %v1284, -inf
  %v1570 = vrot.slane %v1569, 4
  %v1571 = vmax.f32 %v1569, %v1570
  %v1572 = vrot.slane %v1571, 2
  %v1573 = vmax.f32 %v1571, %v1572
  %v1574 = vrot.slane %v1573, 1
  %v1575 = vmax.f32 %v1573, %v1574
  %v1576 = vsel %vm1386, %v1285, -inf
  %v1577 = vrot.slane %v1576, 4
  %v1578 = vmax.f32 %v1576, %v1577
  %v1579 = vrot.slane %v1578, 2
  %v1580 = vmax.f32 %v1578, %v1579
  %v1581 = vrot.slane %v1580, 1
  %v1582 = vmax.f32 %v1580, %v1581
  %v1583 = vsel %vm1386, %v1286, -inf
  %v1584 = vrot.slane %v1583, 4
  %v1585 = vmax.f32 %v1583, %v1584
  %v1586 = vrot.slane %v1585, 2
  %v1587 = vmax.f32 %v1585, %v1586
  %v1588 = vrot.slane %v1587, 1
  %v1589 = vmax.f32 %v1587, %v1588
  %v1590 = vsel %vm1386, %v1287, -inf
  %v1591 = vrot.slane %v1590, 4
  %v1592 = vmax.f32 %v1590, %v1591
  %v1593 = vrot.slane %v1592, 2
  %v1594 = vmax.f32 %v1592, %v1593
  %v1595 = vrot.slane %v1594, 1
  %v1596 = vmax.f32 %v1594, %v1595
  %v1597 = vsel %vm1386, %v1288, -inf
  %v1598 = vrot.slane %v1597, 4
  %v1599 = vmax.f32 %v1597, %v1598
  %v1600 = vrot.slane %v1599, 2
  %v1601 = vmax.f32 %v1599, %v1600
  %v1602 = vrot.slane %v1601, 1
  %v1603 = vmax.f32 %v1601, %v1602
  %v1604 = vsel %vm1386, %v1289, -inf
  %v1605 = vrot.slane %v1604, 4
  %v1606 = vmax.f32 %v1604, %v1605
  %v1607 = vrot.slane %v1606, 2
  %v1608 = vmax.f32 %v1606, %v1607
  %v1609 = vrot.slane %v1608, 1
  %v1610 = vmax.f32 %v1608, %v1609
  %v1611 = vsel %vm1386, %v1290, -inf
  %v1612 = vrot.slane %v1611, 4
  %v1613 = vmax.f32 %v1611, %v1612
  %v1614 = vrot.slane %v1613, 2
  %v1615 = vmax.f32 %v1613, %v1614
  %v1616 = vrot.slane %v1615, 1
  %v1617 = vmax.f32 %v1615, %v1616
  %v1618 = vsel %vm1386, %v1291, -inf
  %v1619 = vrot.slane %v1618, 4
  %v1620 = vmax.f32 %v1618, %v1619
  %v1621 = vrot.slane %v1620, 2
  %v1622 = vmax.f32 %v1620, %v1621
  %v1623 = vrot.slane %v1622, 1
  %v1624 = vmax.f32 %v1622, %v1623
  %v1625 = vsel %vm1386, %v1292, -inf
  %v1626 = vrot.slane %v1625, 4
  %v1627 = vmax.f32 %v1625, %v1626
  %v1628 = vrot.slane %v1627, 2
  %v1629 = vmax.f32 %v1627, %v1628
  %v1630 = vrot.slane %v1629, 1
  %v1631 = vmax.f32 %v1629, %v1630
  %v1632 = vsel %vm1386, %v1293, -inf
  %v1633 = vrot.slane %v1632, 4
  %v1634 = vmax.f32 %v1632, %v1633
  %v1635 = vrot.slane %v1634, 2
  %v1636 = vmax.f32 %v1634, %v1635
  %v1637 = vrot.slane %v1636, 1
  %v1638 = vmax.f32 %v1636, %v1637
  %v1639 = vsel %vm1386, %v1294, -inf
  %v1640 = vrot.slane %v1639, 4
  %v1641 = vmax.f32 %v1639, %v1640
  %v1642 = vrot.slane %v1641, 2
  %v1643 = vmax.f32 %v1641, %v1642
  %v1644 = vrot.slane %v1643, 1
  %v1645 = vmax.f32 %v1643, %v1644
  %v1646 = vsel %vm1386, %v1295, -inf
  %v1647 = vrot.slane %v1646, 4
  %v1648 = vmax.f32 %v1646, %v1647
  %v1649 = vrot.slane %v1648, 2
  %v1650 = vmax.f32 %v1648, %v1649
  %v1651 = vrot.slane %v1650, 1
  %v1652 = vmax.f32 %v1650, %v1651
  %v1653 = vsel %vm1386, %v1296, -inf
  %v1654 = vrot.slane %v1653, 4
  %v1655 = vmax.f32 %v1653, %v1654
  %v1656 = vrot.slane %v1655, 2
  %v1657 = vmax.f32 %v1655, %v1656
  %v1658 = vrot.slane %v1657, 1
  %v1659 = vmax.f32 %v1657, %v1658
  %v1660 = vsel %vm1386, %v1297, -inf
  %v1661 = vrot.slane %v1660, 4
  %v1662 = vmax.f32 %v1660, %v1661
  %v1663 = vrot.slane %v1662, 2
  %v1664 = vmax.f32 %v1662, %v1663
  %v1665 = vrot.slane %v1664, 1
  %v1666 = vmax.f32 %v1664, %v1665
  %v1667 = vsel %vm1386, %v1298, -inf
  %v1668 = vrot.slane %v1667, 4
  %v1669 = vmax.f32 %v1667, %v1668
  %v1670 = vrot.slane %v1669, 2
  %v1671 = vmax.f32 %v1669, %v1670
  %v1672 = vrot.slane %v1671, 1
  %v1673 = vmax.f32 %v1671, %v1672
  %v1674 = vsel %vm1386, %v1299, -inf
  %v1675 = vrot.slane %v1674, 4
  %v1676 = vmax.f32 %v1674, %v1675
  %v1677 = vrot.slane %v1676, 2
  %v1678 = vmax.f32 %v1676, %v1677
  %v1679 = vrot.slane %v1678, 1
  %v1680 = vmax.f32 %v1678, %v1679
  %v1681 = vsel %vm1386, %v1300, -inf
  %v1682 = vrot.slane %v1681, 4
  %v1683 = vmax.f32 %v1681, %v1682
  %v1684 = vrot.slane %v1683, 2
  %v1685 = vmax.f32 %v1683, %v1684
  %v1686 = vrot.slane %v1685, 1
  %v1687 = vmax.f32 %v1685, %v1686
  %v1688 = vsel %vm1386, %v1301, -inf
  %v1689 = vrot.slane %v1688, 4
  %v1690 = vmax.f32 %v1688, %v1689
  %v1691 = vrot.slane %v1690, 2
  %v1692 = vmax.f32 %v1690, %v1691
  %v1693 = vrot.slane %v1692, 1
  %v1694 = vmax.f32 %v1692, %v1693
  %v1695 = vsel %vm1386, %v1302, -inf
  %v1696 = vrot.slane %v1695, 4
  %v1697 = vmax.f32 %v1695, %v1696
  %v1698 = vrot.slane %v1697, 2
  %v1699 = vmax.f32 %v1697, %v1698
  %v1700 = vrot.slane %v1699, 1
  %v1701 = vmax.f32 %v1699, %v1700
  %v1702 = vsel %vm1386, %v1303, -inf
  %v1703 = vrot.slane %v1702, 4
  %v1704 = vmax.f32 %v1702, %v1703
  %v1705 = vrot.slane %v1704, 2
  %v1706 = vmax.f32 %v1704, %v1705
  %v1707 = vrot.slane %v1706, 1
  %v1708 = vmax.f32 %v1706, %v1707
  %v1709 = vsel %vm1386, %v1304, -inf
  %v1710 = vrot.slane %v1709, 4
  %v1711 = vmax.f32 %v1709, %v1710
  %v1712 = vrot.slane %v1711, 2
  %v1713 = vmax.f32 %v1711, %v1712
  %v1714 = vrot.slane %v1713, 1
  %v1715 = vmax.f32 %v1713, %v1714
  %v1716 = vsel %vm1386, %v1305, -inf
  %v1717 = vrot.slane %v1716, 4
  %v1718 = vmax.f32 %v1716, %v1717
  %v1719 = vrot.slane %v1718, 2
  %v1720 = vmax.f32 %v1718, %v1719
  %v1721 = vrot.slane %v1720, 1
  %v1722 = vmax.f32 %v1720, %v1721
  %v1723 = vsel %vm1386, %v1306, -inf
  %v1724 = vrot.slane %v1723, 4
  %v1725 = vmax.f32 %v1723, %v1724
  %v1726 = vrot.slane %v1725, 2
  %v1727 = vmax.f32 %v1725, %v1726
  %v1728 = vrot.slane %v1727, 1
  %v1729 = vmax.f32 %v1727, %v1728
  %v1730 = vsel %vm1386, %v1307, -inf
  %v1731 = vrot.slane %v1730, 4
  %v1732 = vmax.f32 %v1730, %v1731
  %v1733 = vrot.slane %v1732, 2
  %v1734 = vmax.f32 %v1732, %v1733
  %v1735 = vrot.slane %v1734, 1
  %v1736 = vmax.f32 %v1734, %v1735
  %v1737 = vsel %vm1386, %v1308, -inf
  %v1738 = vrot.slane %v1737, 4
  %v1739 = vmax.f32 %v1737, %v1738
  %v1740 = vrot.slane %v1739, 2
  %v1741 = vmax.f32 %v1739, %v1740
  %v1742 = vrot.slane %v1741, 1
  %v1743 = vmax.f32 %v1741, %v1742
  %v1744 = vsel %vm1386, %v1309, -inf
  %v1745 = vrot.slane %v1744, 4
  %v1746 = vmax.f32 %v1744, %v1745
  %v1747 = vrot.slane %v1746, 2
  %v1748 = vmax.f32 %v1746, %v1747
  %v1749 = vrot.slane %v1748, 1
  %v1750 = vmax.f32 %v1748, %v1749
  %v1751 = vsel %vm1386, %v1310, -inf
  %v1752 = vrot.slane %v1751, 4
  %v1753 = vmax.f32 %v1751, %v1752
  %v1754 = vrot.slane %v1753, 2
  %v1755 = vmax.f32 %v1753, %v1754
  %v1756 = vrot.slane %v1755, 1
  %v1757 = vmax.f32 %v1755, %v1756
  %v1758 = vsel %vm1386, %v1311, -inf
  %v1759 = vrot.slane %v1758, 4
  %v1760 = vmax.f32 %v1758, %v1759
  %v1761 = vrot.slane %v1760, 2
  %v1762 = vmax.f32 %v1760, %v1761
  %v1763 = vrot.slane %v1762, 1
  %v1764 = vmax.f32 %v1762, %v1763
  %v1765 = vsel %vm1386, %v1312, -inf
  %v1766 = vrot.slane %v1765, 4
  %v1767 = vmax.f32 %v1765, %v1766
  %v1768 = vrot.slane %v1767, 2
  %v1769 = vmax.f32 %v1767, %v1768
  %v1770 = vrot.slane %v1769, 1
  %v1771 = vmax.f32 %v1769, %v1770
  %v1772 = vsel %vm1386, %v1313, -inf
  %v1773 = vrot.slane %v1772, 4
  %v1774 = vmax.f32 %v1772, %v1773
  %v1775 = vrot.slane %v1774, 2
  %v1776 = vmax.f32 %v1774, %v1775
  %v1777 = vrot.slane %v1776, 1
  %v1778 = vmax.f32 %v1776, %v1777
  %v1779 = vsel %vm1386, %v1314, -inf
  %v1780 = vrot.slane %v1779, 4
  %v1781 = vmax.f32 %v1779, %v1780
  %v1782 = vrot.slane %v1781, 2
  %v1783 = vmax.f32 %v1781, %v1782
  %v1784 = vrot.slane %v1783, 1
  %v1785 = vmax.f32 %v1783, %v1784
  %v1786 = vsel %vm1386, %v1315, -inf
  %v1787 = vrot.slane %v1786, 4
  %v1788 = vmax.f32 %v1786, %v1787
  %v1789 = vrot.slane %v1788, 2
  %v1790 = vmax.f32 %v1788, %v1789
  %v1791 = vrot.slane %v1790, 1
  %v1792 = vmax.f32 %v1790, %v1791
  %v1793 = vsel %vm1386, %v1316, -inf
  %v1794 = vrot.slane %v1793, 4
  %v1795 = vmax.f32 %v1793, %v1794
  %v1796 = vrot.slane %v1795, 2
  %v1797 = vmax.f32 %v1795, %v1796
  %v1798 = vrot.slane %v1797, 1
  %v1799 = vmax.f32 %v1797, %v1798
  %v1800 = vsel %vm1386, %v1317, -inf
  %v1801 = vrot.slane %v1800, 4
  %v1802 = vmax.f32 %v1800, %v1801
  %v1803 = vrot.slane %v1802, 2
  %v1804 = vmax.f32 %v1802, %v1803
  %v1805 = vrot.slane %v1804, 1
  %v1806 = vmax.f32 %v1804, %v1805
  %v1807 = vsel %vm1386, %v1318, -inf
  %v1808 = vrot.slane %v1807, 4
  %v1809 = vmax.f32 %v1807, %v1808
  %v1810 = vrot.slane %v1809, 2
  %v1811 = vmax.f32 %v1809, %v1810
  %v1812 = vrot.slane %v1811, 1
  %v1813 = vmax.f32 %v1811, %v1812
  %v1814 = vsel %vm1386, %v1319, -inf
  %v1815 = vrot.slane %v1814, 4
  %v1816 = vmax.f32 %v1814, %v1815
  %v1817 = vrot.slane %v1816, 2
  %v1818 = vmax.f32 %v1816, %v1817
  %v1819 = vrot.slane %v1818, 1
  %v1820 = vmax.f32 %v1818, %v1819
  %v1821 = vsel %vm1386, %v1320, -inf
  %v1822 = vrot.slane %v1821, 4
  %v1823 = vmax.f32 %v1821, %v1822
  %v1824 = vrot.slane %v1823, 2
  %v1825 = vmax.f32 %v1823, %v1824
  %v1826 = vrot.slane %v1825, 1
  %v1827 = vmax.f32 %v1825, %v1826
  %v1828 = vsel %vm1386, %v1321, -inf
  %v1829 = vrot.slane %v1828, 4
  %v1830 = vmax.f32 %v1828, %v1829
  %v1831 = vrot.slane %v1830, 2
  %v1832 = vmax.f32 %v1830, %v1831
  %v1833 = vrot.slane %v1832, 1
  %v1834 = vmax.f32 %v1832, %v1833
  %v1835 = vsel %vm1386, %v1322, -inf
  %v1836 = vrot.slane %v1835, 4
  %v1837 = vmax.f32 %v1835, %v1836
  %v1838 = vrot.slane %v1837, 2
  %v1839 = vmax.f32 %v1837, %v1838
  %v1840 = vrot.slane %v1839, 1
  %v1841 = vmax.f32 %v1839, %v1840
  %v1842 = vsel %vm1386, %v1323, -inf
  %v1843 = vrot.slane %v1842, 4
  %v1844 = vmax.f32 %v1842, %v1843
  %v1845 = vrot.slane %v1844, 2
  %v1846 = vmax.f32 %v1844, %v1845
  %v1847 = vrot.slane %v1846, 1
  %v1848 = vmax.f32 %v1846, %v1847
  %v1849 = vsel %vm1386, %v1324, -inf
  %v1850 = vrot.slane %v1849, 4
  %v1851 = vmax.f32 %v1849, %v1850
  %v1852 = vrot.slane %v1851, 2
  %v1853 = vmax.f32 %v1851, %v1852
  %v1854 = vrot.slane %v1853, 1
  %v1855 = vmax.f32 %v1853, %v1854
  %v1856 = vsel %vm1386, %v1325, -inf
  %v1857 = vrot.slane %v1856, 4
  %v1858 = vmax.f32 %v1856, %v1857
  %v1859 = vrot.slane %v1858, 2
  %v1860 = vmax.f32 %v1858, %v1859
  %v1861 = vrot.slane %v1860, 1
  %v1862 = vmax.f32 %v1860, %v1861
  %v1863 = vsel %vm1386, %v1326, -inf
  %v1864 = vrot.slane %v1863, 4
  %v1865 = vmax.f32 %v1863, %v1864
  %v1866 = vrot.slane %v1865, 2
  %v1867 = vmax.f32 %v1865, %v1866
  %v1868 = vrot.slane %v1867, 1
  %v1869 = vmax.f32 %v1867, %v1868
  %v1870 = vsel %vm1386, %v1327, -inf
  %v1871 = vrot.slane %v1870, 4
  %v1872 = vmax.f32 %v1870, %v1871
  %v1873 = vrot.slane %v1872, 2
  %v1874 = vmax.f32 %v1872, %v1873
  %v1875 = vrot.slane %v1874, 1
  %v1876 = vmax.f32 %v1874, %v1875
  %v1877 = vsel %vm1386, %v1328, -inf
  %v1878 = vrot.slane %v1877, 4
  %v1879 = vmax.f32 %v1877, %v1878
  %v1880 = vrot.slane %v1879, 2
  %v1881 = vmax.f32 %v1879, %v1880
  %v1882 = vrot.slane %v1881, 1
  %v1883 = vmax.f32 %v1881, %v1882
  %v1884 = vsel %vm1386, %v1329, -inf
  %v1885 = vrot.slane %v1884, 4
  %v1886 = vmax.f32 %v1884, %v1885
  %v1887 = vrot.slane %v1886, 2
  %v1888 = vmax.f32 %v1886, %v1887
  %v1889 = vrot.slane %v1888, 1
  %v1890 = vmax.f32 %v1888, %v1889
  %v1891 = vsel %vm1386, %v1330, -inf
  %v1892 = vrot.slane %v1891, 4
  %v1893 = vmax.f32 %v1891, %v1892
  %v1894 = vrot.slane %v1893, 2
  %v1895 = vmax.f32 %v1893, %v1894
  %v1896 = vrot.slane %v1895, 1
  %v1897 = vmax.f32 %v1895, %v1896
  %v1898 = vsel %vm1386, %v1331, -inf
  %v1899 = vrot.slane %v1898, 4
  %v1900 = vmax.f32 %v1898, %v1899
  %v1901 = vrot.slane %v1900, 2
  %v1902 = vmax.f32 %v1900, %v1901
  %v1903 = vrot.slane %v1902, 1
  %v1904 = vmax.f32 %v1902, %v1903
  %v1905 = vsel %vm1386, %v1332, -inf
  %v1906 = vrot.slane %v1905, 4
  %v1907 = vmax.f32 %v1905, %v1906
  %v1908 = vrot.slane %v1907, 2
  %v1909 = vmax.f32 %v1907, %v1908
  %v1910 = vrot.slane %v1909, 1
  %v1911 = vmax.f32 %v1909, %v1910
  %v1912 = vsel %vm1386, %v1333, -inf
  %v1913 = vrot.slane %v1912, 4
  %v1914 = vmax.f32 %v1912, %v1913
  %v1915 = vrot.slane %v1914, 2
  %v1916 = vmax.f32 %v1914, %v1915
  %v1917 = vrot.slane %v1916, 1
  %v1918 = vmax.f32 %v1916, %v1917
  %v1919 = vsel %vm1386, %v1334, -inf
  %v1920 = vrot.slane %v1919, 4
  %v1921 = vmax.f32 %v1919, %v1920
  %v1922 = vrot.slane %v1921, 2
  %v1923 = vmax.f32 %v1921, %v1922
  %v1924 = vrot.slane %v1923, 1
  %v1925 = vmax.f32 %v1923, %v1924
  %v1926 = vsel %vm1386, %v1335, -inf
  %v1927 = vrot.slane %v1926, 4
  %v1928 = vmax.f32 %v1926, %v1927
  %v1929 = vrot.slane %v1928, 2
  %v1930 = vmax.f32 %v1928, %v1929
  %v1931 = vrot.slane %v1930, 1
  %v1932 = vmax.f32 %v1930, %v1931
  %v1933 = vsel %vm1386, %v1336, -inf
  %v1934 = vrot.slane %v1933, 4
  %v1935 = vmax.f32 %v1933, %v1934
  %v1936 = vrot.slane %v1935, 2
  %v1937 = vmax.f32 %v1935, %v1936
  %v1938 = vrot.slane %v1937, 1
  %v1939 = vmax.f32 %v1937, %v1938
  %v1940 = vsel %vm1386, %v1337, -inf
  %v1941 = vrot.slane %v1940, 4
  %v1942 = vmax.f32 %v1940, %v1941
  %v1943 = vrot.slane %v1942, 2
  %v1944 = vmax.f32 %v1942, %v1943
  %v1945 = vrot.slane %v1944, 1
  %v1946 = vmax.f32 %v1944, %v1945
  %v1947 = vsel %vm1386, %v1338, -inf
  %v1948 = vrot.slane %v1947, 4
  %v1949 = vmax.f32 %v1947, %v1948
  %v1950 = vrot.slane %v1949, 2
  %v1951 = vmax.f32 %v1949, %v1950
  %v1952 = vrot.slane %v1951, 1
  %v1953 = vmax.f32 %v1951, %v1952
  %v1954 = vsel %vm1386, %v1339, -inf
  %v1955 = vrot.slane %v1954, 4
  %v1956 = vmax.f32 %v1954, %v1955
  %v1957 = vrot.slane %v1956, 2
  %v1958 = vmax.f32 %v1956, %v1957
  %v1959 = vrot.slane %v1958, 1
  %v1960 = vmax.f32 %v1958, %v1959
  %v1961 = vsel %vm1386, %v1340, -inf
  %v1962 = vrot.slane %v1961, 4
  %v1963 = vmax.f32 %v1961, %v1962
  %v1964 = vrot.slane %v1963, 2
  %v1965 = vmax.f32 %v1963, %v1964
  %v1966 = vrot.slane %v1965, 1
  %v1967 = vmax.f32 %v1965, %v1966
  %v1968 = vsel %vm1386, %v1341, -inf
  %v1969 = vrot.slane %v1968, 4
  %v1970 = vmax.f32 %v1968, %v1969
  %v1971 = vrot.slane %v1970, 2
  %v1972 = vmax.f32 %v1970, %v1971
  %v1973 = vrot.slane %v1972, 1
  %v1974 = vmax.f32 %v1972, %v1973
  %v1975 = vsel %vm1386, %v1342, -inf
  %v1976 = vrot.slane %v1975, 4
  %v1977 = vmax.f32 %v1975, %v1976
  %v1978 = vrot.slane %v1977, 2
  %v1979 = vmax.f32 %v1977, %v1978
  %v1980 = vrot.slane %v1979, 1
  %v1981 = vmax.f32 %v1979, %v1980
  %v1982 = vsel %vm1386, %v1343, -inf
  %v1983 = vrot.slane %v1982, 4
  %v1984 = vmax.f32 %v1982, %v1983
  %v1985 = vrot.slane %v1984, 2
  %v1986 = vmax.f32 %v1984, %v1985
  %v1987 = vrot.slane %v1986, 1
  %v1988 = vmax.f32 %v1986, %v1987
  %v1989 = vsel %vm1386, %v1344, -inf
  %v1990 = vrot.slane %v1989, 4
  %v1991 = vmax.f32 %v1989, %v1990
  %v1992 = vrot.slane %v1991, 2
  %v1993 = vmax.f32 %v1991, %v1992
  %v1994 = vrot.slane %v1993, 1
  %v1995 = vmax.f32 %v1993, %v1994
  %v1996 = vsel %vm1386, %v1345, -inf
  %v1997 = vrot.slane %v1996, 4
  %v1998 = vmax.f32 %v1996, %v1997
  %v1999 = vrot.slane %v1998, 2
  %v2000 = vmax.f32 %v1998, %v1999
  %v2001 = vrot.slane %v2000, 1
  %v2002 = vmax.f32 %v2000, %v2001
  %v2003 = vsel %vm1386, %v1346, -inf
  %v2004 = vrot.slane %v2003, 4
  %v2005 = vmax.f32 %v2003, %v2004
  %v2006 = vrot.slane %v2005, 2
  %v2007 = vmax.f32 %v2005, %v2006
  %v2008 = vrot.slane %v2007, 1
  %v2009 = vmax.f32 %v2007, %v2008
  %v2010 = vsel %vm1386, %v1347, -inf
  %v2011 = vrot.slane %v2010, 4
  %v2012 = vmax.f32 %v2010, %v2011
  %v2013 = vrot.slane %v2012, 2
  %v2014 = vmax.f32 %v2012, %v2013
  %v2015 = vrot.slane %v2014, 1
  %v2016 = vmax.f32 %v2014, %v2015
  %v2017 = vsel %vm1386, %v1348, -inf
  %v2018 = vrot.slane %v2017, 4
  %v2019 = vmax.f32 %v2017, %v2018
  %v2020 = vrot.slane %v2019, 2
  %v2021 = vmax.f32 %v2019, %v2020
  %v2022 = vrot.slane %v2021, 1
  %v2023 = vmax.f32 %v2021, %v2022
  %v2024 = vsel %vm1386, %v1349, -inf
  %v2025 = vrot.slane %v2024, 4
  %v2026 = vmax.f32 %v2024, %v2025
  %v2027 = vrot.slane %v2026, 2
  %v2028 = vmax.f32 %v2026, %v2027
  %v2029 = vrot.slane %v2028, 1
  %v2030 = vmax.f32 %v2028, %v2029
  %v2031 = vsel %vm1386, %v1350, -inf
  %v2032 = vrot.slane %v2031, 4
  %v2033 = vmax.f32 %v2031, %v2032
  %v2034 = vrot.slane %v2033, 2
  %v2035 = vmax.f32 %v2033, %v2034
  %v2036 = vrot.slane %v2035, 1
  %v2037 = vmax.f32 %v2035, %v2036
  %v2038 = vsel %vm1386, %v1351, -inf
  %v2039 = vrot.slane %v2038, 4
  %v2040 = vmax.f32 %v2038, %v2039
  %v2041 = vrot.slane %v2040, 2
  %v2042 = vmax.f32 %v2040, %v2041
  %v2043 = vrot.slane %v2042, 1
  %v2044 = vmax.f32 %v2042, %v2043
  %v2045 = vsel %vm1386, %v1352, -inf
  %v2046 = vrot.slane %v2045, 4
  %v2047 = vmax.f32 %v2045, %v2046
  %v2048 = vrot.slane %v2047, 2
  %v2049 = vmax.f32 %v2047, %v2048
  %v2050 = vrot.slane %v2049, 1
  %v2051 = vmax.f32 %v2049, %v2050
  %v2052 = vsel %vm1386, %v1353, -inf
  %v2053 = vrot.slane %v2052, 4
  %v2054 = vmax.f32 %v2052, %v2053
  %v2055 = vrot.slane %v2054, 2
  %v2056 = vmax.f32 %v2054, %v2055
  %v2057 = vrot.slane %v2056, 1
  %v2058 = vmax.f32 %v2056, %v2057
  %v2059 = vsel %vm1386, %v1354, -inf
  %v2060 = vrot.slane %v2059, 4
  %v2061 = vmax.f32 %v2059, %v2060
  %v2062 = vrot.slane %v2061, 2
  %v2063 = vmax.f32 %v2061, %v2062
  %v2064 = vrot.slane %v2063, 1
  %v2065 = vmax.f32 %v2063, %v2064
  %v2066 = vsel %vm1386, %v1355, -inf
  %v2067 = vrot.slane %v2066, 4
  %v2068 = vmax.f32 %v2066, %v2067
  %v2069 = vrot.slane %v2068, 2
  %v2070 = vmax.f32 %v2068, %v2069
  %v2071 = vrot.slane %v2070, 1
  %v2072 = vmax.f32 %v2070, %v2071
  %v2073 = vsel %vm1386, %v1356, -inf
  %v2074 = vrot.slane %v2073, 4
  %v2075 = vmax.f32 %v2073, %v2074
  %v2076 = vrot.slane %v2075, 2
  %v2077 = vmax.f32 %v2075, %v2076
  %v2078 = vrot.slane %v2077, 1
  %v2079 = vmax.f32 %v2077, %v2078
  %v2080 = vsel %vm1386, %v1357, -inf
  %v2081 = vrot.slane %v2080, 4
  %v2082 = vmax.f32 %v2080, %v2081
  %v2083 = vrot.slane %v2082, 2
  %v2084 = vmax.f32 %v2082, %v2083
  %v2085 = vrot.slane %v2084, 1
  %v2086 = vmax.f32 %v2084, %v2085
  %v2087 = vsel %vm1386, %v1358, -inf
  %v2088 = vrot.slane %v2087, 4
  %v2089 = vmax.f32 %v2087, %v2088
  %v2090 = vrot.slane %v2089, 2
  %v2091 = vmax.f32 %v2089, %v2090
  %v2092 = vrot.slane %v2091, 1
  %v2093 = vmax.f32 %v2091, %v2092
  %v2094 = vsel %vm1386, %v1359, -inf
  %v2095 = vrot.slane %v2094, 4
  %v2096 = vmax.f32 %v2094, %v2095
  %v2097 = vrot.slane %v2096, 2
  %v2098 = vmax.f32 %v2096, %v2097
  %v2099 = vrot.slane %v2098, 1
  %v2100 = vmax.f32 %v2098, %v2099
  %v2101 = vsel %vm1386, %v1360, -inf
  %v2102 = vrot.slane %v2101, 4
  %v2103 = vmax.f32 %v2101, %v2102
  %v2104 = vrot.slane %v2103, 2
  %v2105 = vmax.f32 %v2103, %v2104
  %v2106 = vrot.slane %v2105, 1
  %v2107 = vmax.f32 %v2105, %v2106
  %v2108 = vsel %vm1386, %v1361, -inf
  %v2109 = vrot.slane %v2108, 4
  %v2110 = vmax.f32 %v2108, %v2109
  %v2111 = vrot.slane %v2110, 2
  %v2112 = vmax.f32 %v2110, %v2111
  %v2113 = vrot.slane %v2112, 1
  %v2114 = vmax.f32 %v2112, %v2113
  %v2115 = vsel %vm1386, %v1362, -inf
  %v2116 = vrot.slane %v2115, 4
  %v2117 = vmax.f32 %v2115, %v2116
  %v2118 = vrot.slane %v2117, 2
  %v2119 = vmax.f32 %v2117, %v2118
  %v2120 = vrot.slane %v2119, 1
  %v2121 = vmax.f32 %v2119, %v2120
  %v2122 = vsel %vm1386, %v1363, -inf
  %v2123 = vrot.slane %v2122, 4
  %v2124 = vmax.f32 %v2122, %v2123
  %v2125 = vrot.slane %v2124, 2
  %v2126 = vmax.f32 %v2124, %v2125
  %v2127 = vrot.slane %v2126, 1
  %v2128 = vmax.f32 %v2126, %v2127
  %v2129 = vsel %vm1386, %v1364, -inf
  %v2130 = vrot.slane %v2129, 4
  %v2131 = vmax.f32 %v2129, %v2130
  %v2132 = vrot.slane %v2131, 2
  %v2133 = vmax.f32 %v2131, %v2132
  %v2134 = vrot.slane %v2133, 1
  %v2135 = vmax.f32 %v2133, %v2134
  %v2136 = vsel %vm1386, %v1365, -inf
  %v2137 = vrot.slane %v2136, 4
  %v2138 = vmax.f32 %v2136, %v2137
  %v2139 = vrot.slane %v2138, 2
  %v2140 = vmax.f32 %v2138, %v2139
  %v2141 = vrot.slane %v2140, 1
  %v2142 = vmax.f32 %v2140, %v2141
  %v2143 = vsel %vm1386, %v1366, -inf
  %v2144 = vrot.slane %v2143, 4
  %v2145 = vmax.f32 %v2143, %v2144
  %v2146 = vrot.slane %v2145, 2
  %v2147 = vmax.f32 %v2145, %v2146
  %v2148 = vrot.slane %v2147, 1
  %v2149 = vmax.f32 %v2147, %v2148
  %v2150 = vsel %vm1386, %v1367, -inf
  %v2151 = vrot.slane %v2150, 4
  %v2152 = vmax.f32 %v2150, %v2151
  %v2153 = vrot.slane %v2152, 2
  %v2154 = vmax.f32 %v2152, %v2153
  %v2155 = vrot.slane %v2154, 1
  %v2156 = vmax.f32 %v2154, %v2155
  %v2157 = vsel %vm1386, %v1368, -inf
  %v2158 = vrot.slane %v2157, 4
  %v2159 = vmax.f32 %v2157, %v2158
  %v2160 = vrot.slane %v2159, 2
  %v2161 = vmax.f32 %v2159, %v2160
  %v2162 = vrot.slane %v2161, 1
  %v2163 = vmax.f32 %v2161, %v2162
  %v2164 = vsel %vm1386, %v1369, -inf
  %v2165 = vrot.slane %v2164, 4
  %v2166 = vmax.f32 %v2164, %v2165
  %v2167 = vrot.slane %v2166, 2
  %v2168 = vmax.f32 %v2166, %v2167
  %v2169 = vrot.slane %v2168, 1
  %v2170 = vmax.f32 %v2168, %v2169
  %v2171 = vsel %vm1386, %v1370, -inf
  %v2172 = vrot.slane %v2171, 4
  %v2173 = vmax.f32 %v2171, %v2172
  %v2174 = vrot.slane %v2173, 2
  %v2175 = vmax.f32 %v2173, %v2174
  %v2176 = vrot.slane %v2175, 1
  %v2177 = vmax.f32 %v2175, %v2176
  %v2178 = vsel %vm1386, %v1371, -inf
  %v2179 = vrot.slane %v2178, 4
  %v2180 = vmax.f32 %v2178, %v2179
  %v2181 = vrot.slane %v2180, 2
  %v2182 = vmax.f32 %v2180, %v2181
  %v2183 = vrot.slane %v2182, 1
  %v2184 = vmax.f32 %v2182, %v2183
  %v2185 = vsel %vm1386, %v1372, -inf
  %v2186 = vrot.slane %v2185, 4
  %v2187 = vmax.f32 %v2185, %v2186
  %v2188 = vrot.slane %v2187, 2
  %v2189 = vmax.f32 %v2187, %v2188
  %v2190 = vrot.slane %v2189, 1
  %v2191 = vmax.f32 %v2189, %v2190
  %v2192 = vsel %vm1386, %v1373, -inf
  %v2193 = vrot.slane %v2192, 4
  %v2194 = vmax.f32 %v2192, %v2193
  %v2195 = vrot.slane %v2194, 2
  %v2196 = vmax.f32 %v2194, %v2195
  %v2197 = vrot.slane %v2196, 1
  %v2198 = vmax.f32 %v2196, %v2197
  %v2199 = vsel %vm1386, %v1374, -inf
  %v2200 = vrot.slane %v2199, 4
  %v2201 = vmax.f32 %v2199, %v2200
  %v2202 = vrot.slane %v2201, 2
  %v2203 = vmax.f32 %v2201, %v2202
  %v2204 = vrot.slane %v2203, 1
  %v2205 = vmax.f32 %v2203, %v2204
  %v2206 = vsel %vm1386, %v1375, -inf
  %v2207 = vrot.slane %v2206, 4
  %v2208 = vmax.f32 %v2206, %v2207
  %v2209 = vrot.slane %v2208, 2
  %v2210 = vmax.f32 %v2208, %v2209
  %v2211 = vrot.slane %v2210, 1
  %v2212 = vmax.f32 %v2210, %v2211
  %v2213 = vsel %vm1386, %v1376, -inf
  %v2214 = vrot.slane %v2213, 4
  %v2215 = vmax.f32 %v2213, %v2214
  %v2216 = vrot.slane %v2215, 2
  %v2217 = vmax.f32 %v2215, %v2216
  %v2218 = vrot.slane %v2217, 1
  %v2219 = vmax.f32 %v2217, %v2218
  %v2220 = vsel %vm1386, %v1377, -inf
  %v2221 = vrot.slane %v2220, 4
  %v2222 = vmax.f32 %v2220, %v2221
  %v2223 = vrot.slane %v2222, 2
  %v2224 = vmax.f32 %v2222, %v2223
  %v2225 = vrot.slane %v2224, 1
  %v2226 = vmax.f32 %v2224, %v2225
  %v2227 = vsel %vm1386, %v1378, -inf
  %v2228 = vrot.slane %v2227, 4
  %v2229 = vmax.f32 %v2227, %v2228
  %v2230 = vrot.slane %v2229, 2
  %v2231 = vmax.f32 %v2229, %v2230
  %v2232 = vrot.slane %v2231, 1
  %v2233 = vmax.f32 %v2231, %v2232
  %v2234 = vsel %vm1386, %v1379, -inf
  %v2235 = vrot.slane %v2234, 4
  %v2236 = vmax.f32 %v2234, %v2235
  %v2237 = vrot.slane %v2236, 2
  %v2238 = vmax.f32 %v2236, %v2237
  %v2239 = vrot.slane %v2238, 1
  %v2240 = vmax.f32 %v2238, %v2239
  %v2241 = vsel %vm1386, %v1380, -inf
  %v2242 = vrot.slane %v2241, 4
  %v2243 = vmax.f32 %v2241, %v2242
  %v2244 = vrot.slane %v2243, 2
  %v2245 = vmax.f32 %v2243, %v2244
  %v2246 = vrot.slane %v2245, 1
  %v2247 = vmax.f32 %v2245, %v2246
  %v2248 = vsel %vm1386, %v1381, -inf
  %v2249 = vrot.slane %v2248, 4
  %v2250 = vmax.f32 %v2248, %v2249
  %v2251 = vrot.slane %v2250, 2
  %v2252 = vmax.f32 %v2250, %v2251
  %v2253 = vrot.slane %v2252, 1
  %v2254 = vmax.f32 %v2252, %v2253
  %v2255 = vsel %vm1386, %v1382, -inf
  %v2256 = vrot.slane %v2255, 4
  %v2257 = vmax.f32 %v2255, %v2256
  %v2258 = vrot.slane %v2257, 2
  %v2259 = vmax.f32 %v2257, %v2258
  %v2260 = vrot.slane %v2259, 1
  %v2261 = vmax.f32 %v2259, %v2260
  %v2262 = vsel %vm1386, %v1383, -inf
  %v2263 = vrot.slane %v2262, 4
  %v2264 = vmax.f32 %v2262, %v2263
  %v2265 = vrot.slane %v2264, 2
  %v2266 = vmax.f32 %v2264, %v2265
  %v2267 = vrot.slane %v2266, 1
  %v2268 = vmax.f32 %v2266, %v2267
  %v2269 = vsel %vm1386, %v1384, -inf
  %v2270 = vrot.slane %v2269, 4
  %v2271 = vmax.f32 %v2269, %v2270
  %v2272 = vrot.slane %v2271, 2
  %v2273 = vmax.f32 %v2271, %v2272
  %v2274 = vrot.slane %v2273, 1
  %v2275 = vmax.f32 %v2273, %v2274
  %v2276 = vsel %vm1386, %v1385, -inf
  %v2277 = vrot.slane %v2276, 4
  %v2278 = vmax.f32 %v2276, %v2277
  %v2279 = vrot.slane %v2278, 2
  %v2280 = vmax.f32 %v2278, %v2279
  %v2281 = vrot.slane %v2280, 1
  %v2282 = vmax.f32 %v2280, %v2281
  %v2283 = vpack.c.bf16 %v1393, %v1393
  %v2284 = vpack.c.bf16 %v1400, %v1400
  %v2285 = vpack.c.bf16 %v1407, %v1407
  %v2286 = vpack.c.bf16 %v1414, %v1414
  %v2287 = vpack.c.bf16 %v1421, %v1421
  %v2288 = vpack.c.bf16 %v1428, %v1428
  %v2289 = vpack.c.bf16 %v1435, %v1435
  %v2290 = vpack.c.bf16 %v1442, %v1442
  %v2291 = vpack.c.bf16 %v1449, %v1449
  %v2292 = vpack.c.bf16 %v1456, %v1456
  %v2293 = vpack.c.bf16 %v1463, %v1463
  %v2294 = vpack.c.bf16 %v1470, %v1470
  %v2295 = vpack.c.bf16 %v1477, %v1477
  %v2296 = vpack.c.bf16 %v1484, %v1484
  %v2297 = vpack.c.bf16 %v1491, %v1491
  %v2298 = vpack.c.bf16 %v1498, %v1498
  %v2299 = vpack.c.bf16 %v1505, %v1505
  %v2300 = vpack.c.bf16 %v1512, %v1512
  %v2301 = vpack.c.bf16 %v1519, %v1519
  %v2302 = vpack.c.bf16 %v1526, %v1526
  %v2303 = vpack.c.bf16 %v1533, %v1533
  %v2304 = vpack.c.bf16 %v1540, %v1540
  %v2305 = vpack.c.bf16 %v1547, %v1547
  %v2306 = vpack.c.bf16 %v1554, %v1554
  %v2307 = vpack.c.bf16 %v1561, %v1561
  %v2308 = vpack.c.bf16 %v1568, %v1568
  %v2309 = vpack.c.bf16 %v1575, %v1575
  %v2310 = vpack.c.bf16 %v1582, %v1582
  %v2311 = vpack.c.bf16 %v1589, %v1589
  %v2312 = vpack.c.bf16 %v1596, %v1596
  %v2313 = vpack.c.bf16 %v1603, %v1603
  %v2314 = vpack.c.bf16 %v1610, %v1610
  %v2315 = vpack.c.bf16 %v1617, %v1617
  %v2316 = vpack.c.bf16 %v1624, %v1624
  %v2317 = vpack.c.bf16 %v1631, %v1631
  %v2318 = vpack.c.bf16 %v1638, %v1638
  %v2319 = vpack.c.bf16 %v1645, %v1645
  %v2320 = vpack.c.bf16 %v1652, %v1652
  %v2321 = vpack.c.bf16 %v1659, %v1659
  %v2322 = vpack.c.bf16 %v1666, %v1666
  %v2323 = vpack.c.bf16 %v1673, %v1673
  %v2324 = vpack.c.bf16 %v1680, %v1680
  %v2325 = vpack.c.bf16 %v1687, %v1687
  %v2326 = vpack.c.bf16 %v1694, %v1694
  %v2327 = vpack.c.bf16 %v1701, %v1701
  %v2328 = vpack.c.bf16 %v1708, %v1708
  %v2329 = vpack.c.bf16 %v1715, %v1715
  %v2330 = vpack.c.bf16 %v1722, %v1722
  %v2331 = vpack.c.bf16 %v1729, %v1729
  %v2332 = vpack.c.bf16 %v1736, %v1736
  %v2333 = vpack.c.bf16 %v1743, %v1743
  %v2334 = vpack.c.bf16 %v1750, %v1750
  %v2335 = vpack.c.bf16 %v1757, %v1757
  %v2336 = vpack.c.bf16 %v1764, %v1764
  %v2337 = vpack.c.bf16 %v1771, %v1771
  %v2338 = vpack.c.bf16 %v1778, %v1778
  %v2339 = vpack.c.bf16 %v1785, %v1785
  %v2340 = vpack.c.bf16 %v1792, %v1792
  %v2341 = vpack.c.bf16 %v1799, %v1799
  %v2342 = vpack.c.bf16 %v1806, %v1806
  %v2343 = vpack.c.bf16 %v1813, %v1813
  %v2344 = vpack.c.bf16 %v1820, %v1820
  %v2345 = vpack.c.bf16 %v1827, %v1827
  %v2346 = vpack.c.bf16 %v1834, %v1834
  %v2347 = vpack.c.bf16 %v1841, %v1841
  %v2348 = vpack.c.bf16 %v1848, %v1848
  %v2349 = vpack.c.bf16 %v1855, %v1855
  %v2350 = vpack.c.bf16 %v1862, %v1862
  %v2351 = vpack.c.bf16 %v1869, %v1869
  %v2352 = vpack.c.bf16 %v1876, %v1876
  %v2353 = vpack.c.bf16 %v1883, %v1883
  %v2354 = vpack.c.bf16 %v1890, %v1890
  %v2355 = vpack.c.bf16 %v1897, %v1897
  %v2356 = vpack.c.bf16 %v1904, %v1904
  %v2357 = vpack.c.bf16 %v1911, %v1911
  %v2358 = vpack.c.bf16 %v1918, %v1918
  %v2359 = vpack.c.bf16 %v1925, %v1925
  %v2360 = vpack.c.bf16 %v1932, %v1932
  %v2361 = vpack.c.bf16 %v1939, %v1939
  %v2362 = vpack.c.bf16 %v1946, %v1946
  %v2363 = vpack.c.bf16 %v1953, %v1953
  %v2364 = vpack.c.bf16 %v1960, %v1960
  %v2365 = vpack.c.bf16 %v1967, %v1967
  %v2366 = vpack.c.bf16 %v1974, %v1974
  %v2367 = vpack.c.bf16 %v1981, %v1981
  %v2368 = vpack.c.bf16 %v1988, %v1988
  %v2369 = vpack.c.bf16 %v1995, %v1995
  %v2370 = vpack.c.bf16 %v2002, %v2002
  %v2371 = vpack.c.bf16 %v2009, %v2009
  %v2372 = vpack.c.bf16 %v2016, %v2016
  %v2373 = vpack.c.bf16 %v2023, %v2023
  %v2374 = vpack.c.bf16 %v2030, %v2030
  %v2375 = vpack.c.bf16 %v2037, %v2037
  %v2376 = vpack.c.bf16 %v2044, %v2044
  %v2377 = vpack.c.bf16 %v2051, %v2051
  %v2378 = vpack.c.bf16 %v2058, %v2058
  %v2379 = vpack.c.bf16 %v2065, %v2065
  %v2380 = vpack.c.bf16 %v2072, %v2072
  %v2381 = vpack.c.bf16 %v2079, %v2079
  %v2382 = vpack.c.bf16 %v2086, %v2086
  %v2383 = vpack.c.bf16 %v2093, %v2093
  %v2384 = vpack.c.bf16 %v2100, %v2100
  %v2385 = vpack.c.bf16 %v2107, %v2107
  %v2386 = vpack.c.bf16 %v2114, %v2114
  %v2387 = vpack.c.bf16 %v2121, %v2121
  %v2388 = vpack.c.bf16 %v2128, %v2128
  %v2389 = vpack.c.bf16 %v2135, %v2135
  %v2390 = vpack.c.bf16 %v2142, %v2142
  %v2391 = vpack.c.bf16 %v2149, %v2149
  %v2392 = vpack.c.bf16 %v2156, %v2156
  %v2393 = vpack.c.bf16 %v2163, %v2163
  %v2394 = vpack.c.bf16 %v2170, %v2170
  %v2395 = vpack.c.bf16 %v2177, %v2177
  %v2396 = vpack.c.bf16 %v2184, %v2184
  %v2397 = vpack.c.bf16 %v2191, %v2191
  %v2398 = vpack.c.bf16 %v2198, %v2198
  %v2399 = vpack.c.bf16 %v2205, %v2205
  %v2400 = vpack.c.bf16 %v2212, %v2212
  %v2401 = vpack.c.bf16 %v2219, %v2219
  %v2402 = vpack.c.bf16 %v2226, %v2226
  %v2403 = vpack.c.bf16 %v2233, %v2233
  %v2404 = vpack.c.bf16 %v2240, %v2240
  %v2405 = vpack.c.bf16 %v2247, %v2247
  %v2406 = vpack.c.bf16 %v2254, %v2254
  %v2407 = vpack.c.bf16 %v2261, %v2261
  %v2408 = vpack.c.bf16 %v2268, %v2268
  %v2409 = vpack.c.bf16 %v2275, %v2275
  %v2410 = vpack.c.bf16 %v2282, %v2282
  %v2539 = vunpack.c.l.b16 %v2283
  %v2540 = vunpack.c.l.b16 %v2284
  %v2541 = vunpack.c.l.b16 %v2285
  %v2542 = vunpack.c.l.b16 %v2286
  %v2543 = vunpack.c.l.b16 %v2287
  %v2544 = vunpack.c.l.b16 %v2288
  %v2545 = vunpack.c.l.b16 %v2289
  %v2546 = vunpack.c.l.b16 %v2290
  %v2547 = vunpack.c.l.b16 %v2291
  %v2548 = vunpack.c.l.b16 %v2292
  %v2549 = vunpack.c.l.b16 %v2293
  %v2550 = vunpack.c.l.b16 %v2294
  %v2551 = vunpack.c.l.b16 %v2295
  %v2552 = vunpack.c.l.b16 %v2296
  %v2553 = vunpack.c.l.b16 %v2297
  %v2554 = vunpack.c.l.b16 %v2298
  %v2555 = vunpack.c.l.b16 %v2299
  %v2556 = vunpack.c.l.b16 %v2300
  %v2557 = vunpack.c.l.b16 %v2301
  %v2558 = vunpack.c.l.b16 %v2302
  %v2559 = vunpack.c.l.b16 %v2303
  %v2560 = vunpack.c.l.b16 %v2304
  %v2561 = vunpack.c.l.b16 %v2305
  %v2562 = vunpack.c.l.b16 %v2306
  %v2563 = vunpack.c.l.b16 %v2307
  %v2564 = vunpack.c.l.b16 %v2308
  %v2565 = vunpack.c.l.b16 %v2309
  %v2566 = vunpack.c.l.b16 %v2310
  %v2567 = vunpack.c.l.b16 %v2311
  %v2568 = vunpack.c.l.b16 %v2312
  %v2569 = vunpack.c.l.b16 %v2313
  %v2570 = vunpack.c.l.b16 %v2314
  %v2571 = vunpack.c.l.b16 %v2315
  %v2572 = vunpack.c.l.b16 %v2316
  %v2573 = vunpack.c.l.b16 %v2317
  %v2574 = vunpack.c.l.b16 %v2318
  %v2575 = vunpack.c.l.b16 %v2319
  %v2576 = vunpack.c.l.b16 %v2320
  %v2577 = vunpack.c.l.b16 %v2321
  %v2578 = vunpack.c.l.b16 %v2322
  %v2579 = vunpack.c.l.b16 %v2323
  %v2580 = vunpack.c.l.b16 %v2324
  %v2581 = vunpack.c.l.b16 %v2325
  %v2582 = vunpack.c.l.b16 %v2326
  %v2583 = vunpack.c.l.b16 %v2327
  %v2584 = vunpack.c.l.b16 %v2328
  %v2585 = vunpack.c.l.b16 %v2329
  %v2586 = vunpack.c.l.b16 %v2330
  %v2587 = vunpack.c.l.b16 %v2331
  %v2588 = vunpack.c.l.b16 %v2332
  %v2589 = vunpack.c.l.b16 %v2333
  %v2590 = vunpack.c.l.b16 %v2334
  %v2591 = vunpack.c.l.b16 %v2335
  %v2592 = vunpack.c.l.b16 %v2336
  %v2593 = vunpack.c.l.b16 %v2337
  %v2594 = vunpack.c.l.b16 %v2338
  %v2595 = vunpack.c.l.b16 %v2339
  %v2596 = vunpack.c.l.b16 %v2340
  %v2597 = vunpack.c.l.b16 %v2341
  %v2598 = vunpack.c.l.b16 %v2342
  %v2599 = vunpack.c.l.b16 %v2343
  %v2600 = vunpack.c.l.b16 %v2344
  %v2601 = vunpack.c.l.b16 %v2345
  %v2602 = vunpack.c.l.b16 %v2346
  %v2603 = vunpack.c.l.b16 %v2347
  %v2604 = vunpack.c.l.b16 %v2348
  %v2605 = vunpack.c.l.b16 %v2349
  %v2606 = vunpack.c.l.b16 %v2350
  %v2607 = vunpack.c.l.b16 %v2351
  %v2608 = vunpack.c.l.b16 %v2352
  %v2609 = vunpack.c.l.b16 %v2353
  %v2610 = vunpack.c.l.b16 %v2354
  %v2611 = vunpack.c.l.b16 %v2355
  %v2612 = vunpack.c.l.b16 %v2356
  %v2613 = vunpack.c.l.b16 %v2357
  %v2614 = vunpack.c.l.b16 %v2358
  %v2615 = vunpack.c.l.b16 %v2359
  %v2616 = vunpack.c.l.b16 %v2360
  %v2617 = vunpack.c.l.b16 %v2361
  %v2618 = vunpack.c.l.b16 %v2362
  %v2619 = vunpack.c.l.b16 %v2363
  %v2620 = vunpack.c.l.b16 %v2364
  %v2621 = vunpack.c.l.b16 %v2365
  %v2622 = vunpack.c.l.b16 %v2366
  %v2623 = vunpack.c.l.b16 %v2367
  %v2624 = vunpack.c.l.b16 %v2368
  %v2625 = vunpack.c.l.b16 %v2369
  %v2626 = vunpack.c.l.b16 %v2370
  %v2627 = vunpack.c.l.b16 %v2371
  %v2628 = vunpack.c.l.b16 %v2372
  %v2629 = vunpack.c.l.b16 %v2373
  %v2630 = vunpack.c.l.b16 %v2374
  %v2631 = vunpack.c.l.b16 %v2375
  %v2632 = vunpack.c.l.b16 %v2376
  %v2633 = vunpack.c.l.b16 %v2377
  %v2634 = vunpack.c.l.b16 %v2378
  %v2635 = vunpack.c.l.b16 %v2379
  %v2636 = vunpack.c.l.b16 %v2380
  %v2637 = vunpack.c.l.b16 %v2381
  %v2638 = vunpack.c.l.b16 %v2382
  %v2639 = vunpack.c.l.b16 %v2383
  %v2640 = vunpack.c.l.b16 %v2384
  %v2641 = vunpack.c.l.b16 %v2385
  %v2642 = vunpack.c.l.b16 %v2386
  %v2643 = vunpack.c.l.b16 %v2387
  %v2644 = vunpack.c.l.b16 %v2388
  %v2645 = vunpack.c.l.b16 %v2389
  %v2646 = vunpack.c.l.b16 %v2390
  %v2647 = vunpack.c.l.b16 %v2391
  %v2648 = vunpack.c.l.b16 %v2392
  %v2649 = vunpack.c.l.b16 %v2393
  %v2650 = vunpack.c.l.b16 %v2394
  %v2651 = vunpack.c.l.b16 %v2395
  %v2652 = vunpack.c.l.b16 %v2396
  %v2653 = vunpack.c.l.b16 %v2397
  %v2654 = vunpack.c.l.b16 %v2398
  %v2655 = vunpack.c.l.b16 %v2399
  %v2656 = vunpack.c.l.b16 %v2400
  %v2657 = vunpack.c.l.b16 %v2401
  %v2658 = vunpack.c.l.b16 %v2402
  %v2659 = vunpack.c.l.b16 %v2403
  %v2660 = vunpack.c.l.b16 %v2404
  %v2661 = vunpack.c.l.b16 %v2405
  %v2662 = vunpack.c.l.b16 %v2406
  %v2663 = vunpack.c.l.b16 %v2407
  %v2664 = vunpack.c.l.b16 %v2408
  %v2665 = vunpack.c.l.b16 %v2409
  %v2666 = vunpack.c.l.b16 %v2410
  %v2667 = vpack.c.b16 %v2539, %v2539
  %v2668 = vpack.c.b16 %v2540, %v2540
  %v2669 = vpack.c.b16 %v2541, %v2541
  %v2670 = vpack.c.b16 %v2542, %v2542
  %v2671 = vpack.c.b16 %v2543, %v2543
  %v2672 = vpack.c.b16 %v2544, %v2544
  %v2673 = vpack.c.b16 %v2545, %v2545
  %v2674 = vpack.c.b16 %v2546, %v2546
  %v2675 = vpack.c.b16 %v2547, %v2547
  %v2676 = vpack.c.b16 %v2548, %v2548
  %v2677 = vpack.c.b16 %v2549, %v2549
  %v2678 = vpack.c.b16 %v2550, %v2550
  %v2679 = vpack.c.b16 %v2551, %v2551
  %v2680 = vpack.c.b16 %v2552, %v2552
  %v2681 = vpack.c.b16 %v2553, %v2553
  %v2682 = vpack.c.b16 %v2554, %v2554
  %v2683 = vpack.c.b16 %v2555, %v2555
  %v2684 = vpack.c.b16 %v2556, %v2556
  %v2685 = vpack.c.b16 %v2557, %v2557
  %v2686 = vpack.c.b16 %v2558, %v2558
  %v2687 = vpack.c.b16 %v2559, %v2559
  %v2688 = vpack.c.b16 %v2560, %v2560
  %v2689 = vpack.c.b16 %v2561, %v2561
  %v2690 = vpack.c.b16 %v2562, %v2562
  %v2691 = vpack.c.b16 %v2563, %v2563
  %v2692 = vpack.c.b16 %v2564, %v2564
  %v2693 = vpack.c.b16 %v2565, %v2565
  %v2694 = vpack.c.b16 %v2566, %v2566
  %v2695 = vpack.c.b16 %v2567, %v2567
  %v2696 = vpack.c.b16 %v2568, %v2568
  %v2697 = vpack.c.b16 %v2569, %v2569
  %v2698 = vpack.c.b16 %v2570, %v2570
  %v2699 = vpack.c.b16 %v2571, %v2571
  %v2700 = vpack.c.b16 %v2572, %v2572
  %v2701 = vpack.c.b16 %v2573, %v2573
  %v2702 = vpack.c.b16 %v2574, %v2574
  %v2703 = vpack.c.b16 %v2575, %v2575
  %v2704 = vpack.c.b16 %v2576, %v2576
  %v2705 = vpack.c.b16 %v2577, %v2577
  %v2706 = vpack.c.b16 %v2578, %v2578
  %v2707 = vpack.c.b16 %v2579, %v2579
  %v2708 = vpack.c.b16 %v2580, %v2580
  %v2709 = vpack.c.b16 %v2581, %v2581
  %v2710 = vpack.c.b16 %v2582, %v2582
  %v2711 = vpack.c.b16 %v2583, %v2583
  %v2712 = vpack.c.b16 %v2584, %v2584
  %v2713 = vpack.c.b16 %v2585, %v2585
  %v2714 = vpack.c.b16 %v2586, %v2586
  %v2715 = vpack.c.b16 %v2587, %v2587
  %v2716 = vpack.c.b16 %v2588, %v2588
  %v2717 = vpack.c.b16 %v2589, %v2589
  %v2718 = vpack.c.b16 %v2590, %v2590
  %v2719 = vpack.c.b16 %v2591, %v2591
  %v2720 = vpack.c.b16 %v2592, %v2592
  %v2721 = vpack.c.b16 %v2593, %v2593
  %v2722 = vpack.c.b16 %v2594, %v2594
  %v2723 = vpack.c.b16 %v2595, %v2595
  %v2724 = vpack.c.b16 %v2596, %v2596
  %v2725 = vpack.c.b16 %v2597, %v2597
  %v2726 = vpack.c.b16 %v2598, %v2598
  %v2727 = vpack.c.b16 %v2599, %v2599
  %v2728 = vpack.c.b16 %v2600, %v2600
  %v2729 = vpack.c.b16 %v2601, %v2601
  %v2730 = vpack.c.b16 %v2602, %v2602
  %v2731 = vpack.c.b16 %v2603, %v2603
  %v2732 = vpack.c.b16 %v2604, %v2604
  %v2733 = vpack.c.b16 %v2605, %v2605
  %v2734 = vpack.c.b16 %v2606, %v2606
  %v2735 = vpack.c.b16 %v2607, %v2607
  %v2736 = vpack.c.b16 %v2608, %v2608
  %v2737 = vpack.c.b16 %v2609, %v2609
  %v2738 = vpack.c.b16 %v2610, %v2610
  %v2739 = vpack.c.b16 %v2611, %v2611
  %v2740 = vpack.c.b16 %v2612, %v2612
  %v2741 = vpack.c.b16 %v2613, %v2613
  %v2742 = vpack.c.b16 %v2614, %v2614
  %v2743 = vpack.c.b16 %v2615, %v2615
  %v2744 = vpack.c.b16 %v2616, %v2616
  %v2745 = vpack.c.b16 %v2617, %v2617
  %v2746 = vpack.c.b16 %v2618, %v2618
  %v2747 = vpack.c.b16 %v2619, %v2619
  %v2748 = vpack.c.b16 %v2620, %v2620
  %v2749 = vpack.c.b16 %v2621, %v2621
  %v2750 = vpack.c.b16 %v2622, %v2622
  %v2751 = vpack.c.b16 %v2623, %v2623
  %v2752 = vpack.c.b16 %v2624, %v2624
  %v2753 = vpack.c.b16 %v2625, %v2625
  %v2754 = vpack.c.b16 %v2626, %v2626
  %v2755 = vpack.c.b16 %v2627, %v2627
  %v2756 = vpack.c.b16 %v2628, %v2628
  %v2757 = vpack.c.b16 %v2629, %v2629
  %v2758 = vpack.c.b16 %v2630, %v2630
  %v2759 = vpack.c.b16 %v2631, %v2631
  %v2760 = vpack.c.b16 %v2632, %v2632
  %v2761 = vpack.c.b16 %v2633, %v2633
  %v2762 = vpack.c.b16 %v2634, %v2634
  %v2763 = vpack.c.b16 %v2635, %v2635
  %v2764 = vpack.c.b16 %v2636, %v2636
  %v2765 = vpack.c.b16 %v2637, %v2637
  %v2766 = vpack.c.b16 %v2638, %v2638
  %v2767 = vpack.c.b16 %v2639, %v2639
  %v2768 = vpack.c.b16 %v2640, %v2640
  %v2769 = vpack.c.b16 %v2641, %v2641
  %v2770 = vpack.c.b16 %v2642, %v2642
  %v2771 = vpack.c.b16 %v2643, %v2643
  %v2772 = vpack.c.b16 %v2644, %v2644
  %v2773 = vpack.c.b16 %v2645, %v2645
  %v2774 = vpack.c.b16 %v2646, %v2646
  %v2775 = vpack.c.b16 %v2647, %v2647
  %v2776 = vpack.c.b16 %v2648, %v2648
  %v2777 = vpack.c.b16 %v2649, %v2649
  %v2778 = vpack.c.b16 %v2650, %v2650
  %v2779 = vpack.c.b16 %v2651, %v2651
  %v2780 = vpack.c.b16 %v2652, %v2652
  %v2781 = vpack.c.b16 %v2653, %v2653
  %v2782 = vpack.c.b16 %v2654, %v2654
  %v2783 = vpack.c.b16 %v2655, %v2655
  %v2784 = vpack.c.b16 %v2656, %v2656
  %v2785 = vpack.c.b16 %v2657, %v2657
  %v2786 = vpack.c.b16 %v2658, %v2658
  %v2787 = vpack.c.b16 %v2659, %v2659
  %v2788 = vpack.c.b16 %v2660, %v2660
  %v2789 = vpack.c.b16 %v2661, %v2661
  %v2790 = vpack.c.b16 %v2662, %v2662
  %v2791 = vpack.c.b16 %v2663, %v2663
  %v2792 = vpack.c.b16 %v2664, %v2664
  %v2793 = vpack.c.b16 %v2665, %v2665
  %v2794 = vpack.c.b16 %v2666, %v2666
  %v2795 = vunpack.c.l.b16 %v2667
  %v2796 = vunpack.c.l.b16 %v2668
  %v2797 = vunpack.c.l.b16 %v2669
  %v2798 = vunpack.c.l.b16 %v2670
  %v2799 = vunpack.c.l.b16 %v2671
  %v2800 = vunpack.c.l.b16 %v2672
  %v2801 = vunpack.c.l.b16 %v2673
  %v2802 = vunpack.c.l.b16 %v2674
  %v2803 = vunpack.c.l.b16 %v2675
  %v2804 = vunpack.c.l.b16 %v2676
  %v2805 = vunpack.c.l.b16 %v2677
  %v2806 = vunpack.c.l.b16 %v2678
  %v2807 = vunpack.c.l.b16 %v2679
  %v2808 = vunpack.c.l.b16 %v2680
  %v2809 = vunpack.c.l.b16 %v2681
  %v2810 = vunpack.c.l.b16 %v2682
  %v2811 = vunpack.c.l.b16 %v2683
  %v2812 = vunpack.c.l.b16 %v2684
  %v2813 = vunpack.c.l.b16 %v2685
  %v2814 = vunpack.c.l.b16 %v2686
  %v2815 = vunpack.c.l.b16 %v2687
  %v2816 = vunpack.c.l.b16 %v2688
  %v2817 = vunpack.c.l.b16 %v2689
  %v2818 = vunpack.c.l.b16 %v2690
  %v2819 = vunpack.c.l.b16 %v2691
  %v2820 = vunpack.c.l.b16 %v2692
  %v2821 = vunpack.c.l.b16 %v2693
  %v2822 = vunpack.c.l.b16 %v2694
  %v2823 = vunpack.c.l.b16 %v2695
  %v2824 = vunpack.c.l.b16 %v2696
  %v2825 = vunpack.c.l.b16 %v2697
  %v2826 = vunpack.c.l.b16 %v2698
  %v2827 = vunpack.c.l.b16 %v2699
  %v2828 = vunpack.c.l.b16 %v2700
  %v2829 = vunpack.c.l.b16 %v2701
  %v2830 = vunpack.c.l.b16 %v2702
  %v2831 = vunpack.c.l.b16 %v2703
  %v2832 = vunpack.c.l.b16 %v2704
  %v2833 = vunpack.c.l.b16 %v2705
  %v2834 = vunpack.c.l.b16 %v2706
  %v2835 = vunpack.c.l.b16 %v2707
  %v2836 = vunpack.c.l.b16 %v2708
  %v2837 = vunpack.c.l.b16 %v2709
  %v2838 = vunpack.c.l.b16 %v2710
  %v2839 = vunpack.c.l.b16 %v2711
  %v2840 = vunpack.c.l.b16 %v2712
  %v2841 = vunpack.c.l.b16 %v2713
  %v2842 = vunpack.c.l.b16 %v2714
  %v2843 = vunpack.c.l.b16 %v2715
  %v2844 = vunpack.c.l.b16 %v2716
  %v2845 = vunpack.c.l.b16 %v2717
  %v2846 = vunpack.c.l.b16 %v2718
  %v2847 = vunpack.c.l.b16 %v2719
  %v2848 = vunpack.c.l.b16 %v2720
  %v2849 = vunpack.c.l.b16 %v2721
  %v2850 = vunpack.c.l.b16 %v2722
  %v2851 = vunpack.c.l.b16 %v2723
  %v2852 = vunpack.c.l.b16 %v2724
  %v2853 = vunpack.c.l.b16 %v2725
  %v2854 = vunpack.c.l.b16 %v2726
  %v2855 = vunpack.c.l.b16 %v2727
  %v2856 = vunpack.c.l.b16 %v2728
  %v2857 = vunpack.c.l.b16 %v2729
  %v2858 = vunpack.c.l.b16 %v2730
  %v2859 = vunpack.c.l.b16 %v2731
  %v2860 = vunpack.c.l.b16 %v2732
  %v2861 = vunpack.c.l.b16 %v2733
  %v2862 = vunpack.c.l.b16 %v2734
  %v2863 = vunpack.c.l.b16 %v2735
  %v2864 = vunpack.c.l.b16 %v2736
  %v2865 = vunpack.c.l.b16 %v2737
  %v2866 = vunpack.c.l.b16 %v2738
  %v2867 = vunpack.c.l.b16 %v2739
  %v2868 = vunpack.c.l.b16 %v2740
  %v2869 = vunpack.c.l.b16 %v2741
  %v2870 = vunpack.c.l.b16 %v2742
  %v2871 = vunpack.c.l.b16 %v2743
  %v2872 = vunpack.c.l.b16 %v2744
  %v2873 = vunpack.c.l.b16 %v2745
  %v2874 = vunpack.c.l.b16 %v2746
  %v2875 = vunpack.c.l.b16 %v2747
  %v2876 = vunpack.c.l.b16 %v2748
  %v2877 = vunpack.c.l.b16 %v2749
  %v2878 = vunpack.c.l.b16 %v2750
  %v2879 = vunpack.c.l.b16 %v2751
  %v2880 = vunpack.c.l.b16 %v2752
  %v2881 = vunpack.c.l.b16 %v2753
  %v2882 = vunpack.c.l.b16 %v2754
  %v2883 = vunpack.c.l.b16 %v2755
  %v2884 = vunpack.c.l.b16 %v2756
  %v2885 = vunpack.c.l.b16 %v2757
  %v2886 = vunpack.c.l.b16 %v2758
  %v2887 = vunpack.c.l.b16 %v2759
  %v2888 = vunpack.c.l.b16 %v2760
  %v2889 = vunpack.c.l.b16 %v2761
  %v2890 = vunpack.c.l.b16 %v2762
  %v2891 = vunpack.c.l.b16 %v2763
  %v2892 = vunpack.c.l.b16 %v2764
  %v2893 = vunpack.c.l.b16 %v2765
  %v2894 = vunpack.c.l.b16 %v2766
  %v2895 = vunpack.c.l.b16 %v2767
  %v2896 = vunpack.c.l.b16 %v2768
  %v2897 = vunpack.c.l.b16 %v2769
  %v2898 = vunpack.c.l.b16 %v2770
  %v2899 = vunpack.c.l.b16 %v2771
  %v2900 = vunpack.c.l.b16 %v2772
  %v2901 = vunpack.c.l.b16 %v2773
  %v2902 = vunpack.c.l.b16 %v2774
  %v2903 = vunpack.c.l.b16 %v2775
  %v2904 = vunpack.c.l.b16 %v2776
  %v2905 = vunpack.c.l.b16 %v2777
  %v2906 = vunpack.c.l.b16 %v2778
  %v2907 = vunpack.c.l.b16 %v2779
  %v2908 = vunpack.c.l.b16 %v2780
  %v2909 = vunpack.c.l.b16 %v2781
  %v2910 = vunpack.c.l.b16 %v2782
  %v2911 = vunpack.c.l.b16 %v2783
  %v2912 = vunpack.c.l.b16 %v2784
  %v2913 = vunpack.c.l.b16 %v2785
  %v2914 = vunpack.c.l.b16 %v2786
  %v2915 = vunpack.c.l.b16 %v2787
  %v2916 = vunpack.c.l.b16 %v2788
  %v2917 = vunpack.c.l.b16 %v2789
  %v2918 = vunpack.c.l.b16 %v2790
  %v2919 = vunpack.c.l.b16 %v2791
  %v2920 = vunpack.c.l.b16 %v2792
  %v2921 = vunpack.c.l.b16 %v2793
  %v2922 = vunpack.c.l.b16 %v2794
  %vm2923 = vcmask 1041409
  %v2924 = vsel %vm2923, %v2796, %v2795
  %vm2925 = vcmask 1042434
  %v2926 = vsel %vm2925, %v2797, %v2924
  %vm2927 = vcmask 1043459
  %v2928 = vsel %vm2927, %v2798, %v2926
  %vm2929 = vcmask 1044484
  %v2930 = vsel %vm2929, %v2799, %v2928
  %vm2931 = vcmask 1045509
  %v2932 = vsel %vm2931, %v2800, %v2930
  %vm2933 = vcmask 1046534
  %v2934 = vsel %vm2933, %v2801, %v2932
  %vm2935 = vcmask 1047559
  %v2936 = vsel %vm2935, %v2802, %v2934
  %v2937 = vsel %vm2923, %v2804, %v2803
  %v2938 = vsel %vm2925, %v2805, %v2937
  %v2939 = vsel %vm2927, %v2806, %v2938
  %v2940 = vsel %vm2929, %v2807, %v2939
  %v2941 = vsel %vm2931, %v2808, %v2940
  %v2942 = vsel %vm2933, %v2809, %v2941
  %v2943 = vsel %vm2935, %v2810, %v2942
  %v2944 = vsel %vm2923, %v2812, %v2811
  %v2945 = vsel %vm2925, %v2813, %v2944
  %v2946 = vsel %vm2927, %v2814, %v2945
  %v2947 = vsel %vm2929, %v2815, %v2946
  %v2948 = vsel %vm2931, %v2816, %v2947
  %v2949 = vsel %vm2933, %v2817, %v2948
  %v2950 = vsel %vm2935, %v2818, %v2949
  %v2951 = vsel %vm2923, %v2820, %v2819
  %v2952 = vsel %vm2925, %v2821, %v2951
  %v2953 = vsel %vm2927, %v2822, %v2952
  %v2954 = vsel %vm2929, %v2823, %v2953
  %v2955 = vsel %vm2931, %v2824, %v2954
  %v2956 = vsel %vm2933, %v2825, %v2955
  %v2957 = vsel %vm2935, %v2826, %v2956
  %v2958 = vsel %vm2923, %v2828, %v2827
  %v2959 = vsel %vm2925, %v2829, %v2958
  %v2960 = vsel %vm2927, %v2830, %v2959
  %v2961 = vsel %vm2929, %v2831, %v2960
  %v2962 = vsel %vm2931, %v2832, %v2961
  %v2963 = vsel %vm2933, %v2833, %v2962
  %v2964 = vsel %vm2935, %v2834, %v2963
  %v2965 = vsel %vm2923, %v2836, %v2835
  %v2966 = vsel %vm2925, %v2837, %v2965
  %v2967 = vsel %vm2927, %v2838, %v2966
  %v2968 = vsel %vm2929, %v2839, %v2967
  %v2969 = vsel %vm2931, %v2840, %v2968
  %v2970 = vsel %vm2933, %v2841, %v2969
  %v2971 = vsel %vm2935, %v2842, %v2970
  %v2972 = vsel %vm2923, %v2844, %v2843
  %v2973 = vsel %vm2925, %v2845, %v2972
  %v2974 = vsel %vm2927, %v2846, %v2973
  %v2975 = vsel %vm2929, %v2847, %v2974
  %v2976 = vsel %vm2931, %v2848, %v2975
  %v2977 = vsel %vm2933, %v2849, %v2976
  %v2978 = vsel %vm2935, %v2850, %v2977
  %v2979 = vsel %vm2923, %v2852, %v2851
  %v2980 = vsel %vm2925, %v2853, %v2979
  %v2981 = vsel %vm2927, %v2854, %v2980
  %v2982 = vsel %vm2929, %v2855, %v2981
  %v2983 = vsel %vm2931, %v2856, %v2982
  %v2984 = vsel %vm2933, %v2857, %v2983
  %v2985 = vsel %vm2935, %v2858, %v2984
  %v2986 = vsel %vm2923, %v2860, %v2859
  %v2987 = vsel %vm2925, %v2861, %v2986
  %v2988 = vsel %vm2927, %v2862, %v2987
  %v2989 = vsel %vm2929, %v2863, %v2988
  %v2990 = vsel %vm2931, %v2864, %v2989
  %v2991 = vsel %vm2933, %v2865, %v2990
  %v2992 = vsel %vm2935, %v2866, %v2991
  %v2993 = vsel %vm2923, %v2868, %v2867
  %v2994 = vsel %vm2925, %v2869, %v2993
  %v2995 = vsel %vm2927, %v2870, %v2994
  %v2996 = vsel %vm2929, %v2871, %v2995
  %v2997 = vsel %vm2931, %v2872, %v2996
  %v2998 = vsel %vm2933, %v2873, %v2997
  %v2999 = vsel %vm2935, %v2874, %v2998
  %v3000 = vsel %vm2923, %v2876, %v2875
  %v3001 = vsel %vm2925, %v2877, %v3000
  %v3002 = vsel %vm2927, %v2878, %v3001
  %v3003 = vsel %vm2929, %v2879, %v3002
  %v3004 = vsel %vm2931, %v2880, %v3003
  %v3005 = vsel %vm2933, %v2881, %v3004
  %v3006 = vsel %vm2935, %v2882, %v3005
  %v3007 = vsel %vm2923, %v2884, %v2883
  %v3008 = vsel %vm2925, %v2885, %v3007
  %v3009 = vsel %vm2927, %v2886, %v3008
  %v3010 = vsel %vm2929, %v2887, %v3009
  %v3011 = vsel %vm2931, %v2888, %v3010
  %v3012 = vsel %vm2933, %v2889, %v3011
  %v3013 = vsel %vm2935, %v2890, %v3012
  %v3014 = vsel %vm2923, %v2892, %v2891
  %v3015 = vsel %vm2925, %v2893, %v3014
  %v3016 = vsel %vm2927, %v2894, %v3015
  %v3017 = vsel %vm2929, %v2895, %v3016
  %v3018 = vsel %vm2931, %v2896, %v3017
  %v3019 = vsel %vm2933, %v2897, %v3018
  %v3020 = vsel %vm2935, %v2898, %v3019
  %v3021 = vsel %vm2923, %v2900, %v2899
  %v3022 = vsel %vm2925, %v2901, %v3021
  %v3023 = vsel %vm2927, %v2902, %v3022
  %v3024 = vsel %vm2929, %v2903, %v3023
  %v3025 = vsel %vm2931, %v2904, %v3024
  %v3026 = vsel %vm2933, %v2905, %v3025
  %v3027 = vsel %vm2935, %v2906, %v3026
  %v3028 = vsel %vm2923, %v2908, %v2907
  %v3029 = vsel %vm2925, %v2909, %v3028
  %v3030 = vsel %vm2927, %v2910, %v3029
  %v3031 = vsel %vm2929, %v2911, %v3030
  %v3032 = vsel %vm2931, %v2912, %v3031
  %v3033 = vsel %vm2933, %v2913, %v3032
  %v3034 = vsel %vm2935, %v2914, %v3033
  %v3035 = vsel %vm2923, %v2916, %v2915
  %v3036 = vsel %vm2925, %v2917, %v3035
  %v3037 = vsel %vm2927, %v2918, %v3036
  %v3038 = vsel %vm2929, %v2919, %v3037
  %v3039 = vsel %vm2931, %v2920, %v3038
  %v3040 = vsel %vm2933, %v2921, %v3039
  %v3041 = vsel %vm2935, %v2922, %v3040
  %v3042 = vpack.c.b16 %v2936, %v2936
  %v3043 = vpack.c.b16 %v2943, %v2943
  %v3044 = vpack.c.b16 %v2950, %v2950
  %v3045 = vpack.c.b16 %v2957, %v2957
  %v3046 = vpack.c.b16 %v2964, %v2964
  %v3047 = vpack.c.b16 %v2971, %v2971
  %v3048 = vpack.c.b16 %v2978, %v2978
  %v3049 = vpack.c.b16 %v2985, %v2985
  %v3050 = vpack.c.b16 %v2992, %v2992
  %v3051 = vpack.c.b16 %v2999, %v2999
  %v3052 = vpack.c.b16 %v3006, %v3006
  %v3053 = vpack.c.b16 %v3013, %v3013
  %v3054 = vpack.c.b16 %v3020, %v3020
  %v3055 = vpack.c.b16 %v3027, %v3027
  %v3056 = vpack.c.b16 %v3034, %v3034
  %v3057 = vpack.c.b16 %v3041, %v3041
  %vm3074 = vcmask 519168
  %3075 = vst.msk [vmem:[%s3] sm:$0xf] %vm3074, %v3042
  %3076 = vst.msk [vmem:[%s3 + $0x4] sm:$0xf] %vm3074, %v3043
  %3077 = vst.msk [vmem:[%s3 + $0x8] sm:$0xf] %vm3074, %v3044
  %3078 = vst.msk [vmem:[%s3 + $0xc] sm:$0xf] %vm3074, %v3045
  %3079 = vst.msk [vmem:[%s3 + $0x10] sm:$0xf] %vm3074, %v3046
  %3080 = vst.msk [vmem:[%s3 + $0x14] sm:$0xf] %vm3074, %v3047
  %3081 = vst.msk [vmem:[%s3 + $0x18] sm:$0xf] %vm3074, %v3048
  %3082 = vst.msk [vmem:[%s3 + $0x1c] sm:$0xf] %vm3074, %v3049
  %3083 = vst.msk [vmem:[%s3 + $0x20] sm:$0xf] %vm3074, %v3050
  %3084 = vst.msk [vmem:[%s3 + $0x24] sm:$0xf] %vm3074, %v3051
  %3085 = vst.msk [vmem:[%s3 + $0x28] sm:$0xf] %vm3074, %v3052
  %3086 = vst.msk [vmem:[%s3 + $0x2c] sm:$0xf] %vm3074, %v3053
  %3087 = vst.msk [vmem:[%s3 + $0x30] sm:$0xf] %vm3074, %v3054
  %3088 = vst.msk [vmem:[%s3 + $0x34] sm:$0xf] %vm3074, %v3055
  %3089 = vst.msk [vmem:[%s3 + $0x38] sm:$0xf] %vm3074, %v3056
  %3090 = vst.msk [vmem:[%s3 + $0x3c] sm:$0xf] %vm3074, %v3057
  // Predicated region
  $region14: #{custom_resnet_video_forward.3} parent=0 // pred_check
    _
  $region15: #{custom_resnet_video_forward.3} parent=0 // pred_check_branch
    %3092 = sbr.rel (0) target = $region17
  $region16: #{custom_resnet_video_forward.3} parent=0 // pred_region
    _
  $region17: #{custom_resnet_video_forward.3} parent=0 // pred_fallthru
    _
  // Predicated region
  $region18: #{custom_resnet_video_forward.3} parent=0 // pred_check
    _
  $region19: #{custom_resnet_video_forward.3} parent=0 // pred_check_branch
    %3094 = sbr.rel (0) target = $region21
  $region20: #{custom_resnet_video_forward.3} parent=0 // pred_region
    _
  $region21: #{custom_resnet_video_forward.3} parent=0 // pred_fallthru
    _

// kernel: custom_resnet_video_forward.5
$region0: #{custom_resnet_video_forward.5}
  #allocation0 [shape = 'u32[]', space=smem, size = 0x4, offset = 0x4, fixed_abs, tag = 'smem constant byte address 0x4 - core index']
  #allocation1 [shape = 'u32[144,128]{1,0:T(1,128)}', space=vmem, size = 0x12000, scoped, tag = 'internal scratch']
  #allocation2 [shape = 'f32[8,256]{1,0:T(8,128)}', space=vmem, size = 0x2000, scoped, tag = 'scratch operand']
  %s0 = inlined_call_operand.vmem [shape: bf16[8,256], index: 0, kind: input, shape index: {}]
  %s1 = inlined_call_operand.vmem [shape: bf16[256,256], index: 1, kind: input, shape index: {}]
  %s2 = inlined_call_operand.vmem [shape: f32[1,256], index: 2, kind: input, shape index: {}]
  %s3 = inlined_call_operand.vmem [shape: bf16[256,128], index: 3, kind: input, shape index: {}]
  %s4 = inlined_call_operand.vmem [shape: f32[1,128], index: 4, kind: input, shape index: {}]
  %s5 = inlined_call_operand.vmem [shape: f32[8,128], index: 5, kind: output, shape index: {}]
  %s6 = sld [smem:[#allocation0]]
  $region38: #{custom_resnet_video_forward.5} parent=0
    _
  %s8 = ssub.s32 1, %s6
  %s9 = scalar_select 0, %s8, %s6
  // Predicated region
  $region2: #{custom_resnet_video_forward.5} parent=0 // pred_check
    _
  $region3: #{custom_resnet_video_forward.5} parent=0 // pred_check_branch
    %11 = sbr.rel (0) target = $region5
  $region4: #{custom_resnet_video_forward.5} parent=0 // pred_region
    _
  $region5: #{custom_resnet_video_forward.5} parent=0 // pred_fallthru
    _
  // Predicated region
  $region6: #{custom_resnet_video_forward.5} parent=0 // pred_check
    _
  $region7: #{custom_resnet_video_forward.5} parent=0 // pred_check_branch
    %13 = sbr.rel (0) target = $region9
  $region8: #{custom_resnet_video_forward.5} parent=0 // pred_region
    _
  $region9: #{custom_resnet_video_forward.5} parent=0 // pred_fallthru
    _
  // Predicated region
  $region10: #{custom_resnet_video_forward.5} parent=0 // pred_check
    _
  $region11: #{custom_resnet_video_forward.5} parent=0 // pred_check_branch
    %15 = sbr.rel (0) target = $region13
  $region12: #{custom_resnet_video_forward.5} parent=0 // pred_region
    _
  $region13: #{custom_resnet_video_forward.5} parent=0 // pred_fallthru
    _
  // Predicated region
  $region14: #{custom_resnet_video_forward.5} parent=0 // pred_check
    _
  $region15: #{custom_resnet_video_forward.5} parent=0 // pred_check_branch
    %17 = sbr.rel (0) target = $region17
  $region16: #{custom_resnet_video_forward.5} parent=0 // pred_region
    _
  $region17: #{custom_resnet_video_forward.5} parent=0 // pred_fallthru
    _
  // Predicated region
  $region18: #{custom_resnet_video_forward.5} parent=0 // pred_check
    _
  $region19: #{custom_resnet_video_forward.5} parent=0 // pred_check_branch
    %19 = sbr.rel (0) target = $region21
  $region20: #{custom_resnet_video_forward.5} parent=0 // pred_region
    _
  $region21: #{custom_resnet_video_forward.5} parent=0 // pred_fallthru
    _
  %p21 = scmp.eq.s32.totalorder 0, 0
  // Predicated region
  $region22: #{custom_resnet_video_forward.5} parent=0 // pred_check
    %p22 = pneg %p21
  $region23: #{custom_resnet_video_forward.5} parent=0 // pred_check_branch
    %24 = sbr.rel (%p22) target = $region25
  $region24: #{custom_resnet_video_forward.5} parent=0 // pred_region
    %25 = vst [vmem:[#allocation2] sm:$0xff] 0.0
    %26 = vst [vmem:[#allocation2 + $0x8] sm:$0xff] 0.0
  $region25: #{custom_resnet_video_forward.5} parent=0 // pred_fallthru
    _
  %v27 = vld [vmem:[#allocation2] sm:$0xff]
  %v28 = vld [vmem:[#allocation2 + $0x8] sm:$0xff]
  %v29 = vld [vmem:[%s0] sm:$0xff]
  %v30 = vld [vmem:[%s1] sm:$0xff]
  %v31 = vld [vmem:[%s1 + $0x8] sm:$0xff]
  %v32 = vld [vmem:[%s1 + $0x10] sm:$0xff]
  %v33 = vld [vmem:[%s1 + $0x18] sm:$0xff]
  %v34 = vld [vmem:[%s1 + $0x20] sm:$0xff]
  %v35 = vld [vmem:[%s1 + $0x28] sm:$0xff]
  %v36 = vld [vmem:[%s1 + $0x30] sm:$0xff]
  %v37 = vld [vmem:[%s1 + $0x38] sm:$0xff]
  %v38 = vld [vmem:[%s1 + $0x40] sm:$0xff]
  %v39 = vld [vmem:[%s1 + $0x48] sm:$0xff]
  %v40 = vld [vmem:[%s1 + $0x50] sm:$0xff]
  %v41 = vld [vmem:[%s1 + $0x58] sm:$0xff]
  %v42 = vld [vmem:[%s1 + $0x60] sm:$0xff]
  %v43 = vld [vmem:[%s1 + $0x68] sm:$0xff]
  %v44 = vld [vmem:[%s1 + $0x70] sm:$0xff]
  %v45 = vld [vmem:[%s1 + $0x78] sm:$0xff]
  %v46 = vld [vmem:[%s1 + $0x80] sm:$0xff]
  %v47 = vld [vmem:[%s1 + $0x88] sm:$0xff]
  %v48 = vld [vmem:[%s1 + $0x90] sm:$0xff]
  %v49 = vld [vmem:[%s1 + $0x98] sm:$0xff]
  %v50 = vld [vmem:[%s1 + $0xa0] sm:$0xff]
  %v51 = vld [vmem:[%s1 + $0xa8] sm:$0xff]
  %v52 = vld [vmem:[%s1 + $0xb0] sm:$0xff]
  %v53 = vld [vmem:[%s1 + $0xb8] sm:$0xff]
  %v54 = vld [vmem:[%s1 + $0xc0] sm:$0xff]
  %v55 = vld [vmem:[%s1 + $0xc8] sm:$0xff]
  %v56 = vld [vmem:[%s1 + $0xd0] sm:$0xff]
  %v57 = vld [vmem:[%s1 + $0xd8] sm:$0xff]
  %v58 = vld [vmem:[%s1 + $0xe0] sm:$0xff]
  %v59 = vld [vmem:[%s1 + $0xe8] sm:$0xff]
  %v60 = vld [vmem:[%s1 + $0xf0] sm:$0xff]
  %v61 = vld [vmem:[%s1 + $0xf8] sm:$0xff]
  %v63 = vunpack.c.l.b16 %v29
  %v64 = vunpack.c.h.b16 %v29
  %v65 = vpack.c.b16 %v63, %v63
  %v66 = vpack.c.b16 %v64, %v64
  %v101 = vunpack.c.l.b16 %v30
  %v102 = vunpack.c.h.b16 %v30
  %v103 = vunpack.c.l.b16 %v31
  %v104 = vunpack.c.h.b16 %v31
  %v105 = vunpack.c.l.b16 %v32
  %v106 = vunpack.c.h.b16 %v32
  %v107 = vunpack.c.l.b16 %v33
  %v108 = vunpack.c.h.b16 %v33
  %v109 = vunpack.c.l.b16 %v34
  %v110 = vunpack.c.h.b16 %v34
  %v111 = vunpack.c.l.b16 %v35
  %v112 = vunpack.c.h.b16 %v35
  %v113 = vunpack.c.l.b16 %v36
  %v114 = vunpack.c.h.b16 %v36
  %v115 = vunpack.c.l.b16 %v37
  %v116 = vunpack.c.h.b16 %v37
  %v117 = vunpack.c.l.b16 %v38
  %v118 = vunpack.c.h.b16 %v38
  %v119 = vunpack.c.l.b16 %v39
  %v120 = vunpack.c.h.b16 %v39
  %v121 = vunpack.c.l.b16 %v40
  %v122 = vunpack.c.h.b16 %v40
  %v123 = vunpack.c.l.b16 %v41
  %v124 = vunpack.c.h.b16 %v41
  %v125 = vunpack.c.l.b16 %v42
  %v126 = vunpack.c.h.b16 %v42
  %v127 = vunpack.c.l.b16 %v43
  %v128 = vunpack.c.h.b16 %v43
  %v129 = vunpack.c.l.b16 %v44
  %v130 = vunpack.c.h.b16 %v44
  %v131 = vunpack.c.l.b16 %v45
  %v132 = vunpack.c.h.b16 %v45
  %v133 = vunpack.c.l.b16 %v46
  %v134 = vunpack.c.h.b16 %v46
  %v135 = vunpack.c.l.b16 %v47
  %v136 = vunpack.c.h.b16 %v47
  %v137 = vunpack.c.l.b16 %v48
  %v138 = vunpack.c.h.b16 %v48
  %v139 = vunpack.c.l.b16 %v49
  %v140 = vunpack.c.h.b16 %v49
  %v141 = vunpack.c.l.b16 %v50
  %v142 = vunpack.c.h.b16 %v50
  %v143 = vunpack.c.l.b16 %v51
  %v144 = vunpack.c.h.b16 %v51
  %v145 = vunpack.c.l.b16 %v52
  %v146 = vunpack.c.h.b16 %v52
  %v147 = vunpack.c.l.b16 %v53
  %v148 = vunpack.c.h.b16 %v53
  %v149 = vunpack.c.l.b16 %v54
  %v150 = vunpack.c.h.b16 %v54
  %v151 = vunpack.c.l.b16 %v55
  %v152 = vunpack.c.h.b16 %v55
  %v153 = vunpack.c.l.b16 %v56
  %v154 = vunpack.c.h.b16 %v56
  %v155 = vunpack.c.l.b16 %v57
  %v156 = vunpack.c.h.b16 %v57
  %v157 = vunpack.c.l.b16 %v58
  %v158 = vunpack.c.h.b16 %v58
  %v159 = vunpack.c.l.b16 %v59
  %v160 = vunpack.c.h.b16 %v59
  %v161 = vunpack.c.l.b16 %v60
  %v162 = vunpack.c.h.b16 %v60
  %v163 = vunpack.c.l.b16 %v61
  %v164 = vunpack.c.h.b16 %v61
  %v165 = vpack.c.b16 %v103, %v101
  %v166 = vpack.c.b16 %v104, %v102
  %v167 = vpack.c.b16 %v107, %v105
  %v168 = vpack.c.b16 %v108, %v106
  %v169 = vpack.c.b16 %v111, %v109
  %v170 = vpack.c.b16 %v112, %v110
  %v171 = vpack.c.b16 %v115, %v113
  %v172 = vpack.c.b16 %v116, %v114
  %v173 = vpack.c.b16 %v119, %v117
  %v174 = vpack.c.b16 %v120, %v118
  %v175 = vpack.c.b16 %v123, %v121
  %v176 = vpack.c.b16 %v124, %v122
  %v177 = vpack.c.b16 %v127, %v125
  %v178 = vpack.c.b16 %v128, %v126
  %v179 = vpack.c.b16 %v131, %v129
  %v180 = vpack.c.b16 %v132, %v130
  %v181 = vpack.c.b16 %v135, %v133
  %v182 = vpack.c.b16 %v136, %v134
  %v183 = vpack.c.b16 %v139, %v137
  %v184 = vpack.c.b16 %v140, %v138
  %v185 = vpack.c.b16 %v143, %v141
  %v186 = vpack.c.b16 %v144, %v142
  %v187 = vpack.c.b16 %v147, %v145
  %v188 = vpack.c.b16 %v148, %v146
  %v189 = vpack.c.b16 %v151, %v149
  %v190 = vpack.c.b16 %v152, %v150
  %v191 = vpack.c.b16 %v155, %v153
  %v192 = vpack.c.b16 %v156, %v154
  %v193 = vpack.c.b16 %v159, %v157
  %v194 = vpack.c.b16 %v160, %v158
  %v195 = vpack.c.b16 %v163, %v161
  %v196 = vpack.c.b16 %v164, %v162
  %229 = vmatprep.subr.bf16.mxu0 %v180
  %230 = vmatpush1.bf16.msra.mxu0 %v179
  %231 = vmatprep.subr.bf16.mxu0 %v178
  %232 = vmatpush1.bf16.msra.mxu0 %v177
  %233 = vmatprep.subr.bf16.mxu0 %v176
  %234 = vmatpush1.bf16.msra.mxu0 %v175
  %235 = vmatprep.subr.bf16.mxu0 %v174
  %236 = vmatpush1.bf16.msra.mxu0 %v173
  %237 = vmatprep.subr.bf16.mxu0 %v172
  %238 = vmatpush1.bf16.msra.mxu0 %v171
  %239 = vmatprep.subr.bf16.mxu0 %v170
  %240 = vmatpush1.bf16.msra.mxu0 %v169
  %241 = vmatprep.subr.bf16.mxu0 %v168
  %242 = vmatpush1.bf16.msra.mxu0 %v167
  %243 = vmatprep.subr.bf16.mxu0 %v166
  %244 = vmatpush1.bf16.msra.mxu0 %v165
  %245 = vmatprep.subr.bf16.mxu0 %v196
  %246 = vmatpush2.bf16.msra.mxu0 %v195
  %247 = vmatprep.subr.bf16.mxu0 %v194
  %248 = vmatpush2.bf16.msra.mxu0 %v193
  %249 = vmatprep.subr.bf16.mxu0 %v192
  %250 = vmatpush2.bf16.msra.mxu0 %v191
  %251 = vmatprep.subr.bf16.mxu0 %v190
  %252 = vmatpush2.bf16.msra.mxu0 %v189
  %253 = vmatprep.subr.bf16.mxu0 %v188
  %254 = vmatpush2.bf16.msra.mxu0 %v187
  %255 = vmatprep.subr.bf16.mxu0 %v186
  %256 = vmatpush2.bf16.msra.mxu0 %v185
  %257 = vmatprep.subr.bf16.mxu0 %v184
  %258 = vmatpush2.bf16.msra.mxu0 %v183
  %259 = vmatprep.subr.bf16.mxu0 %v182
  %260 = vmatpush2.bf16.msra.mxu0 %v181
  %261 = vmatprep.mubr.bf16.mxu0 %v66
  %262 = vmatmul.mubr.bf16.gmra.mxu0 %v65
  %v263 = vpop.f32.mrf.mxu0
  %v264 = vadd.f32 0.0, %v263
  %v265 = vpop.f32.mrf.mxu0
  %v266 = vadd.f32 0.0, %v265
  %v267 = vpop.f32.mrf.mxu0
  %v268 = vpop.f32.mrf.mxu0
  %269 = vdwg.mxu0
  %v270 = vadd.f32 %v27, %v264
  %v271 = vadd.f32 %v28, %v266
  %272 = vst [vmem:[#allocation2] sm:$0xff] %v270
  %273 = vst [vmem:[#allocation2 + $0x8] sm:$0xff] %v271
  // Predicated region
  $region26: #{custom_resnet_video_forward.5} parent=0 // pred_check
    %p274 = pneg %p21
  $region27: #{custom_resnet_video_forward.5} parent=0 // pred_check_branch
    %276 = sbr.rel (%p274) target = $region29
  $region28: #{custom_resnet_video_forward.5} parent=0 // pred_region
    %v277 = vld [vmem:[#allocation2] sm:$0xff]
    %v278 = vld [vmem:[#allocation2 + $0x8] sm:$0xff]
    %v279 = vld [vmem:[%s2] sm:$0x3]
    %v281 = vlaneseq
    %v282 = vshrl.u32 %v281, 7
    %v283 = vsub.s32 0, %v282
    %v284 = vrot.slane %v279, %v283
    %v285 = vlaneseq
    %v286 = vshrl.u32 %v285, 7
    %v287 = vsub.s32 1, %v286
    %v288 = vrot.slane %v279, %v287
    %v291 = vadd.f32 %v277, %v284
    %v292 = vadd.f32 %v278, %v288
    %v293 = vmax.f32 %v291, 0.0
    %v294 = vmax.f32 %v292, 0.0
    %v295 = vpack.c.bf16 %v293, %v293
    %v296 = vpack.c.bf16 %v294, %v294
    %v297 = vld [vmem:[%s3] sm:$0xf]
    %v298 = vld [vmem:[%s3 + $0x4] sm:$0xf]
    %v299 = vld [vmem:[%s3 + $0x8] sm:$0xf]
    %v300 = vld [vmem:[%s3 + $0xc] sm:$0xf]
    %v301 = vld [vmem:[%s3 + $0x10] sm:$0xf]
    %v302 = vld [vmem:[%s3 + $0x14] sm:$0xf]
    %v303 = vld [vmem:[%s3 + $0x18] sm:$0xf]
    %v304 = vld [vmem:[%s3 + $0x1c] sm:$0xf]
    %v305 = vld [vmem:[%s3 + $0x20] sm:$0xf]
    %v306 = vld [vmem:[%s3 + $0x24] sm:$0xf]
    %v307 = vld [vmem:[%s3 + $0x28] sm:$0xf]
    %v308 = vld [vmem:[%s3 + $0x2c] sm:$0xf]
    %v309 = vld [vmem:[%s3 + $0x30] sm:$0xf]
    %v310 = vld [vmem:[%s3 + $0x34] sm:$0xf]
    %v311 = vld [vmem:[%s3 + $0x38] sm:$0xf]
    %v312 = vld [vmem:[%s3 + $0x3c] sm:$0xf]
    %v313 = vld [vmem:[%s3 + $0x40] sm:$0xf]
    %v314 = vld [vmem:[%s3 + $0x44] sm:$0xf]
    %v315 = vld [vmem:[%s3 + $0x48] sm:$0xf]
    %v316 = vld [vmem:[%s3 + $0x4c] sm:$0xf]
    %v317 = vld [vmem:[%s3 + $0x50] sm:$0xf]
    %v318 = vld [vmem:[%s3 + $0x54] sm:$0xf]
    %v319 = vld [vmem:[%s3 + $0x58] sm:$0xf]
    %v320 = vld [vmem:[%s3 + $0x5c] sm:$0xf]
    %v321 = vld [vmem:[%s3 + $0x60] sm:$0xf]
    %v322 = vld [vmem:[%s3 + $0x64] sm:$0xf]
    %v323 = vld [vmem:[%s3 + $0x68] sm:$0xf]
    %v324 = vld [vmem:[%s3 + $0x6c] sm:$0xf]
    %v325 = vld [vmem:[%s3 + $0x70] sm:$0xf]
    %v326 = vld [vmem:[%s3 + $0x74] sm:$0xf]
    %v327 = vld [vmem:[%s3 + $0x78] sm:$0xf]
    %v328 = vld [vmem:[%s3 + $0x7c] sm:$0xf]
    %v329 = vld [vmem:[%s4] sm:$0x1]
    %v331 = vlaneseq
    %v332 = vshrl.u32 %v331, 7
    %v333 = vsub.s32 0, %v332
    %v334 = vrot.slane %v329, %v333
    %v368 = vunpack.c.l.b16 %v297
    %v369 = vunpack.c.l.b16 %v298
    %v370 = vunpack.c.l.b16 %v299
    %v371 = vunpack.c.l.b16 %v300
    %v372 = vunpack.c.l.b16 %v301
    %v373 = vunpack.c.l.b16 %v302
    %v374 = vunpack.c.l.b16 %v303
    %v375 = vunpack.c.l.b16 %v304
    %v376 = vunpack.c.l.b16 %v305
    %v377 = vunpack.c.l.b16 %v306
    %v378 = vunpack.c.l.b16 %v307
    %v379 = vunpack.c.l.b16 %v308
    %v380 = vunpack.c.l.b16 %v309
    %v381 = vunpack.c.l.b16 %v310
    %v382 = vunpack.c.l.b16 %v311
    %v383 = vunpack.c.l.b16 %v312
    %v384 = vunpack.c.l.b16 %v313
    %v385 = vunpack.c.l.b16 %v314
    %v386 = vunpack.c.l.b16 %v315
    %v387 = vunpack.c.l.b16 %v316
    %v388 = vunpack.c.l.b16 %v317
    %v389 = vunpack.c.l.b16 %v318
    %v390 = vunpack.c.l.b16 %v319
    %v391 = vunpack.c.l.b16 %v320
    %v392 = vunpack.c.l.b16 %v321
    %v393 = vunpack.c.l.b16 %v322
    %v394 = vunpack.c.l.b16 %v323
    %v395 = vunpack.c.l.b16 %v324
    %v396 = vunpack.c.l.b16 %v325
    %v397 = vunpack.c.l.b16 %v326
    %v398 = vunpack.c.l.b16 %v327
    %v399 = vunpack.c.l.b16 %v328
    %v400 = vpack.c.b16 %v369, %v368
    %v401 = vpack.c.b16 %v371, %v370
    %v402 = vpack.c.b16 %v373, %v372
    %v403 = vpack.c.b16 %v375, %v374
    %v404 = vpack.c.b16 %v377, %v376
    %v405 = vpack.c.b16 %v379, %v378
    %v406 = vpack.c.b16 %v381, %v380
    %v407 = vpack.c.b16 %v383, %v382
    %v408 = vpack.c.b16 %v385, %v384
    %v409 = vpack.c.b16 %v387, %v386
    %v410 = vpack.c.b16 %v389, %v388
    %v411 = vpack.c.b16 %v391, %v390
    %v412 = vpack.c.b16 %v393, %v392
    %v413 = vpack.c.b16 %v395, %v394
    %v414 = vpack.c.b16 %v397, %v396
    %v415 = vpack.c.b16 %v399, %v398
    %432 = vmatprep.subr.bf16.mxu0 0
    %433 = vmatpush1.bf16.msra.mxu0 %v407
    %434 = vmatprep.subr.bf16.mxu0 0
    %435 = vmatpush1.bf16.msra.mxu0 %v406
    %436 = vmatprep.subr.bf16.mxu0 0
    %437 = vmatpush1.bf16.msra.mxu0 %v405
    %438 = vmatprep.subr.bf16.mxu0 0
    %439 = vmatpush1.bf16.msra.mxu0 %v404
    %440 = vmatprep.subr.bf16.mxu0 0
    %441 = vmatpush1.bf16.msra.mxu0 %v403
    %442 = vmatprep.subr.bf16.mxu0 0
    %443 = vmatpush1.bf16.msra.mxu0 %v402
    %444 = vmatprep.subr.bf16.mxu0 0
    %445 = vmatpush1.bf16.msra.mxu0 %v401
    %446 = vmatprep.subr.bf16.mxu0 0
    %447 = vmatpush1.bf16.msra.mxu0 %v400
    %448 = vmatprep.subr.bf16.mxu0 0
    %449 = vmatpush2.bf16.msra.mxu0 %v415
    %450 = vmatprep.subr.bf16.mxu0 0
    %451 = vmatpush2.bf16.msra.mxu0 %v414
    %452 = vmatprep.subr.bf16.mxu0 0
    %453 = vmatpush2.bf16.msra.mxu0 %v413
    %454 = vmatprep.subr.bf16.mxu0 0
    %455 = vmatpush2.bf16.msra.mxu0 %v412
    %456 = vmatprep.subr.bf16.mxu0 0
    %457 = vmatpush2.bf16.msra.mxu0 %v411
    %458 = vmatprep.subr.bf16.mxu0 0
    %459 = vmatpush2.bf16.msra.mxu0 %v410
    %460 = vmatprep.subr.bf16.mxu0 0
    %461 = vmatpush2.bf16.msra.mxu0 %v409
    %462 = vmatprep.subr.bf16.mxu0 0
    %463 = vmatpush2.bf16.msra.mxu0 %v408
    %464 = vmatprep.mubr.bf16.mxu0 %v296
    %465 = vmatmul.mubr.bf16.gmra.mxu0 %v295
    %v466 = vpop.f32.mrf.mxu0
    %v467 = vadd.f32 %v334, %v466
    %v468 = vpop.f32.mrf.mxu0
    %v469 = vpop.f32.mrf.mxu0
    %v470 = vpop.f32.mrf.mxu0
    %471 = vdwg.mxu0
    %472 = vst [vmem:[%s5] sm:$0xff] %v467
  $region29: #{custom_resnet_video_forward.5} parent=0 // pred_fallthru
    _
  // Predicated region
  $region30: #{custom_resnet_video_forward.5} parent=0 // pred_check
    _
  $region31: #{custom_resnet_video_forward.5} parent=0 // pred_check_branch
    %474 = sbr.rel (0) target = $region33
  $region32: #{custom_resnet_video_forward.5} parent=0 // pred_region
    _
  $region33: #{custom_resnet_video_forward.5} parent=0 // pred_fallthru
    _
  // Predicated region
  $region34: #{custom_resnet_video_forward.5} parent=0 // pred_check
    _
  $region35: #{custom_resnet_video_forward.5} parent=0 // pred_check_branch
    %476 = sbr.rel (0) target = $region37
  $region36: #{custom_resnet_video_forward.5} parent=0 // pred_region
    _
  $region37: #{custom_resnet_video_forward.5} parent=0 // pred_fallthru
    _

// kernel: custom_resnet_video_forward.4
$region0: #{custom_resnet_video_forward.4}
  #allocation0 [shape = 'u32[]', space=smem, size = 0x4, offset = 0x4, fixed_abs, tag = 'smem constant byte address 0x4 - core index']
  #allocation1 [shape = 'u32[144,128]{1,0:T(1,128)}', space=vmem, size = 0x12000, scoped, tag = 'internal scratch']
  %s0 = inlined_call_operand.vmem [shape: bf16[32,1728], index: 0, kind: input, shape index: {}]
  %s1 = inlined_call_operand.vmem [shape: bf16[1728,128], index: 1, kind: input, shape index: {}]
  %s2 = inlined_call_operand.vmem [shape: f32[1,128], index: 2, kind: input, shape index: {}]
  %s3 = inlined_call_operand.vmem [shape: bf16[4,128], index: 3, kind: output, shape index: {}]
  %s4 = sld [smem:[#allocation0]]
  $region22: #{custom_resnet_video_forward.4} parent=0
    _
  %s6 = ssub.s32 1, %s4
  %s7 = scalar_select 0, %s6, %s4
  // Predicated region
  $region2: #{custom_resnet_video_forward.4} parent=0 // pred_check
    _
  $region3: #{custom_resnet_video_forward.4} parent=0 // pred_check_branch
    %9 = sbr.rel (0) target = $region5
  $region4: #{custom_resnet_video_forward.4} parent=0 // pred_region
    _
  $region5: #{custom_resnet_video_forward.4} parent=0 // pred_fallthru
    _
  // Predicated region
  $region6: #{custom_resnet_video_forward.4} parent=0 // pred_check
    _
  $region7: #{custom_resnet_video_forward.4} parent=0 // pred_check_branch
    %11 = sbr.rel (0) target = $region9
  $region8: #{custom_resnet_video_forward.4} parent=0 // pred_region
    _
  $region9: #{custom_resnet_video_forward.4} parent=0 // pred_fallthru
    _
  // Predicated region
  $region10: #{custom_resnet_video_forward.4} parent=0 // pred_check
    _
  $region11: #{custom_resnet_video_forward.4} parent=0 // pred_check_branch
    %13 = sbr.rel (0) target = $region13
  $region12: #{custom_resnet_video_forward.4} parent=0 // pred_region
    _
  $region13: #{custom_resnet_video_forward.4} parent=0 // pred_fallthru
    _
  %v15 = vld [vmem:[%s0] sm:$0xff]
  %v16 = vld [vmem:[%s0 + $0x8] sm:$0xff]
  %v17 = vld [vmem:[%s0 + $0x10] sm:$0xff]
  %v18 = vld [vmem:[%s0 + $0x18] sm:$0xff]
  %v19 = vld [vmem:[%s0 + $0x20] sm:$0xff]
  %v20 = vld [vmem:[%s0 + $0x28] sm:$0xff]
  %v21 = vld [vmem:[%s0 + $0x30] sm:$0xff]
  %v22 = vld [vmem:[%s0 + $0x38] sm:$0xff]
  %v23 = vld [vmem:[%s0 + $0x40] sm:$0xff]
  %v24 = vld [vmem:[%s0 + $0x48] sm:$0xff]
  %v25 = vld [vmem:[%s0 + $0x50] sm:$0xff]
  %v26 = vld [vmem:[%s0 + $0x58] sm:$0xff]
  %v27 = vld [vmem:[%s0 + $0x60] sm:$0xff]
  %v28 = vld [vmem:[%s0 + $0x68] sm:$0xff]
  %v29 = vld [vmem:[%s0 + $0x70] sm:$0xff]
  %v30 = vld [vmem:[%s0 + $0x78] sm:$0xff]
  %v31 = vld [vmem:[%s0 + $0x80] sm:$0xff]
  %v32 = vld [vmem:[%s0 + $0x88] sm:$0xff]
  %v33 = vld [vmem:[%s0 + $0x90] sm:$0xff]
  %v34 = vld [vmem:[%s0 + $0x98] sm:$0xff]
  %v35 = vld [vmem:[%s0 + $0xa0] sm:$0xff]
  %v36 = vld [vmem:[%s0 + $0xa8] sm:$0xff]
  %v37 = vld [vmem:[%s0 + $0xb0] sm:$0xff]
  %v38 = vld [vmem:[%s0 + $0xb8] sm:$0xff]
  %v39 = vld [vmem:[%s0 + $0xc0] sm:$0xff]
  %v40 = vld [vmem:[%s0 + $0xc8] sm:$0xff]
  %v41 = vld [vmem:[%s0 + $0xd0] sm:$0xff]
  %v42 = vld [vmem:[%s0 + $0xd8] sm:$0xff]
  %v43 = vld [vmem:[%s1] sm:$0xf]
  %v44 = vld [vmem:[%s1 + $0x4] sm:$0xf]
  %v45 = vld [vmem:[%s1 + $0x8] sm:$0xf]
  %v46 = vld [vmem:[%s1 + $0xc] sm:$0xf]
  %v47 = vld [vmem:[%s1 + $0x10] sm:$0xf]
  %v48 = vld [vmem:[%s1 + $0x14] sm:$0xf]
  %v49 = vld [vmem:[%s1 + $0x18] sm:$0xf]
  %v50 = vld [vmem:[%s1 + $0x1c] sm:$0xf]
  %v51 = vld [vmem:[%s1 + $0x20] sm:$0xf]
  %v52 = vld [vmem:[%s1 + $0x24] sm:$0xf]
  %v53 = vld [vmem:[%s1 + $0x28] sm:$0xf]
  %v54 = vld [vmem:[%s1 + $0x2c] sm:$0xf]
  %v55 = vld [vmem:[%s1 + $0x30] sm:$0xf]
  %v56 = vld [vmem:[%s1 + $0x34] sm:$0xf]
  %v57 = vld [vmem:[%s1 + $0x38] sm:$0xf]
  %v58 = vld [vmem:[%s1 + $0x3c] sm:$0xf]
  %v59 = vld [vmem:[%s1 + $0x40] sm:$0xf]
  %v60 = vld [vmem:[%s1 + $0x44] sm:$0xf]
  %v61 = vld [vmem:[%s1 + $0x48] sm:$0xf]
  %v62 = vld [vmem:[%s1 + $0x4c] sm:$0xf]
  %v63 = vld [vmem:[%s1 + $0x50] sm:$0xf]
  %v64 = vld [vmem:[%s1 + $0x54] sm:$0xf]
  %v65 = vld [vmem:[%s1 + $0x58] sm:$0xf]
  %v66 = vld [vmem:[%s1 + $0x5c] sm:$0xf]
  %v67 = vld [vmem:[%s1 + $0x60] sm:$0xf]
  %v68 = vld [vmem:[%s1 + $0x64] sm:$0xf]
  %v69 = vld [vmem:[%s1 + $0x68] sm:$0xf]
  %v70 = vld [vmem:[%s1 + $0x6c] sm:$0xf]
  %v71 = vld [vmem:[%s1 + $0x70] sm:$0xf]
  %v72 = vld [vmem:[%s1 + $0x74] sm:$0xf]
  %v73 = vld [vmem:[%s1 + $0x78] sm:$0xf]
  %v74 = vld [vmem:[%s1 + $0x7c] sm:$0xf]
  %v75 = vld [vmem:[%s1 + $0x80] sm:$0xf]
  %v76 = vld [vmem:[%s1 + $0x84] sm:$0xf]
  %v77 = vld [vmem:[%s1 + $0x88] sm:$0xf]
  %v78 = vld [vmem:[%s1 + $0x8c] sm:$0xf]
  %v79 = vld [vmem:[%s1 + $0x90] sm:$0xf]
  %v80 = vld [vmem:[%s1 + $0x94] sm:$0xf]
  %v81 = vld [vmem:[%s1 + $0x98] sm:$0xf]
  %v82 = vld [vmem:[%s1 + $0x9c] sm:$0xf]
  %v83 = vld [vmem:[%s1 + $0xa0] sm:$0xf]
  %v84 = vld [vmem:[%s1 + $0xa4] sm:$0xf]
  %v85 = vld [vmem:[%s1 + $0xa8] sm:$0xf]
  %v86 = vld [vmem:[%s1 + $0xac] sm:$0xf]
  %v87 = vld [vmem:[%s1 + $0xb0] sm:$0xf]
  %v88 = vld [vmem:[%s1 + $0xb4] sm:$0xf]
  %v89 = vld [vmem:[%s1 + $0xb8] sm:$0xf]
  %v90 = vld [vmem:[%s1 + $0xbc] sm:$0xf]
  %v91 = vld [vmem:[%s1 + $0xc0] sm:$0xf]
  %v92 = vld [vmem:[%s1 + $0xc4] sm:$0xf]
  %v93 = vld [vmem:[%s1 + $0xc8] sm:$0xf]
  %v94 = vld [vmem:[%s1 + $0xcc] sm:$0xf]
  %v95 = vld [vmem:[%s1 + $0xd0] sm:$0xf]
  %v96 = vld [vmem:[%s1 + $0xd4] sm:$0xf]
  %v97 = vld [vmem:[%s1 + $0xd8] sm:$0xf]
  %v98 = vld [vmem:[%s1 + $0xdc] sm:$0xf]
  %v99 = vld [vmem:[%s1 + $0xe0] sm:$0xf]
  %v100 = vld [vmem:[%s1 + $0xe4] sm:$0xf]
  %v101 = vld [vmem:[%s1 + $0xe8] sm:$0xf]
  %v102 = vld [vmem:[%s1 + $0xec] sm:$0xf]
  %v103 = vld [vmem:[%s1 + $0xf0] sm:$0xf]
  %v104 = vld [vmem:[%s1 + $0xf4] sm:$0xf]
  %v105 = vld [vmem:[%s1 + $0xf8] sm:$0xf]
  %v106 = vld [vmem:[%s1 + $0xfc] sm:$0xf]
  %v107 = vld [vmem:[%s1 + $0x100] sm:$0xf]
  %v108 = vld [vmem:[%s1 + $0x104] sm:$0xf]
  %v109 = vld [vmem:[%s1 + $0x108] sm:$0xf]
  %v110 = vld [vmem:[%s1 + $0x10c] sm:$0xf]
  %v111 = vld [vmem:[%s1 + $0x110] sm:$0xf]
  %v112 = vld [vmem:[%s1 + $0x114] sm:$0xf]
  %v113 = vld [vmem:[%s1 + $0x118] sm:$0xf]
  %v114 = vld [vmem:[%s1 + $0x11c] sm:$0xf]
  %v115 = vld [vmem:[%s1 + $0x120] sm:$0xf]
  %v116 = vld [vmem:[%s1 + $0x124] sm:$0xf]
  %v117 = vld [vmem:[%s1 + $0x128] sm:$0xf]
  %v118 = vld [vmem:[%s1 + $0x12c] sm:$0xf]
  %v119 = vld [vmem:[%s1 + $0x130] sm:$0xf]
  %v120 = vld [vmem:[%s1 + $0x134] sm:$0xf]
  %v121 = vld [vmem:[%s1 + $0x138] sm:$0xf]
  %v122 = vld [vmem:[%s1 + $0x13c] sm:$0xf]
  %v123 = vld [vmem:[%s1 + $0x140] sm:$0xf]
  %v124 = vld [vmem:[%s1 + $0x144] sm:$0xf]
  %v125 = vld [vmem:[%s1 + $0x148] sm:$0xf]
  %v126 = vld [vmem:[%s1 + $0x14c] sm:$0xf]
  %v127 = vld [vmem:[%s1 + $0x150] sm:$0xf]
  %v128 = vld [vmem:[%s1 + $0x154] sm:$0xf]
  %v129 = vld [vmem:[%s1 + $0x158] sm:$0xf]
  %v130 = vld [vmem:[%s1 + $0x15c] sm:$0xf]
  %v131 = vld [vmem:[%s1 + $0x160] sm:$0xf]
  %v132 = vld [vmem:[%s1 + $0x164] sm:$0xf]
  %v133 = vld [vmem:[%s1 + $0x168] sm:$0xf]
  %v134 = vld [vmem:[%s1 + $0x16c] sm:$0xf]
  %v135 = vld [vmem:[%s1 + $0x170] sm:$0xf]
  %v136 = vld [vmem:[%s1 + $0x174] sm:$0xf]
  %v137 = vld [vmem:[%s1 + $0x178] sm:$0xf]
  %v138 = vld [vmem:[%s1 + $0x17c] sm:$0xf]
  %v139 = vld [vmem:[%s1 + $0x180] sm:$0xf]
  %v140 = vld [vmem:[%s1 + $0x184] sm:$0xf]
  %v141 = vld [vmem:[%s1 + $0x188] sm:$0xf]
  %v142 = vld [vmem:[%s1 + $0x18c] sm:$0xf]
  %v143 = vld [vmem:[%s1 + $0x190] sm:$0xf]
  %v144 = vld [vmem:[%s1 + $0x194] sm:$0xf]
  %v145 = vld [vmem:[%s1 + $0x198] sm:$0xf]
  %v146 = vld [vmem:[%s1 + $0x19c] sm:$0xf]
  %v147 = vld [vmem:[%s1 + $0x1a0] sm:$0xf]
  %v148 = vld [vmem:[%s1 + $0x1a4] sm:$0xf]
  %v149 = vld [vmem:[%s1 + $0x1a8] sm:$0xf]
  %v150 = vld [vmem:[%s1 + $0x1ac] sm:$0xf]
  %v151 = vld [vmem:[%s1 + $0x1b0] sm:$0xf]
  %v152 = vld [vmem:[%s1 + $0x1b4] sm:$0xf]
  %v153 = vld [vmem:[%s1 + $0x1b8] sm:$0xf]
  %v154 = vld [vmem:[%s1 + $0x1bc] sm:$0xf]
  %v155 = vld [vmem:[%s1 + $0x1c0] sm:$0xf]
  %v156 = vld [vmem:[%s1 + $0x1c4] sm:$0xf]
  %v157 = vld [vmem:[%s1 + $0x1c8] sm:$0xf]
  %v158 = vld [vmem:[%s1 + $0x1cc] sm:$0xf]
  %v159 = vld [vmem:[%s1 + $0x1d0] sm:$0xf]
  %v160 = vld [vmem:[%s1 + $0x1d4] sm:$0xf]
  %v161 = vld [vmem:[%s1 + $0x1d8] sm:$0xf]
  %v162 = vld [vmem:[%s1 + $0x1dc] sm:$0xf]
  %v163 = vld [vmem:[%s1 + $0x1e0] sm:$0xf]
  %v164 = vld [vmem:[%s1 + $0x1e4] sm:$0xf]
  %v165 = vld [vmem:[%s1 + $0x1e8] sm:$0xf]
  %v166 = vld [vmem:[%s1 + $0x1ec] sm:$0xf]
  %v167 = vld [vmem:[%s1 + $0x1f0] sm:$0xf]
  %v168 = vld [vmem:[%s1 + $0x1f4] sm:$0xf]
  %v169 = vld [vmem:[%s1 + $0x1f8] sm:$0xf]
  %v170 = vld [vmem:[%s1 + $0x1fc] sm:$0xf]
  %v171 = vld [vmem:[%s1 + $0x200] sm:$0xf]
  %v172 = vld [vmem:[%s1 + $0x204] sm:$0xf]
  %v173 = vld [vmem:[%s1 + $0x208] sm:$0xf]
  %v174 = vld [vmem:[%s1 + $0x20c] sm:$0xf]
  %v175 = vld [vmem:[%s1 + $0x210] sm:$0xf]
  %v176 = vld [vmem:[%s1 + $0x214] sm:$0xf]
  %v177 = vld [vmem:[%s1 + $0x218] sm:$0xf]
  %v178 = vld [vmem:[%s1 + $0x21c] sm:$0xf]
  %v179 = vld [vmem:[%s1 + $0x220] sm:$0xf]
  %v180 = vld [vmem:[%s1 + $0x224] sm:$0xf]
  %v181 = vld [vmem:[%s1 + $0x228] sm:$0xf]
  %v182 = vld [vmem:[%s1 + $0x22c] sm:$0xf]
  %v183 = vld [vmem:[%s1 + $0x230] sm:$0xf]
  %v184 = vld [vmem:[%s1 + $0x234] sm:$0xf]
  %v185 = vld [vmem:[%s1 + $0x238] sm:$0xf]
  %v186 = vld [vmem:[%s1 + $0x23c] sm:$0xf]
  %v187 = vld [vmem:[%s1 + $0x240] sm:$0xf]
  %v188 = vld [vmem:[%s1 + $0x244] sm:$0xf]
  %v189 = vld [vmem:[%s1 + $0x248] sm:$0xf]
  %v190 = vld [vmem:[%s1 + $0x24c] sm:$0xf]
  %v191 = vld [vmem:[%s1 + $0x250] sm:$0xf]
  %v192 = vld [vmem:[%s1 + $0x254] sm:$0xf]
  %v193 = vld [vmem:[%s1 + $0x258] sm:$0xf]
  %v194 = vld [vmem:[%s1 + $0x25c] sm:$0xf]
  %v195 = vld [vmem:[%s1 + $0x260] sm:$0xf]
  %v196 = vld [vmem:[%s1 + $0x264] sm:$0xf]
  %v197 = vld [vmem:[%s1 + $0x268] sm:$0xf]
  %v198 = vld [vmem:[%s1 + $0x26c] sm:$0xf]
  %v199 = vld [vmem:[%s1 + $0x270] sm:$0xf]
  %v200 = vld [vmem:[%s1 + $0x274] sm:$0xf]
  %v201 = vld [vmem:[%s1 + $0x278] sm:$0xf]
  %v202 = vld [vmem:[%s1 + $0x27c] sm:$0xf]
  %v203 = vld [vmem:[%s1 + $0x280] sm:$0xf]
  %v204 = vld [vmem:[%s1 + $0x284] sm:$0xf]
  %v205 = vld [vmem:[%s1 + $0x288] sm:$0xf]
  %v206 = vld [vmem:[%s1 + $0x28c] sm:$0xf]
  %v207 = vld [vmem:[%s1 + $0x290] sm:$0xf]
  %v208 = vld [vmem:[%s1 + $0x294] sm:$0xf]
  %v209 = vld [vmem:[%s1 + $0x298] sm:$0xf]
  %v210 = vld [vmem:[%s1 + $0x29c] sm:$0xf]
  %v211 = vld [vmem:[%s1 + $0x2a0] sm:$0xf]
  %v212 = vld [vmem:[%s1 + $0x2a4] sm:$0xf]
  %v213 = vld [vmem:[%s1 + $0x2a8] sm:$0xf]
  %v214 = vld [vmem:[%s1 + $0x2ac] sm:$0xf]
  %v215 = vld [vmem:[%s1 + $0x2b0] sm:$0xf]
  %v216 = vld [vmem:[%s1 + $0x2b4] sm:$0xf]
  %v217 = vld [vmem:[%s1 + $0x2b8] sm:$0xf]
  %v218 = vld [vmem:[%s1 + $0x2bc] sm:$0xf]
  %v219 = vld [vmem:[%s1 + $0x2c0] sm:$0xf]
  %v220 = vld [vmem:[%s1 + $0x2c4] sm:$0xf]
  %v221 = vld [vmem:[%s1 + $0x2c8] sm:$0xf]
  %v222 = vld [vmem:[%s1 + $0x2cc] sm:$0xf]
  %v223 = vld [vmem:[%s1 + $0x2d0] sm:$0xf]
  %v224 = vld [vmem:[%s1 + $0x2d4] sm:$0xf]
  %v225 = vld [vmem:[%s1 + $0x2d8] sm:$0xf]
  %v226 = vld [vmem:[%s1 + $0x2dc] sm:$0xf]
  %v227 = vld [vmem:[%s1 + $0x2e0] sm:$0xf]
  %v228 = vld [vmem:[%s1 + $0x2e4] sm:$0xf]
  %v229 = vld [vmem:[%s1 + $0x2e8] sm:$0xf]
  %v230 = vld [vmem:[%s1 + $0x2ec] sm:$0xf]
  %v231 = vld [vmem:[%s1 + $0x2f0] sm:$0xf]
  %v232 = vld [vmem:[%s1 + $0x2f4] sm:$0xf]
  %v233 = vld [vmem:[%s1 + $0x2f8] sm:$0xf]
  %v234 = vld [vmem:[%s1 + $0x2fc] sm:$0xf]
  %v235 = vld [vmem:[%s1 + $0x300] sm:$0xf]
  %v236 = vld [vmem:[%s1 + $0x304] sm:$0xf]
  %v237 = vld [vmem:[%s1 + $0x308] sm:$0xf]
  %v238 = vld [vmem:[%s1 + $0x30c] sm:$0xf]
  %v239 = vld [vmem:[%s1 + $0x310] sm:$0xf]
  %v240 = vld [vmem:[%s1 + $0x314] sm:$0xf]
  %v241 = vld [vmem:[%s1 + $0x318] sm:$0xf]
  %v242 = vld [vmem:[%s1 + $0x31c] sm:$0xf]
  %v243 = vld [vmem:[%s1 + $0x320] sm:$0xf]
  %v244 = vld [vmem:[%s1 + $0x324] sm:$0xf]
  %v245 = vld [vmem:[%s1 + $0x328] sm:$0xf]
  %v246 = vld [vmem:[%s1 + $0x32c] sm:$0xf]
  %v247 = vld [vmem:[%s1 + $0x330] sm:$0xf]
  %v248 = vld [vmem:[%s1 + $0x334] sm:$0xf]
  %v249 = vld [vmem:[%s1 + $0x338] sm:$0xf]
  %v250 = vld [vmem:[%s1 + $0x33c] sm:$0xf]
  %v251 = vld [vmem:[%s1 + $0x340] sm:$0xf]
  %v252 = vld [vmem:[%s1 + $0x344] sm:$0xf]
  %v253 = vld [vmem:[%s1 + $0x348] sm:$0xf]
  %v254 = vld [vmem:[%s1 + $0x34c] sm:$0xf]
  %v255 = vld [vmem:[%s1 + $0x350] sm:$0xf]
  %v256 = vld [vmem:[%s1 + $0x354] sm:$0xf]
  %v257 = vld [vmem:[%s1 + $0x358] sm:$0xf]
  %v258 = vld [vmem:[%s1 + $0x35c] sm:$0xf]
  %v259 = vld [vmem:[%s2] sm:$0x1]
  %v261 = vlaneseq
  %v262 = vshrl.u32 %v261, 7
  %v263 = vsub.s32 0, %v262
  %v264 = vrot.slane %v259, %v263
  %v294 = vunpack.c.l.b16 %v15
  %v295 = vunpack.c.h.b16 %v15
  %v296 = vunpack.c.l.b16 %v16
  %v297 = vunpack.c.h.b16 %v16
  %v298 = vunpack.c.l.b16 %v17
  %v299 = vunpack.c.h.b16 %v17
  %v300 = vunpack.c.l.b16 %v18
  %v301 = vunpack.c.h.b16 %v18
  %v302 = vunpack.c.l.b16 %v19
  %v303 = vunpack.c.h.b16 %v19
  %v304 = vunpack.c.l.b16 %v20
  %v305 = vunpack.c.h.b16 %v20
  %v306 = vunpack.c.l.b16 %v21
  %v307 = vunpack.c.h.b16 %v21
  %v308 = vunpack.c.l.b16 %v22
  %v309 = vunpack.c.h.b16 %v22
  %v310 = vunpack.c.l.b16 %v23
  %v311 = vunpack.c.h.b16 %v23
  %v312 = vunpack.c.l.b16 %v24
  %v313 = vunpack.c.h.b16 %v24
  %v314 = vunpack.c.l.b16 %v25
  %v315 = vunpack.c.h.b16 %v25
  %v316 = vunpack.c.l.b16 %v26
  %v317 = vunpack.c.h.b16 %v26
  %v318 = vunpack.c.l.b16 %v27
  %v319 = vunpack.c.h.b16 %v27
  %v320 = vunpack.c.l.b16 %v28
  %v321 = vunpack.c.h.b16 %v28
  %v322 = vunpack.c.l.b16 %v29
  %v323 = vunpack.c.h.b16 %v29
  %v324 = vunpack.c.l.b16 %v30
  %v325 = vunpack.c.h.b16 %v30
  %v326 = vunpack.c.l.b16 %v31
  %v327 = vunpack.c.h.b16 %v31
  %v328 = vunpack.c.l.b16 %v32
  %v329 = vunpack.c.h.b16 %v32
  %v330 = vunpack.c.l.b16 %v33
  %v331 = vunpack.c.h.b16 %v33
  %v332 = vunpack.c.l.b16 %v34
  %v333 = vunpack.c.h.b16 %v34
  %v334 = vunpack.c.l.b16 %v35
  %v335 = vunpack.c.h.b16 %v35
  %v336 = vunpack.c.l.b16 %v36
  %v337 = vunpack.c.h.b16 %v36
  %v338 = vunpack.c.l.b16 %v37
  %v339 = vunpack.c.h.b16 %v37
  %v340 = vunpack.c.l.b16 %v38
  %v341 = vunpack.c.h.b16 %v38
  %v342 = vunpack.c.l.b16 %v39
  %v343 = vunpack.c.h.b16 %v39
  %v344 = vunpack.c.l.b16 %v40
  %v345 = vunpack.c.h.b16 %v40
  %v346 = vunpack.c.l.b16 %v41
  %v347 = vunpack.c.h.b16 %v41
  %v348 = vunpack.c.l.b16 %v42
  %v349 = vunpack.c.h.b16 %v42
  %v350 = vpack.c.b16 %v308, %v294
  %v351 = vpack.c.b16 %v309, %v295
  %v352 = vpack.c.b16 %v310, %v296
  %v353 = vpack.c.b16 %v311, %v297
  %v354 = vpack.c.b16 %v312, %v298
  %v355 = vpack.c.b16 %v313, %v299
  %v356 = vpack.c.b16 %v314, %v300
  %v357 = vpack.c.b16 %v315, %v301
  %v358 = vpack.c.b16 %v316, %v302
  %v359 = vpack.c.b16 %v317, %v303
  %v360 = vpack.c.b16 %v318, %v304
  %v361 = vpack.c.b16 %v319, %v305
  %v362 = vpack.c.b16 %v320, %v306
  %v363 = vpack.c.b16 %v321, %v307
  %v364 = vpack.c.b16 %v336, %v322
  %v365 = vpack.c.b16 %v337, %v323
  %v366 = vpack.c.b16 %v338, %v324
  %v367 = vpack.c.b16 %v339, %v325
  %v368 = vpack.c.b16 %v340, %v326
  %v369 = vpack.c.b16 %v341, %v327
  %v370 = vpack.c.b16 %v342, %v328
  %v371 = vpack.c.b16 %v343, %v329
  %v372 = vpack.c.b16 %v344, %v330
  %v373 = vpack.c.b16 %v345, %v331
  %v374 = vpack.c.b16 %v346, %v332
  %v375 = vpack.c.b16 %v347, %v333
  %v376 = vpack.c.b16 %v348, %v334
  %v377 = vpack.c.b16 %v349, %v335
  %v620 = vunpack.c.l.b16 %v43
  %v621 = vunpack.c.l.b16 %v44
  %v622 = vunpack.c.l.b16 %v45
  %v623 = vunpack.c.l.b16 %v46
  %v624 = vunpack.c.l.b16 %v47
  %v625 = vunpack.c.l.b16 %v48
  %v626 = vunpack.c.l.b16 %v49
  %v627 = vunpack.c.l.b16 %v50
  %v628 = vunpack.c.l.b16 %v51
  %v629 = vunpack.c.l.b16 %v52
  %v630 = vunpack.c.l.b16 %v53
  %v631 = vunpack.c.l.b16 %v54
  %v632 = vunpack.c.l.b16 %v55
  %v633 = vunpack.c.l.b16 %v56
  %v634 = vunpack.c.l.b16 %v57
  %v635 = vunpack.c.l.b16 %v58
  %v636 = vunpack.c.l.b16 %v59
  %v637 = vunpack.c.l.b16 %v60
  %v638 = vunpack.c.l.b16 %v61
  %v639 = vunpack.c.l.b16 %v62
  %v640 = vunpack.c.l.b16 %v63
  %v641 = vunpack.c.l.b16 %v64
  %v642 = vunpack.c.l.b16 %v65
  %v643 = vunpack.c.l.b16 %v66
  %v644 = vunpack.c.l.b16 %v67
  %v645 = vunpack.c.l.b16 %v68
  %v646 = vunpack.c.l.b16 %v69
  %v647 = vunpack.c.l.b16 %v70
  %v648 = vunpack.c.l.b16 %v71
  %v649 = vunpack.c.l.b16 %v72
  %v650 = vunpack.c.l.b16 %v73
  %v651 = vunpack.c.l.b16 %v74
  %v652 = vunpack.c.l.b16 %v75
  %v653 = vunpack.c.l.b16 %v76
  %v654 = vunpack.c.l.b16 %v77
  %v655 = vunpack.c.l.b16 %v78
  %v656 = vunpack.c.l.b16 %v79
  %v657 = vunpack.c.l.b16 %v80
  %v658 = vunpack.c.l.b16 %v81
  %v659 = vunpack.c.l.b16 %v82
  %v660 = vunpack.c.l.b16 %v83
  %v661 = vunpack.c.l.b16 %v84
  %v662 = vunpack.c.l.b16 %v85
  %v663 = vunpack.c.l.b16 %v86
  %v664 = vunpack.c.l.b16 %v87
  %v665 = vunpack.c.l.b16 %v88
  %v666 = vunpack.c.l.b16 %v89
  %v667 = vunpack.c.l.b16 %v90
  %v668 = vunpack.c.l.b16 %v91
  %v669 = vunpack.c.l.b16 %v92
  %v670 = vunpack.c.l.b16 %v93
  %v671 = vunpack.c.l.b16 %v94
  %v672 = vunpack.c.l.b16 %v95
  %v673 = vunpack.c.l.b16 %v96
  %v674 = vunpack.c.l.b16 %v97
  %v675 = vunpack.c.l.b16 %v98
  %v676 = vunpack.c.l.b16 %v99
  %v677 = vunpack.c.l.b16 %v100
  %v678 = vunpack.c.l.b16 %v101
  %v679 = vunpack.c.l.b16 %v102
  %v680 = vunpack.c.l.b16 %v103
  %v681 = vunpack.c.l.b16 %v104
  %v682 = vunpack.c.l.b16 %v105
  %v683 = vunpack.c.l.b16 %v106
  %v684 = vunpack.c.l.b16 %v107
  %v685 = vunpack.c.l.b16 %v108
  %v686 = vunpack.c.l.b16 %v109
  %v687 = vunpack.c.l.b16 %v110
  %v688 = vunpack.c.l.b16 %v111
  %v689 = vunpack.c.l.b16 %v112
  %v690 = vunpack.c.l.b16 %v113
  %v691 = vunpack.c.l.b16 %v114
  %v692 = vunpack.c.l.b16 %v115
  %v693 = vunpack.c.l.b16 %v116
  %v694 = vunpack.c.l.b16 %v117
  %v695 = vunpack.c.l.b16 %v118
  %v696 = vunpack.c.l.b16 %v119
  %v697 = vunpack.c.l.b16 %v120
  %v698 = vunpack.c.l.b16 %v121
  %v699 = vunpack.c.l.b16 %v122
  %v700 = vunpack.c.l.b16 %v123
  %v701 = vunpack.c.l.b16 %v124
  %v702 = vunpack.c.l.b16 %v125
  %v703 = vunpack.c.l.b16 %v126
  %v704 = vunpack.c.l.b16 %v127
  %v705 = vunpack.c.l.b16 %v128
  %v706 = vunpack.c.l.b16 %v129
  %v707 = vunpack.c.l.b16 %v130
  %v708 = vunpack.c.l.b16 %v131
  %v709 = vunpack.c.l.b16 %v132
  %v710 = vunpack.c.l.b16 %v133
  %v711 = vunpack.c.l.b16 %v134
  %v712 = vunpack.c.l.b16 %v135
  %v713 = vunpack.c.l.b16 %v136
  %v714 = vunpack.c.l.b16 %v137
  %v715 = vunpack.c.l.b16 %v138
  %v716 = vunpack.c.l.b16 %v139
  %v717 = vunpack.c.l.b16 %v140
  %v718 = vunpack.c.l.b16 %v141
  %v719 = vunpack.c.l.b16 %v142
  %v720 = vunpack.c.l.b16 %v143
  %v721 = vunpack.c.l.b16 %v144
  %v722 = vunpack.c.l.b16 %v145
  %v723 = vunpack.c.l.b16 %v146
  %v724 = vunpack.c.l.b16 %v147
  %v725 = vunpack.c.l.b16 %v148
  %v726 = vunpack.c.l.b16 %v149
  %v727 = vunpack.c.l.b16 %v150
  %v728 = vunpack.c.l.b16 %v151
  %v729 = vunpack.c.l.b16 %v152
  %v730 = vunpack.c.l.b16 %v153
  %v731 = vunpack.c.l.b16 %v154
  %v732 = vunpack.c.l.b16 %v155
  %v733 = vunpack.c.l.b16 %v156
  %v734 = vunpack.c.l.b16 %v157
  %v735 = vunpack.c.l.b16 %v158
  %v736 = vunpack.c.l.b16 %v159
  %v737 = vunpack.c.l.b16 %v160
  %v738 = vunpack.c.l.b16 %v161
  %v739 = vunpack.c.l.b16 %v162
  %v740 = vunpack.c.l.b16 %v163
  %v741 = vunpack.c.l.b16 %v164
  %v742 = vunpack.c.l.b16 %v165
  %v743 = vunpack.c.l.b16 %v166
  %v744 = vunpack.c.l.b16 %v167
  %v745 = vunpack.c.l.b16 %v168
  %v746 = vunpack.c.l.b16 %v169
  %v747 = vunpack.c.l.b16 %v170
  %v748 = vunpack.c.l.b16 %v171
  %v749 = vunpack.c.l.b16 %v172
  %v750 = vunpack.c.l.b16 %v173
  %v751 = vunpack.c.l.b16 %v174
  %v752 = vunpack.c.l.b16 %v175
  %v753 = vunpack.c.l.b16 %v176
  %v754 = vunpack.c.l.b16 %v177
  %v755 = vunpack.c.l.b16 %v178
  %v756 = vunpack.c.l.b16 %v179
  %v757 = vunpack.c.l.b16 %v180
  %v758 = vunpack.c.l.b16 %v181
  %v759 = vunpack.c.l.b16 %v182
  %v760 = vunpack.c.l.b16 %v183
  %v761 = vunpack.c.l.b16 %v184
  %v762 = vunpack.c.l.b16 %v185
  %v763 = vunpack.c.l.b16 %v186
  %v764 = vunpack.c.l.b16 %v187
  %v765 = vunpack.c.l.b16 %v188
  %v766 = vunpack.c.l.b16 %v189
  %v767 = vunpack.c.l.b16 %v190
  %v768 = vunpack.c.l.b16 %v191
  %v769 = vunpack.c.l.b16 %v192
  %v770 = vunpack.c.l.b16 %v193
  %v771 = vunpack.c.l.b16 %v194
  %v772 = vunpack.c.l.b16 %v195
  %v773 = vunpack.c.l.b16 %v196
  %v774 = vunpack.c.l.b16 %v197
  %v775 = vunpack.c.l.b16 %v198
  %v776 = vunpack.c.l.b16 %v199
  %v777 = vunpack.c.l.b16 %v200
  %v778 = vunpack.c.l.b16 %v201
  %v779 = vunpack.c.l.b16 %v202
  %v780 = vunpack.c.l.b16 %v203
  %v781 = vunpack.c.l.b16 %v204
  %v782 = vunpack.c.l.b16 %v205
  %v783 = vunpack.c.l.b16 %v206
  %v784 = vunpack.c.l.b16 %v207
  %v785 = vunpack.c.l.b16 %v208
  %v786 = vunpack.c.l.b16 %v209
  %v787 = vunpack.c.l.b16 %v210
  %v788 = vunpack.c.l.b16 %v211
  %v789 = vunpack.c.l.b16 %v212
  %v790 = vunpack.c.l.b16 %v213
  %v791 = vunpack.c.l.b16 %v214
  %v792 = vunpack.c.l.b16 %v215
  %v793 = vunpack.c.l.b16 %v216
  %v794 = vunpack.c.l.b16 %v217
  %v795 = vunpack.c.l.b16 %v218
  %v796 = vunpack.c.l.b16 %v219
  %v797 = vunpack.c.l.b16 %v220
  %v798 = vunpack.c.l.b16 %v221
  %v799 = vunpack.c.l.b16 %v222
  %v800 = vunpack.c.l.b16 %v223
  %v801 = vunpack.c.l.b16 %v224
  %v802 = vunpack.c.l.b16 %v225
  %v803 = vunpack.c.l.b16 %v226
  %v804 = vunpack.c.l.b16 %v227
  %v805 = vunpack.c.l.b16 %v228
  %v806 = vunpack.c.l.b16 %v229
  %v807 = vunpack.c.l.b16 %v230
  %v808 = vunpack.c.l.b16 %v231
  %v809 = vunpack.c.l.b16 %v232
  %v810 = vunpack.c.l.b16 %v233
  %v811 = vunpack.c.l.b16 %v234
  %v812 = vunpack.c.l.b16 %v235
  %v813 = vunpack.c.l.b16 %v236
  %v814 = vunpack.c.l.b16 %v237
  %v815 = vunpack.c.l.b16 %v238
  %v816 = vunpack.c.l.b16 %v239
  %v817 = vunpack.c.l.b16 %v240
  %v818 = vunpack.c.l.b16 %v241
  %v819 = vunpack.c.l.b16 %v242
  %v820 = vunpack.c.l.b16 %v243
  %v821 = vunpack.c.l.b16 %v244
  %v822 = vunpack.c.l.b16 %v245
  %v823 = vunpack.c.l.b16 %v246
  %v824 = vunpack.c.l.b16 %v247
  %v825 = vunpack.c.l.b16 %v248
  %v826 = vunpack.c.l.b16 %v249
  %v827 = vunpack.c.l.b16 %v250
  %v828 = vunpack.c.l.b16 %v251
  %v829 = vunpack.c.l.b16 %v252
  %v830 = vunpack.c.l.b16 %v253
  %v831 = vunpack.c.l.b16 %v254
  %v832 = vunpack.c.l.b16 %v255
  %v833 = vunpack.c.l.b16 %v256
  %v834 = vunpack.c.l.b16 %v257
  %v835 = vunpack.c.l.b16 %v258
  %v836 = vpack.c.b16 %v621, %v620
  %v837 = vpack.c.b16 %v623, %v622
  %v838 = vpack.c.b16 %v625, %v624
  %v839 = vpack.c.b16 %v627, %v626
  %v840 = vpack.c.b16 %v629, %v628
  %v841 = vpack.c.b16 %v631, %v630
  %v842 = vpack.c.b16 %v633, %v632
  %v843 = vpack.c.b16 %v635, %v634
  %v844 = vpack.c.b16 %v637, %v636
  %v845 = vpack.c.b16 %v639, %v638
  %v846 = vpack.c.b16 %v641, %v640
  %v847 = vpack.c.b16 %v643, %v642
  %v848 = vpack.c.b16 %v645, %v644
  %v849 = vpack.c.b16 %v647, %v646
  %v850 = vpack.c.b16 %v649, %v648
  %v851 = vpack.c.b16 %v651, %v650
  %v852 = vpack.c.b16 %v653, %v652
  %v853 = vpack.c.b16 %v655, %v654
  %v854 = vpack.c.b16 %v657, %v656
  %v855 = vpack.c.b16 %v659, %v658
  %v856 = vpack.c.b16 %v661, %v660
  %v857 = vpack.c.b16 %v663, %v662
  %v858 = vpack.c.b16 %v665, %v664
  %v859 = vpack.c.b16 %v667, %v666
  %v860 = vpack.c.b16 %v669, %v668
  %v861 = vpack.c.b16 %v671, %v670
  %v862 = vpack.c.b16 %v673, %v672
  %v863 = vpack.c.b16 %v675, %v674
  %v864 = vpack.c.b16 %v677, %v676
  %v865 = vpack.c.b16 %v679, %v678
  %v866 = vpack.c.b16 %v681, %v680
  %v867 = vpack.c.b16 %v683, %v682
  %v868 = vpack.c.b16 %v685, %v684
  %v869 = vpack.c.b16 %v687, %v686
  %v870 = vpack.c.b16 %v689, %v688
  %v871 = vpack.c.b16 %v691, %v690
  %v872 = vpack.c.b16 %v693, %v692
  %v873 = vpack.c.b16 %v695, %v694
  %v874 = vpack.c.b16 %v697, %v696
  %v875 = vpack.c.b16 %v699, %v698
  %v876 = vpack.c.b16 %v701, %v700
  %v877 = vpack.c.b16 %v703, %v702
  %v878 = vpack.c.b16 %v705, %v704
  %v879 = vpack.c.b16 %v707, %v706
  %v880 = vpack.c.b16 %v709, %v708
  %v881 = vpack.c.b16 %v711, %v710
  %v882 = vpack.c.b16 %v713, %v712
  %v883 = vpack.c.b16 %v715, %v714
  %v884 = vpack.c.b16 %v717, %v716
  %v885 = vpack.c.b16 %v719, %v718
  %v886 = vpack.c.b16 %v721, %v720
  %v887 = vpack.c.b16 %v723, %v722
  %v888 = vpack.c.b16 %v725, %v724
  %v889 = vpack.c.b16 %v727, %v726
  %v890 = vpack.c.b16 %v729, %v728
  %v891 = vpack.c.b16 %v731, %v730
  %v892 = vpack.c.b16 %v733, %v732
  %v893 = vpack.c.b16 %v735, %v734
  %v894 = vpack.c.b16 %v737, %v736
  %v895 = vpack.c.b16 %v739, %v738
  %v896 = vpack.c.b16 %v741, %v740
  %v897 = vpack.c.b16 %v743, %v742
  %v898 = vpack.c.b16 %v745, %v744
  %v899 = vpack.c.b16 %v747, %v746
  %v900 = vpack.c.b16 %v749, %v748
  %v901 = vpack.c.b16 %v751, %v750
  %v902 = vpack.c.b16 %v753, %v752
  %v903 = vpack.c.b16 %v755, %v754
  %v904 = vpack.c.b16 %v757, %v756
  %v905 = vpack.c.b16 %v759, %v758
  %v906 = vpack.c.b16 %v761, %v760
  %v907 = vpack.c.b16 %v763, %v762
  %v908 = vpack.c.b16 %v765, %v764
  %v909 = vpack.c.b16 %v767, %v766
  %v910 = vpack.c.b16 %v769, %v768
  %v911 = vpack.c.b16 %v771, %v770
  %v912 = vpack.c.b16 %v773, %v772
  %v913 = vpack.c.b16 %v775, %v774
  %v914 = vpack.c.b16 %v777, %v776
  %v915 = vpack.c.b16 %v779, %v778
  %v916 = vpack.c.b16 %v781, %v780
  %v917 = vpack.c.b16 %v783, %v782
  %v918 = vpack.c.b16 %v785, %v784
  %v919 = vpack.c.b16 %v787, %v786
  %v920 = vpack.c.b16 %v789, %v788
  %v921 = vpack.c.b16 %v791, %v790
  %v922 = vpack.c.b16 %v793, %v792
  %v923 = vpack.c.b16 %v795, %v794
  %v924 = vpack.c.b16 %v797, %v796
  %v925 = vpack.c.b16 %v799, %v798
  %v926 = vpack.c.b16 %v801, %v800
  %v927 = vpack.c.b16 %v803, %v802
  %v928 = vpack.c.b16 %v805, %v804
  %v929 = vpack.c.b16 %v807, %v806
  %v930 = vpack.c.b16 %v809, %v808
  %v931 = vpack.c.b16 %v811, %v810
  %v932 = vpack.c.b16 %v813, %v812
  %v933 = vpack.c.b16 %v815, %v814
  %v934 = vpack.c.b16 %v817, %v816
  %v935 = vpack.c.b16 %v819, %v818
  %v936 = vpack.c.b16 %v821, %v820
  %v937 = vpack.c.b16 %v823, %v822
  %v938 = vpack.c.b16 %v825, %v824
  %v939 = vpack.c.b16 %v827, %v826
  %v940 = vpack.c.b16 %v829, %v828
  %v941 = vpack.c.b16 %v831, %v830
  %v942 = vpack.c.b16 %v833, %v832
  %v943 = vpack.c.b16 %v835, %v834
  %vm1052 = vcmask 523264
  %v1054 = vsel %vm1052, %v363, 0
  %v1057 = vsel %vm1052, %v377, 0
  %1059 = vmatprep.subr.bf16.mxu0 0
  %1060 = vmatpush1.bf16.msra.mxu0 %v843
  %1061 = vmatprep.subr.bf16.mxu0 0
  %1062 = vmatpush1.bf16.msra.mxu0 %v842
  %1063 = vmatprep.subr.bf16.mxu0 0
  %1064 = vmatpush1.bf16.msra.mxu0 %v841
  %1065 = vmatprep.subr.bf16.mxu0 0
  %1066 = vmatpush1.bf16.msra.mxu0 %v840
  %1067 = vmatprep.subr.bf16.mxu0 0
  %1068 = vmatpush1.bf16.msra.mxu0 %v839
  %1069 = vmatprep.subr.bf16.mxu0 0
  %1070 = vmatpush1.bf16.msra.mxu0 %v838
  %1071 = vmatprep.subr.bf16.mxu0 0
  %1072 = vmatpush1.bf16.msra.mxu0 %v837
  %1073 = vmatprep.subr.bf16.mxu0 0
  %1074 = vmatpush1.bf16.msra.mxu0 %v836
  %1075 = vmatprep.subr.bf16.mxu0 0
  %1076 = vmatpush2.bf16.msra.mxu0 %v851
  %1077 = vmatprep.subr.bf16.mxu0 0
  %1078 = vmatpush2.bf16.msra.mxu0 %v850
  %1079 = vmatprep.subr.bf16.mxu0 0
  %1080 = vmatpush2.bf16.msra.mxu0 %v849
  %1081 = vmatprep.subr.bf16.mxu0 0
  %1082 = vmatpush2.bf16.msra.mxu0 %v848
  %1083 = vmatprep.subr.bf16.mxu0 0
  %1084 = vmatpush2.bf16.msra.mxu0 %v847
  %1085 = vmatprep.subr.bf16.mxu0 0
  %1086 = vmatpush2.bf16.msra.mxu0 %v846
  %1087 = vmatprep.subr.bf16.mxu0 0
  %1088 = vmatpush2.bf16.msra.mxu0 %v845
  %1089 = vmatprep.subr.bf16.mxu0 0
  %1090 = vmatpush2.bf16.msra.mxu0 %v844
  %1091 = vmatprep.mubr.bf16.mxu0 %v351
  %1092 = vmatmul.mubr.bf16.gmra.mxu0 %v350
  %v1093 = vpop.f32.mrf.mxu0
  %v1094 = vadd.f32 %v264, %v1093
  %v1095 = vpop.f32.mrf.mxu0
  %v1096 = vpop.f32.mrf.mxu0
  %v1097 = vadd.f32 %v264, %v1096
  %v1098 = vpop.f32.mrf.mxu0
  %1099 = vmatprep.mubr.bf16.mxu0 %v365
  %1100 = vmatmul.mubr.bf16.gmra.mxu0 %v364
  %v1101 = vpop.f32.mrf.mxu0
  %v1102 = vadd.f32 %v264, %v1101
  %v1103 = vpop.f32.mrf.mxu0
  %v1104 = vpop.f32.mrf.mxu0
  %v1105 = vadd.f32 %v264, %v1104
  %v1106 = vpop.f32.mrf.mxu0
  %1107 = vdwg.mxu0
  %1108 = vmatprep.subr.bf16.mxu0 0
  %1109 = vmatpush1.bf16.msra.mxu0 %v859
  %1110 = vmatprep.subr.bf16.mxu0 0
  %1111 = vmatpush1.bf16.msra.mxu0 %v858
  %1112 = vmatprep.subr.bf16.mxu0 0
  %1113 = vmatpush1.bf16.msra.mxu0 %v857
  %1114 = vmatprep.subr.bf16.mxu0 0
  %1115 = vmatpush1.bf16.msra.mxu0 %v856
  %1116 = vmatprep.subr.bf16.mxu0 0
  %1117 = vmatpush1.bf16.msra.mxu0 %v855
  %1118 = vmatprep.subr.bf16.mxu0 0
  %1119 = vmatpush1.bf16.msra.mxu0 %v854
  %1120 = vmatprep.subr.bf16.mxu0 0
  %1121 = vmatpush1.bf16.msra.mxu0 %v853
  %1122 = vmatprep.subr.bf16.mxu0 0
  %1123 = vmatpush1.bf16.msra.mxu0 %v852
  %1124 = vmatprep.subr.bf16.mxu0 0
  %1125 = vmatpush2.bf16.msra.mxu0 %v867
  %1126 = vmatprep.subr.bf16.mxu0 0
  %1127 = vmatpush2.bf16.msra.mxu0 %v866
  %1128 = vmatprep.subr.bf16.mxu0 0
  %1129 = vmatpush2.bf16.msra.mxu0 %v865
  %1130 = vmatprep.subr.bf16.mxu0 0
  %1131 = vmatpush2.bf16.msra.mxu0 %v864
  %1132 = vmatprep.subr.bf16.mxu0 0
  %1133 = vmatpush2.bf16.msra.mxu0 %v863
  %1134 = vmatprep.subr.bf16.mxu0 0
  %1135 = vmatpush2.bf16.msra.mxu0 %v862
  %1136 = vmatprep.subr.bf16.mxu0 0
  %1137 = vmatpush2.bf16.msra.mxu0 %v861
  %1138 = vmatprep.subr.bf16.mxu0 0
  %1139 = vmatpush2.bf16.msra.mxu0 %v860
  %1140 = vmatprep.mubr.bf16.mxu0 %v353
  %1141 = vmatmul.mubr.bf16.gmra.mxu0 %v352
  %v1142 = vpop.f32.mrf.mxu0
  %v1143 = vadd.f32 %v1094, %v1142
  %v1144 = vpop.f32.mrf.mxu0
  %v1145 = vpop.f32.mrf.mxu0
  %v1146 = vadd.f32 %v1097, %v1145
  %v1147 = vpop.f32.mrf.mxu0
  %1148 = vmatprep.mubr.bf16.mxu0 %v367
  %1149 = vmatmul.mubr.bf16.gmra.mxu0 %v366
  %v1150 = vpop.f32.mrf.mxu0
  %v1151 = vadd.f32 %v1102, %v1150
  %v1152 = vpop.f32.mrf.mxu0
  %v1153 = vpop.f32.mrf.mxu0
  %v1154 = vadd.f32 %v1105, %v1153
  %v1155 = vpop.f32.mrf.mxu0
  %1156 = vdwg.mxu0
  %1157 = vmatprep.subr.bf16.mxu0 0
  %1158 = vmatpush1.bf16.msra.mxu0 %v875
  %1159 = vmatprep.subr.bf16.mxu0 0
  %1160 = vmatpush1.bf16.msra.mxu0 %v874
  %1161 = vmatprep.subr.bf16.mxu0 0
  %1162 = vmatpush1.bf16.msra.mxu0 %v873
  %1163 = vmatprep.subr.bf16.mxu0 0
  %1164 = vmatpush1.bf16.msra.mxu0 %v872
  %1165 = vmatprep.subr.bf16.mxu0 0
  %1166 = vmatpush1.bf16.msra.mxu0 %v871
  %1167 = vmatprep.subr.bf16.mxu0 0
  %1168 = vmatpush1.bf16.msra.mxu0 %v870
  %1169 = vmatprep.subr.bf16.mxu0 0
  %1170 = vmatpush1.bf16.msra.mxu0 %v869
  %1171 = vmatprep.subr.bf16.mxu0 0
  %1172 = vmatpush1.bf16.msra.mxu0 %v868
  %1173 = vmatprep.subr.bf16.mxu0 0
  %1174 = vmatpush2.bf16.msra.mxu0 %v883
  %1175 = vmatprep.subr.bf16.mxu0 0
  %1176 = vmatpush2.bf16.msra.mxu0 %v882
  %1177 = vmatprep.subr.bf16.mxu0 0
  %1178 = vmatpush2.bf16.msra.mxu0 %v881
  %1179 = vmatprep.subr.bf16.mxu0 0
  %1180 = vmatpush2.bf16.msra.mxu0 %v880
  %1181 = vmatprep.subr.bf16.mxu0 0
  %1182 = vmatpush2.bf16.msra.mxu0 %v879
  %1183 = vmatprep.subr.bf16.mxu0 0
  %1184 = vmatpush2.bf16.msra.mxu0 %v878
  %1185 = vmatprep.subr.bf16.mxu0 0
  %1186 = vmatpush2.bf16.msra.mxu0 %v877
  %1187 = vmatprep.subr.bf16.mxu0 0
  %1188 = vmatpush2.bf16.msra.mxu0 %v876
  %1189 = vmatprep.mubr.bf16.mxu0 %v355
  %1190 = vmatmul.mubr.bf16.gmra.mxu0 %v354
  %v1191 = vpop.f32.mrf.mxu0
  %v1192 = vadd.f32 %v1143, %v1191
  %v1193 = vpop.f32.mrf.mxu0
  %v1194 = vpop.f32.mrf.mxu0
  %v1195 = vadd.f32 %v1146, %v1194
  %v1196 = vpop.f32.mrf.mxu0
  %1197 = vmatprep.mubr.bf16.mxu0 %v369
  %1198 = vmatmul.mubr.bf16.gmra.mxu0 %v368
  %v1199 = vpop.f32.mrf.mxu0
  %v1200 = vadd.f32 %v1151, %v1199
  %v1201 = vpop.f32.mrf.mxu0
  %v1202 = vpop.f32.mrf.mxu0
  %v1203 = vadd.f32 %v1154, %v1202
  %v1204 = vpop.f32.mrf.mxu0
  %1205 = vdwg.mxu0
  %1206 = vmatprep.subr.bf16.mxu0 0
  %1207 = vmatpush1.bf16.msra.mxu0 %v891
  %1208 = vmatprep.subr.bf16.mxu0 0
  %1209 = vmatpush1.bf16.msra.mxu0 %v890
  %1210 = vmatprep.subr.bf16.mxu0 0
  %1211 = vmatpush1.bf16.msra.mxu0 %v889
  %1212 = vmatprep.subr.bf16.mxu0 0
  %1213 = vmatpush1.bf16.msra.mxu0 %v888
  %1214 = vmatprep.subr.bf16.mxu0 0
  %1215 = vmatpush1.bf16.msra.mxu0 %v887
  %1216 = vmatprep.subr.bf16.mxu0 0
  %1217 = vmatpush1.bf16.msra.mxu0 %v886
  %1218 = vmatprep.subr.bf16.mxu0 0
  %1219 = vmatpush1.bf16.msra.mxu0 %v885
  %1220 = vmatprep.subr.bf16.mxu0 0
  %1221 = vmatpush1.bf16.msra.mxu0 %v884
  %1222 = vmatprep.subr.bf16.mxu0 0
  %1223 = vmatpush2.bf16.msra.mxu0 %v899
  %1224 = vmatprep.subr.bf16.mxu0 0
  %1225 = vmatpush2.bf16.msra.mxu0 %v898
  %1226 = vmatprep.subr.bf16.mxu0 0
  %1227 = vmatpush2.bf16.msra.mxu0 %v897
  %1228 = vmatprep.subr.bf16.mxu0 0
  %1229 = vmatpush2.bf16.msra.mxu0 %v896
  %1230 = vmatprep.subr.bf16.mxu0 0
  %1231 = vmatpush2.bf16.msra.mxu0 %v895
  %1232 = vmatprep.subr.bf16.mxu0 0
  %1233 = vmatpush2.bf16.msra.mxu0 %v894
  %1234 = vmatprep.subr.bf16.mxu0 0
  %1235 = vmatpush2.bf16.msra.mxu0 %v893
  %1236 = vmatprep.subr.bf16.mxu0 0
  %1237 = vmatpush2.bf16.msra.mxu0 %v892
  %1238 = vmatprep.mubr.bf16.mxu0 %v357
  %1239 = vmatmul.mubr.bf16.gmra.mxu0 %v356
  %v1240 = vpop.f32.mrf.mxu0
  %v1241 = vadd.f32 %v1192, %v1240
  %v1242 = vpop.f32.mrf.mxu0
  %v1243 = vpop.f32.mrf.mxu0
  %v1244 = vadd.f32 %v1195, %v1243
  %v1245 = vpop.f32.mrf.mxu0
  %1246 = vmatprep.mubr.bf16.mxu0 %v371
  %1247 = vmatmul.mubr.bf16.gmra.mxu0 %v370
  %v1248 = vpop.f32.mrf.mxu0
  %v1249 = vadd.f32 %v1200, %v1248
  %v1250 = vpop.f32.mrf.mxu0
  %v1251 = vpop.f32.mrf.mxu0
  %v1252 = vadd.f32 %v1203, %v1251
  %v1253 = vpop.f32.mrf.mxu0
  %1254 = vdwg.mxu0
  %1255 = vmatprep.subr.bf16.mxu0 0
  %1256 = vmatpush1.bf16.msra.mxu0 %v907
  %1257 = vmatprep.subr.bf16.mxu0 0
  %1258 = vmatpush1.bf16.msra.mxu0 %v906
  %1259 = vmatprep.subr.bf16.mxu0 0
  %1260 = vmatpush1.bf16.msra.mxu0 %v905
  %1261 = vmatprep.subr.bf16.mxu0 0
  %1262 = vmatpush1.bf16.msra.mxu0 %v904
  %1263 = vmatprep.subr.bf16.mxu0 0
  %1264 = vmatpush1.bf16.msra.mxu0 %v903
  %1265 = vmatprep.subr.bf16.mxu0 0
  %1266 = vmatpush1.bf16.msra.mxu0 %v902
  %1267 = vmatprep.subr.bf16.mxu0 0
  %1268 = vmatpush1.bf16.msra.mxu0 %v901
  %1269 = vmatprep.subr.bf16.mxu0 0
  %1270 = vmatpush1.bf16.msra.mxu0 %v900
  %1271 = vmatprep.subr.bf16.mxu0 0
  %1272 = vmatpush2.bf16.msra.mxu0 %v915
  %1273 = vmatprep.subr.bf16.mxu0 0
  %1274 = vmatpush2.bf16.msra.mxu0 %v914
  %1275 = vmatprep.subr.bf16.mxu0 0
  %1276 = vmatpush2.bf16.msra.mxu0 %v913
  %1277 = vmatprep.subr.bf16.mxu0 0
  %1278 = vmatpush2.bf16.msra.mxu0 %v912
  %1279 = vmatprep.subr.bf16.mxu0 0
  %1280 = vmatpush2.bf16.msra.mxu0 %v911
  %1281 = vmatprep.subr.bf16.mxu0 0
  %1282 = vmatpush2.bf16.msra.mxu0 %v910
  %1283 = vmatprep.subr.bf16.mxu0 0
  %1284 = vmatpush2.bf16.msra.mxu0 %v909
  %1285 = vmatprep.subr.bf16.mxu0 0
  %1286 = vmatpush2.bf16.msra.mxu0 %v908
  %1287 = vmatprep.mubr.bf16.mxu0 %v359
  %1288 = vmatmul.mubr.bf16.gmra.mxu0 %v358
  %v1289 = vpop.f32.mrf.mxu0
  %v1290 = vadd.f32 %v1241, %v1289
  %v1291 = vpop.f32.mrf.mxu0
  %v1292 = vpop.f32.mrf.mxu0
  %v1293 = vadd.f32 %v1244, %v1292
  %v1294 = vpop.f32.mrf.mxu0
  %1295 = vmatprep.mubr.bf16.mxu0 %v373
  %1296 = vmatmul.mubr.bf16.gmra.mxu0 %v372
  %v1297 = vpop.f32.mrf.mxu0
  %v1298 = vadd.f32 %v1249, %v1297
  %v1299 = vpop.f32.mrf.mxu0
  %v1300 = vpop.f32.mrf.mxu0
  %v1301 = vadd.f32 %v1252, %v1300
  %v1302 = vpop.f32.mrf.mxu0
  %1303 = vdwg.mxu0
  %1304 = vmatprep.subr.bf16.mxu0 0
  %1305 = vmatpush1.bf16.msra.mxu0 %v923
  %1306 = vmatprep.subr.bf16.mxu0 0
  %1307 = vmatpush1.bf16.msra.mxu0 %v922
  %1308 = vmatprep.subr.bf16.mxu0 0
  %1309 = vmatpush1.bf16.msra.mxu0 %v921
  %1310 = vmatprep.subr.bf16.mxu0 0
  %1311 = vmatpush1.bf16.msra.mxu0 %v920
  %1312 = vmatprep.subr.bf16.mxu0 0
  %1313 = vmatpush1.bf16.msra.mxu0 %v919
  %1314 = vmatprep.subr.bf16.mxu0 0
  %1315 = vmatpush1.bf16.msra.mxu0 %v918
  %1316 = vmatprep.subr.bf16.mxu0 0
  %1317 = vmatpush1.bf16.msra.mxu0 %v917
  %1318 = vmatprep.subr.bf16.mxu0 0
  %1319 = vmatpush1.bf16.msra.mxu0 %v916
  %1320 = vmatprep.subr.bf16.mxu0 0
  %1321 = vmatpush2.bf16.msra.mxu0 %v931
  %1322 = vmatprep.subr.bf16.mxu0 0
  %1323 = vmatpush2.bf16.msra.mxu0 %v930
  %1324 = vmatprep.subr.bf16.mxu0 0
  %1325 = vmatpush2.bf16.msra.mxu0 %v929
  %1326 = vmatprep.subr.bf16.mxu0 0
  %1327 = vmatpush2.bf16.msra.mxu0 %v928
  %1328 = vmatprep.subr.bf16.mxu0 0
  %1329 = vmatpush2.bf16.msra.mxu0 %v927
  %1330 = vmatprep.subr.bf16.mxu0 0
  %1331 = vmatpush2.bf16.msra.mxu0 %v926
  %1332 = vmatprep.subr.bf16.mxu0 0
  %1333 = vmatpush2.bf16.msra.mxu0 %v925
  %1334 = vmatprep.subr.bf16.mxu0 0
  %1335 = vmatpush2.bf16.msra.mxu0 %v924
  %1336 = vmatprep.mubr.bf16.mxu0 %v361
  %1337 = vmatmul.mubr.bf16.gmra.mxu0 %v360
  %v1338 = vpop.f32.mrf.mxu0
  %v1339 = vadd.f32 %v1290, %v1338
  %v1340 = vpop.f32.mrf.mxu0
  %v1341 = vpop.f32.mrf.mxu0
  %v1342 = vadd.f32 %v1293, %v1341
  %v1343 = vpop.f32.mrf.mxu0
  %1344 = vmatprep.mubr.bf16.mxu0 %v375
  %1345 = vmatmul.mubr.bf16.gmra.mxu0 %v374
  %v1346 = vpop.f32.mrf.mxu0
  %v1347 = vadd.f32 %v1298, %v1346
  %v1348 = vpop.f32.mrf.mxu0
  %v1349 = vpop.f32.mrf.mxu0
  %v1350 = vadd.f32 %v1301, %v1349
  %v1351 = vpop.f32.mrf.mxu0
  %1352 = vdwg.mxu0
  %1353 = vmatprep.subr.bf16.mxu0 0
  %1354 = vmatpush1.bf16.msra.mxu0 %v939
  %1355 = vmatprep.subr.bf16.mxu0 0
  %1356 = vmatpush1.bf16.msra.mxu0 %v938
  %1357 = vmatprep.subr.bf16.mxu0 0
  %1358 = vmatpush1.bf16.msra.mxu0 %v937
  %1359 = vmatprep.subr.bf16.mxu0 0
  %1360 = vmatpush1.bf16.msra.mxu0 %v936
  %1361 = vmatprep.subr.bf16.mxu0 0
  %1362 = vmatpush1.bf16.msra.mxu0 %v935
  %1363 = vmatprep.subr.bf16.mxu0 0
  %1364 = vmatpush1.bf16.msra.mxu0 %v934
  %1365 = vmatprep.subr.bf16.mxu0 0
  %1366 = vmatpush1.bf16.msra.mxu0 %v933
  %1367 = vmatprep.subr.bf16.mxu0 0
  %1368 = vmatpush1.bf16.msra.mxu0 %v932
  %1369 = vmatprep.subr.bf16.mxu0 0
  %1370 = vmatpush2.bf16.msra.mxu0 0
  %1371 = vmatprep.subr.bf16.mxu0 0
  %1372 = vmatpush2.bf16.msra.mxu0 0
  %1373 = vmatprep.subr.bf16.mxu0 0
  %1374 = vmatpush2.bf16.msra.mxu0 0
  %1375 = vmatprep.subr.bf16.mxu0 0
  %1376 = vmatpush2.bf16.msra.mxu0 0
  %1377 = vmatprep.subr.bf16.mxu0 0
  %1378 = vmatpush2.bf16.msra.mxu0 %v943
  %1379 = vmatprep.subr.bf16.mxu0 0
  %1380 = vmatpush2.bf16.msra.mxu0 %v942
  %1381 = vmatprep.subr.bf16.mxu0 0
  %1382 = vmatpush2.bf16.msra.mxu0 %v941
  %1383 = vmatprep.subr.bf16.mxu0 0
  %1384 = vmatpush2.bf16.msra.mxu0 %v940
  %1385 = vmatprep.mubr.bf16.mxu0 %v1054
  %1386 = vmatmul.mubr.bf16.gmra.mxu0 %v362
  %v1387 = vpop.f32.mrf.mxu0
  %v1388 = vadd.f32 %v1339, %v1387
  %v1389 = vpop.f32.mrf.mxu0
  %v1390 = vpop.f32.mrf.mxu0
  %v1391 = vadd.f32 %v1342, %v1390
  %v1392 = vpop.f32.mrf.mxu0
  %1393 = vmatprep.mubr.bf16.mxu0 %v1057
  %1394 = vmatmul.mubr.bf16.gmra.mxu0 %v376
  %v1395 = vpop.f32.mrf.mxu0
  %v1396 = vadd.f32 %v1347, %v1395
  %v1397 = vpop.f32.mrf.mxu0
  %v1398 = vpop.f32.mrf.mxu0
  %v1399 = vadd.f32 %v1350, %v1398
  %v1400 = vpop.f32.mrf.mxu0
  %1401 = vdwg.mxu0
  %v1402 = vmax.f32 %v1388, 0.0
  %v1403 = vmax.f32 %v1391, 0.0
  %v1404 = vmax.f32 %v1396, 0.0
  %v1405 = vmax.f32 %v1399, 0.0
  %v1406 = vrot.slane %v1402, 4
  %v1407 = vmax.f32 %v1402, %v1406
  %v1408 = vrot.slane %v1407, 2
  %v1409 = vmax.f32 %v1407, %v1408
  %v1410 = vrot.slane %v1409, 1
  %v1411 = vmax.f32 %v1409, %v1410
  %v1412 = vrot.slane %v1403, 4
  %v1413 = vmax.f32 %v1403, %v1412
  %v1414 = vrot.slane %v1413, 2
  %v1415 = vmax.f32 %v1413, %v1414
  %v1416 = vrot.slane %v1415, 1
  %v1417 = vmax.f32 %v1415, %v1416
  %v1418 = vrot.slane %v1404, 4
  %v1419 = vmax.f32 %v1404, %v1418
  %v1420 = vrot.slane %v1419, 2
  %v1421 = vmax.f32 %v1419, %v1420
  %v1422 = vrot.slane %v1421, 1
  %v1423 = vmax.f32 %v1421, %v1422
  %v1424 = vrot.slane %v1405, 4
  %v1425 = vmax.f32 %v1405, %v1424
  %v1426 = vrot.slane %v1425, 2
  %v1427 = vmax.f32 %v1425, %v1426
  %v1428 = vrot.slane %v1427, 1
  %v1429 = vmax.f32 %v1427, %v1428
  %v1430 = vpack.c.bf16 %v1411, %v1411
  %v1431 = vpack.c.bf16 %v1417, %v1417
  %v1432 = vpack.c.bf16 %v1423, %v1423
  %v1433 = vpack.c.bf16 %v1429, %v1429
  %v1439 = vunpack.c.l.s4 1983009808
  %v1440 = vunpack.c.0.s8 %v1439
  %v1441 = vlaneseq
  %v1442 = vshrl.u32 %v1441, 7
  %v1443 = vsub.s32 %v1440, %v1442
  %v1444 = vrot.slane %v1430, %v1443
  %v1446 = vunpack.c.l.s4 1983009808
  %v1447 = vunpack.c.0.s8 %v1446
  %v1448 = vlaneseq
  %v1449 = vshrl.u32 %v1448, 7
  %v1450 = vsub.s32 %v1447, %v1449
  %v1451 = vrot.slane %v1431, %v1450
  %v1453 = vunpack.c.l.s4 1983009808
  %v1454 = vunpack.c.0.s8 %v1453
  %v1455 = vlaneseq
  %v1456 = vshrl.u32 %v1455, 7
  %v1457 = vsub.s32 %v1454, %v1456
  %v1458 = vrot.slane %v1432, %v1457
  %v1460 = vunpack.c.l.s4 1983009808
  %v1461 = vunpack.c.0.s8 %v1460
  %v1462 = vlaneseq
  %v1463 = vshrl.u32 %v1462, 7
  %v1464 = vsub.s32 %v1461, %v1463
  %v1465 = vrot.slane %v1433, %v1464
  %v1467 = vunpack.c.l.s4 1983009808
  %v1468 = vunpack.c.0.s8 %v1467
  %v1469 = vlaneseq
  %v1470 = vshrl.u32 %v1469, 7
  %v1471 = vsub.s32 %v1468, %v1470
  %v1472 = vrot.slane %v1444, %v1471
  %v1474 = vunpack.c.l.s4 1983009808
  %v1475 = vunpack.c.0.s8 %v1474
  %v1476 = vlaneseq
  %v1477 = vshrl.u32 %v1476, 7
  %v1478 = vsub.s32 %v1475, %v1477
  %v1479 = vrot.slane %v1451, %v1478
  %v1481 = vunpack.c.l.s4 1983009808
  %v1482 = vunpack.c.0.s8 %v1481
  %v1483 = vlaneseq
  %v1484 = vshrl.u32 %v1483, 7
  %v1485 = vsub.s32 %v1482, %v1484
  %v1486 = vrot.slane %v1458, %v1485
  %v1488 = vunpack.c.l.s4 1983009808
  %v1489 = vunpack.c.0.s8 %v1488
  %v1490 = vlaneseq
  %v1491 = vshrl.u32 %v1490, 7
  %v1492 = vsub.s32 %v1489, %v1491
  %v1493 = vrot.slane %v1465, %v1492
  %v1494 = vunpack.c.l.b16 %v1472
  %v1495 = vunpack.c.l.b16 %v1479
  %v1496 = vunpack.c.l.b16 %v1486
  %v1497 = vunpack.c.l.b16 %v1493
  %v1498 = vrot.slane %v1495, 7
  %vm1499 = vcmask 1041409
  %v1500 = vsel %vm1499, %v1498, %v1494
  %v1501 = vrot.slane %v1496, 6
  %vm1502 = vcmask 1042434
  %v1503 = vsel %vm1502, %v1501, %v1500
  %v1504 = vrot.slane %v1497, 5
  %vm1505 = vcmask 1043459
  %v1506 = vsel %vm1505, %v1504, %v1503
  %v1507 = vpack.c.b16 %v1506, %v1506
  %v1509 = vunpack.c.l.s4 1983009808
  %v1510 = vunpack.c.0.s8 %v1509
  %v1511 = vlaneseq
  %v1512 = vshrl.u32 %v1511, 7
  %v1513 = vsub.s32 %v1510, %v1512
  %v1514 = vrot.slane %v1507, %v1513
  %1516 = vst [vmem:[%s3] sm:$0x3] %v1514
  // Predicated region
  $region14: #{custom_resnet_video_forward.4} parent=0 // pred_check
    _
  $region15: #{custom_resnet_video_forward.4} parent=0 // pred_check_branch
    %1518 = sbr.rel (0) target = $region17
  $region16: #{custom_resnet_video_forward.4} parent=0 // pred_region
    _
  $region17: #{custom_resnet_video_forward.4} parent=0 // pred_fallthru
    _
  // Predicated region
  $region18: #{custom_resnet_video_forward.4} parent=0 // pred_check
    _
  $region19: #{custom_resnet_video_forward.4} parent=0 // pred_check_branch
    %1520 = sbr.rel (0) target = $region21
  $region20: #{custom_resnet_video_forward.4} parent=0 // pred_region
    _
  $region21: #{custom_resnet_video_forward.4} parent=0 // pred_fallthru
    _

</llo_original>
